<compile_context>
chip_gen: v5e
topology: v5e:2x2
jax: 0.10.0
libtpu: 0.0.40
codegen_flags: <defaults>
</compile_context>

<pallas_src>
import functools

import jax
import jax.numpy as jnp
import numpy as np
from jax.experimental import pallas as pl
from jax.experimental.pallas import tpu as pltpu

EPS = 1e-5
LANE = 128


def _round_up(x, m):
    return (x + m - 1) // m * m


# ----------------------------- Pallas kernels ------------------------------


def fused_block_kernel(p_ref, w_ref, b_ref, g_ref, be_ref, te_ref, wtp_ref,
                       btp_ref, o_ref):
    """Conv (im2col matmul) + BatchNorm(batch stats) + ReLU + time projection.

    p_ref:   (M, K)    im2col patches, M = N*Ho*Wo
    w_ref:   (K, Cp)   conv weight (channel-padded to 128 lanes)
    b_ref, g_ref, be_ref, btp_ref: (1, Cp)
    te_ref:  (N, E)    time embedding
    wtp_ref: (E, Cp)   time-projection weight
    o_ref:   (N, HW, Cp)
    """
    n, hw, cp = o_ref.shape

    # conv as one MXU matmul, f32 accumulation
    y = jnp.dot(p_ref[...], w_ref[...],
                preferred_element_type=jnp.float32) + b_ref[...]        # (M, Cp)

    # training-mode BatchNorm batch statistics (biased variance), two-pass
    mean = jnp.mean(y, axis=0, keepdims=True)                           # (1, Cp)
    d = y - mean
    var = jnp.mean(d * d, axis=0, keepdims=True)
    act = jnp.maximum(
        d * jax.lax.rsqrt(var + EPS) * g_ref[...] + be_ref[...], 0.0)   # (M, Cp)

    # time projection: one (N,E)@(E,Cp) matmul per block (not per sample)
    tproj = jnp.dot(te_ref[...], wtp_ref[...],
                    preferred_element_type=jnp.float32) + btp_ref[...]  # (N, Cp)

    o_ref[...] = act.reshape(n, hw, cp) + tproj[:, None, :]


def pool_fc_kernel(y_ref, w_ref, b_ref, o_ref):
    """AdaptiveAvgPool2d(1) + final Linear for all N samples in one step."""
    pooled = jnp.mean(y_ref[...], axis=1)                               # (N, Cp)
    o_ref[...] = jnp.dot(pooled, w_ref[...],
                         preferred_element_type=jnp.float32) + b_ref[...]


# ------------------------------ JAX glue ------------------------------------


def time_embedding(t, dim):
    # TODO(synk): TimeEmbedding definition not given; standard sinusoidal used.
    half = dim // 2
    freqs = jnp.exp(-jnp.log(10000.0) * jnp.arange(half, dtype=jnp.float32) / half)
    args = t.astype(jnp.float32)[:, None] * freqs[None, :]
    return jnp.concatenate([jnp.sin(args), jnp.cos(args)], axis=-1)     # (N, dim)


def im2col(x, k, stride):
    """x: (N,H,W,Cin) -> patches (N, Ho*Wo, k*k*Cin) for conv with pad=k//2."""
    N, H, W, Cin = x.shape
    pad = k // 2
    xp = jnp.pad(x, ((0, 0), (pad, pad), (pad, pad), (0, 0)))
    Ho = (H + 2 * pad - k) // stride + 1
    Wo = (W + 2 * pad - k) // stride + 1
    cols = []
    for di in range(k):
        for dj in range(k):
            cols.append(xp[:, di:di + stride * Ho:stride,
                           dj:dj + stride * Wo:stride, :])              # (N,Ho,Wo,Cin)
    patches = jnp.concatenate(cols, axis=-1)                            # (N,Ho,Wo,k*k*Cin)
    return patches.reshape(N, Ho * Wo, k * k * Cin), Ho, Wo


def conv_block(x, t_emb, p, stride):
    """One ConvBlock as a single fused Pallas kernel (single grid step)."""
    N = x.shape[0]
    w_conv = p["w_conv"]                    # (k, k, Cin_any, Cp)
    k = w_conv.shape[0]
    Cp = w_conv.shape[-1]
    E = t_emb.shape[-1]

    patches, Ho, Wo = im2col(x, k, stride)
    HW = Ho * Wo
    M = N * HW
    K = patches.shape[-1]
    pat2 = patches.reshape(M, K)
    w2 = w_conv.reshape(K, Cp)

    out = pl.pallas_call(
        fused_block_kernel,
        out_shape=jax.ShapeDtypeStruct((N, HW, Cp), jnp.float32),
        grid=(1,),
        in_specs=[pl.BlockSpec((M, K), lambda i: (0, 0)),
                  pl.BlockSpec((K, Cp), lambda i: (0, 0)),
                  pl.BlockSpec((1, Cp), lambda i: (0, 0)),
                  pl.BlockSpec((1, Cp), lambda i: (0, 0)),
                  pl.BlockSpec((1, Cp), lambda i: (0, 0)),
                  pl.BlockSpec((N, E), lambda i: (0, 0)),
                  pl.BlockSpec((E, Cp), lambda i: (0, 0)),
                  pl.BlockSpec((1, Cp), lambda i: (0, 0))],
        out_specs=pl.BlockSpec((N, HW, Cp), lambda i: (0, 0, 0)),
        compiler_params=pltpu.CompilerParams(
            dimension_semantics=("arbitrary",)),
    )(pat2, w2, p["b_conv"], p["gamma"], p["beta"], t_emb, p["w_tp"], p["b_tp"])

    return out.reshape(N, Ho, Wo, Cp)


def noisy_classifier_forward(x_nchw, t, params, *, num_classes, embedding_dim):
    # layout: PyTorch NCHW -> NHWC for the kernels
    x = jnp.transpose(x_nchw, (0, 2, 3, 1)).astype(jnp.float32)
    t_emb = time_embedding(t, embedding_dim)

    x = conv_block(x, t_emb, params["initial"], stride=1)
    for p in params["downs"]:
        x = conv_block(x, t_emb, p, stride=2)

    N, Ho, Wo, Cp = x.shape
    NCp = params["w_fc"].shape[-1]
    y3 = x.reshape(N, Ho * Wo, Cp)

    logits_pad = pl.pallas_call(
        pool_fc_kernel,
        out_shape=jax.ShapeDtypeStruct((N, NCp), jnp.float32),
        grid=(1,),
        in_specs=[pl.BlockSpec((N, Ho * Wo, Cp), lambda i: (0, 0, 0)),
                  pl.BlockSpec((Cp, NCp), lambda i: (0, 0)),
                  pl.BlockSpec((1, NCp), lambda i: (0, 0))],
        out_specs=pl.BlockSpec((N, NCp), lambda i: (0, 0)),
        compiler_params=pltpu.CompilerParams(
            dimension_semantics=("arbitrary",)),
    )(y3, params["w_fc"], params["b_fc"])
    return logits_pad[:, :num_classes]


# ----------------------- parameters (logical + padded) ----------------------


def init_params(key, in_channels, channels_list, embedding_dim, num_classes, k=3):
    """Logical (unpadded) parameters, PyTorch-equivalent layouts (HWIO conv)."""
    def conv_block_params(key, cin, cout):
        k1, k2, k3 = jax.random.split(key, 3)
        return {
            "w_conv": 0.1 * jax.random.normal(k1, (k, k, cin, cout), jnp.float32),
            "b_conv": 0.05 * jax.random.normal(k2, (1, cout), jnp.float32),
            "gamma": jnp.ones((1, cout), jnp.float32),
            "beta": jnp.zeros((1, cout), jnp.float32),
            "w_tp": 0.1 * jax.random.normal(k3, (embedding_dim, cout), jnp.float32),
            "b_tp": jnp.zeros((1, cout), jnp.float32),
        }

    keys = jax.random.split(key, len(channels_list) + 1)
    params = {
        "initial": conv_block_params(keys[0], in_channels, channels_list[0]),
        "downs": [conv_block_params(keys[i + 1], channels_list[i], channels_list[i + 1])
                  for i in range(len(channels_list) - 1)],
    }
    kf1, kf2 = jax.random.split(keys[-1])
    params["w_fc"] = 0.1 * jax.random.normal(kf1, (channels_list[-1], num_classes),
                                             jnp.float32)
    params["b_fc"] = 0.05 * jax.random.normal(kf2, (1, num_classes), jnp.float32)
    return params


def pad_params(params):
    """Zero-pad channel dims to multiples of 128 for lane-dense kernels.

    Padded output channels stay exactly zero through conv/BN/ReLU/time-proj
    (weights, biases, gamma, beta are zero there), so real-channel results are
    unchanged. Done once, outside the forward pass.
    """
    def pad_last(a, target):
        return jnp.pad(a, [(0, 0)] * (a.ndim - 1) + [(0, target - a.shape[-1])])

    def pad_block(p, cin_pad):
        _, _, cin, cout = p["w_conv"].shape
        cp = _round_up(cout, LANE)
        w = jnp.pad(p["w_conv"],
                    ((0, 0), (0, 0), (0, cin_pad - cin), (0, cp - cout)))
        return {
            "w_conv": w,
            "b_conv": pad_last(p["b_conv"], cp),
            "gamma": pad_last(p["gamma"], cp),
            "beta": pad_last(p["beta"], cp),
            "w_tp": pad_last(p["w_tp"], cp),
            "b_tp": pad_last(p["b_tp"], cp),
        }

    out = {}
    cin0 = params["initial"]["w_conv"].shape[2]       # raw image channels, unpadded
    out["initial"] = pad_block(params["initial"], cin0)
    out["downs"] = [pad_block(p, _round_up(p["w_conv"].shape[2], LANE))
                    for p in params["downs"]]

    c_last, nc = params["w_fc"].shape
    cp_last, ncp = _round_up(c_last, LANE), _round_up(nc, LANE)
    out["w_fc"] = jnp.pad(params["w_fc"], ((0, cp_last - c_last), (0, ncp - nc)))
    out["b_fc"] = pad_last(params["b_fc"], ncp)
    return out


# ---------------------------- pure-JAX reference -----------------------------


def reference_forward(x_nchw, t, params, *, embedding_dim):
    x = jnp.transpose(x_nchw, (0, 2, 3, 1)).astype(jnp.float32)
    t_emb = time_embedding(t, embedding_dim)

    def block(x, p, stride):
        k = p["w_conv"].shape[0]
        pad = k // 2
        y = jax.lax.conv_general_dilated(
            x, p["w_conv"], window_strides=(stride, stride),
            padding=((pad, pad), (pad, pad)),
            dimension_numbers=("NHWC", "HWIO", "NHWC")) + p["b_conv"][0]
        mean = jnp.mean(y, axis=(0, 1, 2))
        var = jnp.mean((y - mean) ** 2, axis=(0, 1, 2))
        y = (y - mean) / jnp.sqrt(var + EPS) * p["gamma"][0] + p["beta"][0]
        y = jnp.maximum(y, 0.0)
        tproj = t_emb @ p["w_tp"] + p["b_tp"][0]
        return y + tproj[:, None, None, :]

    x = block(x, params["initial"], 1)
    for p in params["downs"]:
        x = block(x, p, 2)
    pooled = jnp.mean(x, axis=(1, 2))
    return pooled @ params["w_fc"] + params["b_fc"][0]


# ---------------------------------- main -------------------------------------

if __name__ == "__main__":
    key = jax.random.PRNGKey(0)
    kx, kt, kp = jax.random.split(key, 3)

    batch, in_channels, spatial = 2, 1, 16
    channels_list = [8, 16, 32]
    embedding_dim = 32
    num_classes = 10

    x = jax.random.normal(kx, (batch, in_channels, spatial, spatial), jnp.float32)
    t = jax.random.randint(kt, (batch,), 0, 1000)

    params = init_params(kp, in_channels, channels_list, embedding_dim, num_classes)
    padded = pad_params(params)   # one-time, outside the hot path

    fwd = jax.jit(functools.partial(noisy_classifier_forward,
                                    num_classes=num_classes,
                                    embedding_dim=embedding_dim))
    logits = fwd(x, t, padded)
    logits = jax.block_until_ready(logits)

    ref = reference_forward(x, t, params, embedding_dim=embedding_dim)
    np.testing.assert_allclose(np.asarray(logits), np.asarray(ref),
                               rtol=1e-3, atol=1e-3)

    print("KERNEL_OK")
</pallas_src>

<mosaic_0001>
module attributes {stable_mosaic.version = 11 : i64} {
  func.func @fused_block_kernel(%arg0: i32, %arg1: memref<512x9xf32, #tpu.memory_space<vmem>>, %arg2: memref<9x128xf32, #tpu.memory_space<vmem>>, %arg3: memref<1x128xf32, #tpu.memory_space<vmem>>, %arg4: memref<1x128xf32, #tpu.memory_space<vmem>>, %arg5: memref<1x128xf32, #tpu.memory_space<vmem>>, %arg6: memref<2x32xf32, #tpu.memory_space<vmem>>, %arg7: memref<32x128xf32, #tpu.memory_space<vmem>>, %arg8: memref<1x128xf32, #tpu.memory_space<vmem>>, %arg9: memref<2x256x128xf32, #tpu.memory_space<vmem>>) attributes {dimension_semantics = [#tpu.dimension_semantics<arbitrary>], iteration_bounds = array<i64: 1>, scalar_prefetch = 0 : i64, scratch_operands = 0 : i64, tpu.core_type = #tpu.core_type<tc>, window_params = [{pipeline_mode = #tpu.pipeline_mode<synchronous>, transform_indices = @transform_0, window_bounds = array<i64: 512, 9>}, {pipeline_mode = #tpu.pipeline_mode<synchronous>, transform_indices = @transform_1, window_bounds = array<i64: 9, 128>}, {pipeline_mode = #tpu.pipeline_mode<synchronous>, transform_indices = @transform_2, window_bounds = array<i64: 1, 128>}, {pipeline_mode = #tpu.pipeline_mode<synchronous>, transform_indices = @transform_3, window_bounds = array<i64: 1, 128>}, {pipeline_mode = #tpu.pipeline_mode<synchronous>, transform_indices = @transform_4, window_bounds = array<i64: 1, 128>}, {pipeline_mode = #tpu.pipeline_mode<synchronous>, transform_indices = @transform_5, window_bounds = array<i64: 2, 32>}, {pipeline_mode = #tpu.pipeline_mode<synchronous>, transform_indices = @transform_6, window_bounds = array<i64: 32, 128>}, {pipeline_mode = #tpu.pipeline_mode<synchronous>, transform_indices = @transform_7, window_bounds = array<i64: 1, 128>}, {pipeline_mode = #tpu.pipeline_mode<synchronous>, transform_indices = @transform_8, window_bounds = array<i64: 2, 256, 128>}]} {
    %c0 = arith.constant 0 : index
    %c0_0 = arith.constant 0 : index
    %0 = vector.load %arg1[%c0, %c0_0] : memref<512x9xf32, #tpu.memory_space<vmem>>, vector<512x9xf32>
    %c0_1 = arith.constant 0 : index
    %c0_2 = arith.constant 0 : index
    %1 = vector.load %arg2[%c0_1, %c0_2] : memref<9x128xf32, #tpu.memory_space<vmem>>, vector<9x128xf32>
    %cst = arith.constant dense<0.000000e+00> : vector<512x128xf32>
    %2 = tpu.matmul %0, %1, %cst {dimension_numbers = #tpu.dot_dimension_numbers<[1], [0], [0], [1], [0, 0, 1, 1], [], []>} : vector<512x9xf32>, vector<9x128xf32>, vector<512x128xf32> -> vector<512x128xf32>
    %c0_3 = arith.constant 0 : index
    %c0_4 = arith.constant 0 : index
    %3 = vector.load %arg3[%c0_3, %c0_4] : memref<1x128xf32, #tpu.memory_space<vmem>>, vector<1x128xf32>
    %4 = vector.broadcast %3 : vector<1x128xf32> to vector<512x128xf32>
    %5 = arith.addf %2, %4 : vector<512x128xf32>
    %cst_5 = arith.constant dense<0.000000e+00> : vector<128xf32>
    %6 = vector.multi_reduction <add>, %5, %cst_5 [0] : vector<512x128xf32> to vector<128xf32>
    %7 = vector.shape_cast %6 : vector<128xf32> to vector<1x128xf32>
    %cst_6 = arith.constant 5.120000e+02 : f32
    %8 = vector.broadcast %cst_6 : f32 to vector<1x128xf32>
    %9 = arith.divf %7, %8 : vector<1x128xf32>
    %10 = vector.broadcast %9 : vector<1x128xf32> to vector<512x128xf32>
    %11 = arith.subf %5, %10 : vector<512x128xf32>
    %12 = arith.mulf %11, %11 : vector<512x128xf32>
    %cst_7 = arith.constant dense<0.000000e+00> : vector<128xf32>
    %13 = vector.multi_reduction <add>, %12, %cst_7 [0] : vector<512x128xf32> to vector<128xf32>
    %14 = vector.shape_cast %13 : vector<128xf32> to vector<1x128xf32>
    %cst_8 = arith.constant 5.120000e+02 : f32
    %15 = vector.broadcast %cst_8 : f32 to vector<1x128xf32>
    %16 = arith.divf %14, %15 : vector<1x128xf32>
    %cst_9 = arith.constant 9.99999974E-6 : f32
    %17 = vector.broadcast %cst_9 : f32 to vector<1x128xf32>
    %18 = arith.addf %16, %17 : vector<1x128xf32>
    %19 = math.rsqrt %18 : vector<1x128xf32>
    %20 = vector.broadcast %19 : vector<1x128xf32> to vector<512x128xf32>
    %21 = arith.mulf %11, %20 : vector<512x128xf32>
    %c0_10 = arith.constant 0 : index
    %c0_11 = arith.constant 0 : index
    %22 = vector.load %arg4[%c0_10, %c0_11] : memref<1x128xf32, #tpu.memory_space<vmem>>, vector<1x128xf32>
    %23 = vector.broadcast %22 : vector<1x128xf32> to vector<512x128xf32>
    %24 = arith.mulf %21, %23 : vector<512x128xf32>
    %c0_12 = arith.constant 0 : index
    %c0_13 = arith.constant 0 : index
    %25 = vector.load %arg5[%c0_12, %c0_13] : memref<1x128xf32, #tpu.memory_space<vmem>>, vector<1x128xf32>
    %26 = vector.broadcast %25 : vector<1x128xf32> to vector<512x128xf32>
    %27 = arith.addf %24, %26 : vector<512x128xf32>
    %cst_14 = arith.constant 0.000000e+00 : f32
    %28 = vector.broadcast %cst_14 : f32 to vector<512x128xf32>
    %29 = arith.maximumf %27, %28 : vector<512x128xf32>
    %c0_15 = arith.constant 0 : index
    %c0_16 = arith.constant 0 : index
    %30 = vector.load %arg6[%c0_15, %c0_16] : memref<2x32xf32, #tpu.memory_space<vmem>>, vector<2x32xf32>
    %c0_17 = arith.constant 0 : index
    %c0_18 = arith.constant 0 : index
    %31 = vector.load %arg7[%c0_17, %c0_18] : memref<32x128xf32, #tpu.memory_space<vmem>>, vector<32x128xf32>
    %cst_19 = arith.constant dense<0.000000e+00> : vector<2x128xf32>
    %32 = tpu.matmul %30, %31, %cst_19 {dimension_numbers = #tpu.dot_dimension_numbers<[1], [0], [0], [1], [0, 0, 1, 1], [], []>} : vector<2x32xf32>, vector<32x128xf32>, vector<2x128xf32> -> vector<2x128xf32>
    %c0_20 = arith.constant 0 : index
    %c0_21 = arith.constant 0 : index
    %33 = vector.load %arg8[%c0_20, %c0_21] : memref<1x128xf32, #tpu.memory_space<vmem>>, vector<1x128xf32>
    %34 = vector.broadcast %33 : vector<1x128xf32> to vector<2x128xf32>
    %35 = arith.addf %32, %34 : vector<2x128xf32>
    %36 = vector.shape_cast %29 : vector<512x128xf32> to vector<2x256x128xf32>
    %37 = vector.shape_cast %35 : vector<2x128xf32> to vector<2x1x128xf32>
    %38 = vector.broadcast %37 : vector<2x1x128xf32> to vector<2x256x128xf32>
    %39 = arith.addf %36, %38 : vector<2x256x128xf32>
    %c0_22 = arith.constant 0 : index
    %c0_23 = arith.constant 0 : index
    %c0_24 = arith.constant 0 : index
    %40 = vector.load %arg9[%c0_22, %c0_23, %c0_24] : memref<2x256x128xf32, #tpu.memory_space<vmem>>, vector<2x256x128xf32>
    tpu.vector_store %arg9[%c0_22, %c0_23, %c0_24], %39 {strides = array<i32>} : memref<2x256x128xf32, #tpu.memory_space<vmem>>, vector<2x256x128xf32>,
    return
  }
  func.func @transform_0(%arg0: i32) -> (i32, i32) {
    %c0_i32 = arith.constant 0 : i32
    %c0_i32_0 = arith.constant 0 : i32
    %c0_i32_1 = arith.constant 0 : i32
    return %c0_i32, %c0_i32_0 : i32, i32
  }
  func.func @transform_1(%arg0: i32) -> (i32, i32) {
    %c0_i32 = arith.constant 0 : i32
    %c0_i32_0 = arith.constant 0 : i32
    %c0_i32_1 = arith.constant 0 : i32
    return %c0_i32, %c0_i32_0 : i32, i32
  }
  func.func @transform_2(%arg0: i32) -> (i32, i32) {
    %c0_i32 = arith.constant 0 : i32
    %c0_i32_0 = arith.constant 0 : i32
    %c0_i32_1 = arith.constant 0 : i32
    return %c0_i32, %c0_i32_0 : i32, i32
  }
  func.func @transform_3(%arg0: i32) -> (i32, i32) {
    %c0_i32 = arith.constant 0 : i32
    %c0_i32_0 = arith.constant 0 : i32
    %c0_i32_1 = arith.constant 0 : i32
    return %c0_i32, %c0_i32_0 : i32, i32
  }
  func.func @transform_4(%arg0: i32) -> (i32, i32) {
    %c0_i32 = arith.constant 0 : i32
    %c0_i32_0 = arith.constant 0 : i32
    %c0_i32_1 = arith.constant 0 : i32
    return %c0_i32, %c0_i32_0 : i32, i32
  }
  func.func @transform_5(%arg0: i32) -> (i32, i32) {
    %c0_i32 = arith.constant 0 : i32
    %c0_i32_0 = arith.constant 0 : i32
    %c0_i32_1 = arith.constant 0 : i32
    return %c0_i32, %c0_i32_0 : i32, i32
  }
  func.func @transform_6(%arg0: i32) -> (i32, i32) {
    %c0_i32 = arith.constant 0 : i32
    %c0_i32_0 = arith.constant 0 : i32
    %c0_i32_1 = arith.constant 0 : i32
    return %c0_i32, %c0_i32_0 : i32, i32
  }
  func.func @transform_7(%arg0: i32) -> (i32, i32) {
    %c0_i32 = arith.constant 0 : i32
    %c0_i32_0 = arith.constant 0 : i32
    %c0_i32_1 = arith.constant 0 : i32
    return %c0_i32, %c0_i32_0 : i32, i32
  }
  func.func @transform_8(%arg0: i32) -> (i32, i32, i32) {
    %c0_i32 = arith.constant 0 : i32
    %c0_i32_0 = arith.constant 0 : i32
    %c0_i32_1 = arith.constant 0 : i32
    %c0_i32_2 = arith.constant 0 : i32
    return %c0_i32, %c0_i32_0, %c0_i32_1 : i32, i32, i32
  }
}

module attributes {stable_mosaic.version = 11 : i64} {
  func.func @fused_block_kernel(%arg0: i32, %arg1: memref<128x1152xf32, #tpu.memory_space<vmem>>, %arg2: memref<1152x128xf32, #tpu.memory_space<vmem>>, %arg3: memref<1x128xf32, #tpu.memory_space<vmem>>, %arg4: memref<1x128xf32, #tpu.memory_space<vmem>>, %arg5: memref<1x128xf32, #tpu.memory_space<vmem>>, %arg6: memref<2x32xf32, #tpu.memory_space<vmem>>, %arg7: memref<32x128xf32, #tpu.memory_space<vmem>>, %arg8: memref<1x128xf32, #tpu.memory_space<vmem>>, %arg9: memref<2x64x128xf32, #tpu.memory_space<vmem>>) attributes {dimension_semantics = [#tpu.dimension_semantics<arbitrary>], iteration_bounds = array<i64: 1>, scalar_prefetch = 0 : i64, scratch_operands = 0 : i64, tpu.core_type = #tpu.core_type<tc>, window_params = [{pipeline_mode = #tpu.pipeline_mode<synchronous>, transform_indices = @transform_0, window_bounds = array<i64: 128, 1152>}, {pipeline_mode = #tpu.pipeline_mode<synchronous>, transform_indices = @transform_1, window_bounds = array<i64: 1152, 128>}, {pipeline_mode = #tpu.pipeline_mode<synchronous>, transform_indices = @transform_2, window_bounds = array<i64: 1, 128>}, {pipeline_mode = #tpu.pipeline_mode<synchronous>, transform_indices = @transform_3, window_bounds = array<i64: 1, 128>}, {pipeline_mode = #tpu.pipeline_mode<synchronous>, transform_indices = @transform_4, window_bounds = array<i64: 1, 128>}, {pipeline_mode = #tpu.pipeline_mode<synchronous>, transform_indices = @transform_5, window_bounds = array<i64: 2, 32>}, {pipeline_mode = #tpu.pipeline_mode<synchronous>, transform_indices = @transform_6, window_bounds = array<i64: 32, 128>}, {pipeline_mode = #tpu.pipeline_mode<synchronous>, transform_indices = @transform_7, window_bounds = array<i64: 1, 128>}, {pipeline_mode = #tpu.pipeline_mode<synchronous>, transform_indices = @transform_8, window_bounds = array<i64: 2, 64, 128>}]} {
    %c0 = arith.constant 0 : index
    %c0_0 = arith.constant 0 : index
    %0 = vector.load %arg1[%c0, %c0_0] : memref<128x1152xf32, #tpu.memory_space<vmem>>, vector<128x1152xf32>
    %c0_1 = arith.constant 0 : index
    %c0_2 = arith.constant 0 : index
    %1 = vector.load %arg2[%c0_1, %c0_2] : memref<1152x128xf32, #tpu.memory_space<vmem>>, vector<1152x128xf32>
    %cst = arith.constant dense<0.000000e+00> : vector<128x128xf32>
    %2 = tpu.matmul %0, %1, %cst {dimension_numbers = #tpu.dot_dimension_numbers<[1], [0], [0], [1], [0, 0, 1, 1], [], []>} : vector<128x1152xf32>, vector<1152x128xf32>, vector<128x128xf32> -> vector<128x128xf32>
    %c0_3 = arith.constant 0 : index
    %c0_4 = arith.constant 0 : index
    %3 = vector.load %arg3[%c0_3, %c0_4] : memref<1x128xf32, #tpu.memory_space<vmem>>, vector<1x128xf32>
    %4 = vector.broadcast %3 : vector<1x128xf32> to vector<128x128xf32>
    %5 = arith.addf %2, %4 : vector<128x128xf32>
    %cst_5 = arith.constant dense<0.000000e+00> : vector<128xf32>
    %6 = vector.multi_reduction <add>, %5, %cst_5 [0] : vector<128x128xf32> to vector<128xf32>
    %7 = vector.shape_cast %6 : vector<128xf32> to vector<1x128xf32>
    %cst_6 = arith.constant 1.280000e+02 : f32
    %8 = vector.broadcast %cst_6 : f32 to vector<1x128xf32>
    %9 = arith.divf %7, %8 : vector<1x128xf32>
    %10 = vector.broadcast %9 : vector<1x128xf32> to vector<128x128xf32>
    %11 = arith.subf %5, %10 : vector<128x128xf32>
    %12 = arith.mulf %11, %11 : vector<128x128xf32>
    %cst_7 = arith.constant dense<0.000000e+00> : vector<128xf32>
    %13 = vector.multi_reduction <add>, %12, %cst_7 [0] : vector<128x128xf32> to vector<128xf32>
    %14 = vector.shape_cast %13 : vector<128xf32> to vector<1x128xf32>
    %cst_8 = arith.constant 1.280000e+02 : f32
    %15 = vector.broadcast %cst_8 : f32 to vector<1x128xf32>
    %16 = arith.divf %14, %15 : vector<1x128xf32>
    %cst_9 = arith.constant 9.99999974E-6 : f32
    %17 = vector.broadcast %cst_9 : f32 to vector<1x128xf32>
    %18 = arith.addf %16, %17 : vector<1x128xf32>
    %19 = math.rsqrt %18 : vector<1x128xf32>
    %20 = vector.broadcast %19 : vector<1x128xf32> to vector<128x128xf32>
    %21 = arith.mulf %11, %20 : vector<128x128xf32>
    %c0_10 = arith.constant 0 : index
    %c0_11 = arith.constant 0 : index
    %22 = vector.load %arg4[%c0_10, %c0_11] : memref<1x128xf32, #tpu.memory_space<vmem>>, vector<1x128xf32>
    %23 = vector.broadcast %22 : vector<1x128xf32> to vector<128x128xf32>
    %24 = arith.mulf %21, %23 : vector<128x128xf32>
    %c0_12 = arith.constant 0 : index
    %c0_13 = arith.constant 0 : index
    %25 = vector.load %arg5[%c0_12, %c0_13] : memref<1x128xf32, #tpu.memory_space<vmem>>, vector<1x128xf32>
    %26 = vector.broadcast %25 : vector<1x128xf32> to vector<128x128xf32>
    %27 = arith.addf %24, %26 : vector<128x128xf32>
    %cst_14 = arith.constant 0.000000e+00 : f32
    %28 = vector.broadcast %cst_14 : f32 to vector<128x128xf32>
    %29 = arith.maximumf %27, %28 : vector<128x128xf32>
    %c0_15 = arith.constant 0 : index
    %c0_16 = arith.constant 0 : index
    %30 = vector.load %arg6[%c0_15, %c0_16] : memref<2x32xf32, #tpu.memory_space<vmem>>, vector<2x32xf32>
    %c0_17 = arith.constant 0 : index
    %c0_18 = arith.constant 0 : index
    %31 = vector.load %arg7[%c0_17, %c0_18] : memref<32x128xf32, #tpu.memory_space<vmem>>, vector<32x128xf32>
    %cst_19 = arith.constant dense<0.000000e+00> : vector<2x128xf32>
    %32 = tpu.matmul %30, %31, %cst_19 {dimension_numbers = #tpu.dot_dimension_numbers<[1], [0], [0], [1], [0, 0, 1, 1], [], []>} : vector<2x32xf32>, vector<32x128xf32>, vector<2x128xf32> -> vector<2x128xf32>
    %c0_20 = arith.constant 0 : index
    %c0_21 = arith.constant 0 : index
    %33 = vector.load %arg8[%c0_20, %c0_21] : memref<1x128xf32, #tpu.memory_space<vmem>>, vector<1x128xf32>
    %34 = vector.broadcast %33 : vector<1x128xf32> to vector<2x128xf32>
    %35 = arith.addf %32, %34 : vector<2x128xf32>
    %36 = vector.shape_cast %29 : vector<128x128xf32> to vector<2x64x128xf32>
    %37 = vector.shape_cast %35 : vector<2x128xf32> to vector<2x1x128xf32>
    %38 = vector.broadcast %37 : vector<2x1x128xf32> to vector<2x64x128xf32>
    %39 = arith.addf %36, %38 : vector<2x64x128xf32>
    %c0_22 = arith.constant 0 : index
    %c0_23 = arith.constant 0 : index
    %c0_24 = arith.constant 0 : index
    %40 = vector.load %arg9[%c0_22, %c0_23, %c0_24] : memref<2x64x128xf32, #tpu.memory_space<vmem>>, vector<2x64x128xf32>
    tpu.vector_store %arg9[%c0_22, %c0_23, %c0_24], %39 {strides = array<i32>} : memref<2x64x128xf32, #tpu.memory_space<vmem>>, vector<2x64x128xf32>,
    return
  }
  func.func @transform_0(%arg0: i32) -> (i32, i32) {
    %c0_i32 = arith.constant 0 : i32
    %c0_i32_0 = arith.constant 0 : i32
    %c0_i32_1 = arith.constant 0 : i32
    return %c0_i32, %c0_i32_0 : i32, i32
  }
  func.func @transform_1(%arg0: i32) -> (i32, i32) {
    %c0_i32 = arith.constant 0 : i32
    %c0_i32_0 = arith.constant 0 : i32
    %c0_i32_1 = arith.constant 0 : i32
    return %c0_i32, %c0_i32_0 : i32, i32
  }
  func.func @transform_2(%arg0: i32) -> (i32, i32) {
    %c0_i32 = arith.constant 0 : i32
    %c0_i32_0 = arith.constant 0 : i32
    %c0_i32_1 = arith.constant 0 : i32
    return %c0_i32, %c0_i32_0 : i32, i32
  }
  func.func @transform_3(%arg0: i32) -> (i32, i32) {
    %c0_i32 = arith.constant 0 : i32
    %c0_i32_0 = arith.constant 0 : i32
    %c0_i32_1 = arith.constant 0 : i32
    return %c0_i32, %c0_i32_0 : i32, i32
  }
  func.func @transform_4(%arg0: i32) -> (i32, i32) {
    %c0_i32 = arith.constant 0 : i32
    %c0_i32_0 = arith.constant 0 : i32
    %c0_i32_1 = arith.constant 0 : i32
    return %c0_i32, %c0_i32_0 : i32, i32
  }
  func.func @transform_5(%arg0: i32) -> (i32, i32) {
    %c0_i32 = arith.constant 0 : i32
    %c0_i32_0 = arith.constant 0 : i32
    %c0_i32_1 = arith.constant 0 : i32
    return %c0_i32, %c0_i32_0 : i32, i32
  }
  func.func @transform_6(%arg0: i32) -> (i32, i32) {
    %c0_i32 = arith.constant 0 : i32
    %c0_i32_0 = arith.constant 0 : i32
    %c0_i32_1 = arith.constant 0 : i32
    return %c0_i32, %c0_i32_0 : i32, i32
  }
  func.func @transform_7(%arg0: i32) -> (i32, i32) {
    %c0_i32 = arith.constant 0 : i32
    %c0_i32_0 = arith.constant 0 : i32
    %c0_i32_1 = arith.constant 0 : i32
    return %c0_i32, %c0_i32_0 : i32, i32
  }
  func.func @transform_8(%arg0: i32) -> (i32, i32, i32) {
    %c0_i32 = arith.constant 0 : i32
    %c0_i32_0 = arith.constant 0 : i32
    %c0_i32_1 = arith.constant 0 : i32
    %c0_i32_2 = arith.constant 0 : i32
    return %c0_i32, %c0_i32_0, %c0_i32_1 : i32, i32, i32
  }
}

module attributes {stable_mosaic.version = 11 : i64} {
  func.func @fused_block_kernel(%arg0: i32, %arg1: memref<32x1152xf32, #tpu.memory_space<vmem>>, %arg2: memref<1152x128xf32, #tpu.memory_space<vmem>>, %arg3: memref<1x128xf32, #tpu.memory_space<vmem>>, %arg4: memref<1x128xf32, #tpu.memory_space<vmem>>, %arg5: memref<1x128xf32, #tpu.memory_space<vmem>>, %arg6: memref<2x32xf32, #tpu.memory_space<vmem>>, %arg7: memref<32x128xf32, #tpu.memory_space<vmem>>, %arg8: memref<1x128xf32, #tpu.memory_space<vmem>>, %arg9: memref<2x16x128xf32, #tpu.memory_space<vmem>>) attributes {dimension_semantics = [#tpu.dimension_semantics<arbitrary>], iteration_bounds = array<i64: 1>, scalar_prefetch = 0 : i64, scratch_operands = 0 : i64, tpu.core_type = #tpu.core_type<tc>, window_params = [{pipeline_mode = #tpu.pipeline_mode<synchronous>, transform_indices = @transform_0, window_bounds = array<i64: 32, 1152>}, {pipeline_mode = #tpu.pipeline_mode<synchronous>, transform_indices = @transform_1, window_bounds = array<i64: 1152, 128>}, {pipeline_mode = #tpu.pipeline_mode<synchronous>, transform_indices = @transform_2, window_bounds = array<i64: 1, 128>}, {pipeline_mode = #tpu.pipeline_mode<synchronous>, transform_indices = @transform_3, window_bounds = array<i64: 1, 128>}, {pipeline_mode = #tpu.pipeline_mode<synchronous>, transform_indices = @transform_4, window_bounds = array<i64: 1, 128>}, {pipeline_mode = #tpu.pipeline_mode<synchronous>, transform_indices = @transform_5, window_bounds = array<i64: 2, 32>}, {pipeline_mode = #tpu.pipeline_mode<synchronous>, transform_indices = @transform_6, window_bounds = array<i64: 32, 128>}, {pipeline_mode = #tpu.pipeline_mode<synchronous>, transform_indices = @transform_7, window_bounds = array<i64: 1, 128>}, {pipeline_mode = #tpu.pipeline_mode<synchronous>, transform_indices = @transform_8, window_bounds = array<i64: 2, 16, 128>}]} {
    %c0 = arith.constant 0 : index
    %c0_0 = arith.constant 0 : index
    %0 = vector.load %arg1[%c0, %c0_0] : memref<32x1152xf32, #tpu.memory_space<vmem>>, vector<32x1152xf32>
    %c0_1 = arith.constant 0 : index
    %c0_2 = arith.constant 0 : index
    %1 = vector.load %arg2[%c0_1, %c0_2] : memref<1152x128xf32, #tpu.memory_space<vmem>>, vector<1152x128xf32>
    %cst = arith.constant dense<0.000000e+00> : vector<32x128xf32>
    %2 = tpu.matmul %0, %1, %cst {dimension_numbers = #tpu.dot_dimension_numbers<[1], [0], [0], [1], [0, 0, 1, 1], [], []>} : vector<32x1152xf32>, vector<1152x128xf32>, vector<32x128xf32> -> vector<32x128xf32>
    %c0_3 = arith.constant 0 : index
    %c0_4 = arith.constant 0 : index
    %3 = vector.load %arg3[%c0_3, %c0_4] : memref<1x128xf32, #tpu.memory_space<vmem>>, vector<1x128xf32>
    %4 = vector.broadcast %3 : vector<1x128xf32> to vector<32x128xf32>
    %5 = arith.addf %2, %4 : vector<32x128xf32>
    %cst_5 = arith.constant dense<0.000000e+00> : vector<128xf32>
    %6 = vector.multi_reduction <add>, %5, %cst_5 [0] : vector<32x128xf32> to vector<128xf32>
    %7 = vector.shape_cast %6 : vector<128xf32> to vector<1x128xf32>
    %cst_6 = arith.constant 3.200000e+01 : f32
    %8 = vector.broadcast %cst_6 : f32 to vector<1x128xf32>
    %9 = arith.divf %7, %8 : vector<1x128xf32>
    %10 = vector.broadcast %9 : vector<1x128xf32> to vector<32x128xf32>
    %11 = arith.subf %5, %10 : vector<32x128xf32>
    %12 = arith.mulf %11, %11 : vector<32x128xf32>
    %cst_7 = arith.constant dense<0.000000e+00> : vector<128xf32>
    %13 = vector.multi_reduction <add>, %12, %cst_7 [0] : vector<32x128xf32> to vector<128xf32>
    %14 = vector.shape_cast %13 : vector<128xf32> to vector<1x128xf32>
    %cst_8 = arith.constant 3.200000e+01 : f32
    %15 = vector.broadcast %cst_8 : f32 to vector<1x128xf32>
    %16 = arith.divf %14, %15 : vector<1x128xf32>
    %cst_9 = arith.constant 9.99999974E-6 : f32
    %17 = vector.broadcast %cst_9 : f32 to vector<1x128xf32>
    %18 = arith.addf %16, %17 : vector<1x128xf32>
    %19 = math.rsqrt %18 : vector<1x128xf32>
    %20 = vector.broadcast %19 : vector<1x128xf32> to vector<32x128xf32>
    %21 = arith.mulf %11, %20 : vector<32x128xf32>
    %c0_10 = arith.constant 0 : index
    %c0_11 = arith.constant 0 : index
    %22 = vector.load %arg4[%c0_10, %c0_11] : memref<1x128xf32, #tpu.memory_space<vmem>>, vector<1x128xf32>
    %23 = vector.broadcast %22 : vector<1x128xf32> to vector<32x128xf32>
    %24 = arith.mulf %21, %23 : vector<32x128xf32>
    %c0_12 = arith.constant 0 : index
    %c0_13 = arith.constant 0 : index
    %25 = vector.load %arg5[%c0_12, %c0_13] : memref<1x128xf32, #tpu.memory_space<vmem>>, vector<1x128xf32>
    %26 = vector.broadcast %25 : vector<1x128xf32> to vector<32x128xf32>
    %27 = arith.addf %24, %26 : vector<32x128xf32>
    %cst_14 = arith.constant 0.000000e+00 : f32
    %28 = vector.broadcast %cst_14 : f32 to vector<32x128xf32>
    %29 = arith.maximumf %27, %28 : vector<32x128xf32>
    %c0_15 = arith.constant 0 : index
    %c0_16 = arith.constant 0 : index
    %30 = vector.load %arg6[%c0_15, %c0_16] : memref<2x32xf32, #tpu.memory_space<vmem>>, vector<2x32xf32>
    %c0_17 = arith.constant 0 : index
    %c0_18 = arith.constant 0 : index
    %31 = vector.load %arg7[%c0_17, %c0_18] : memref<32x128xf32, #tpu.memory_space<vmem>>, vector<32x128xf32>
    %cst_19 = arith.constant dense<0.000000e+00> : vector<2x128xf32>
    %32 = tpu.matmul %30, %31, %cst_19 {dimension_numbers = #tpu.dot_dimension_numbers<[1], [0], [0], [1], [0, 0, 1, 1], [], []>} : vector<2x32xf32>, vector<32x128xf32>, vector<2x128xf32> -> vector<2x128xf32>
    %c0_20 = arith.constant 0 : index
    %c0_21 = arith.constant 0 : index
    %33 = vector.load %arg8[%c0_20, %c0_21] : memref<1x128xf32, #tpu.memory_space<vmem>>, vector<1x128xf32>
    %34 = vector.broadcast %33 : vector<1x128xf32> to vector<2x128xf32>
    %35 = arith.addf %32, %34 : vector<2x128xf32>
    %36 = vector.shape_cast %29 : vector<32x128xf32> to vector<2x16x128xf32>
    %37 = vector.shape_cast %35 : vector<2x128xf32> to vector<2x1x128xf32>
    %38 = vector.broadcast %37 : vector<2x1x128xf32> to vector<2x16x128xf32>
    %39 = arith.addf %36, %38 : vector<2x16x128xf32>
    %c0_22 = arith.constant 0 : index
    %c0_23 = arith.constant 0 : index
    %c0_24 = arith.constant 0 : index
    %40 = vector.load %arg9[%c0_22, %c0_23, %c0_24] : memref<2x16x128xf32, #tpu.memory_space<vmem>>, vector<2x16x128xf32>
    tpu.vector_store %arg9[%c0_22, %c0_23, %c0_24], %39 {strides = array<i32>} : memref<2x16x128xf32, #tpu.memory_space<vmem>>, vector<2x16x128xf32>,
    return
  }
  func.func @transform_0(%arg0: i32) -> (i32, i32) {
    %c0_i32 = arith.constant 0 : i32
    %c0_i32_0 = arith.constant 0 : i32
    %c0_i32_1 = arith.constant 0 : i32
    return %c0_i32, %c0_i32_0 : i32, i32
  }
  func.func @transform_1(%arg0: i32) -> (i32, i32) {
    %c0_i32 = arith.constant 0 : i32
    %c0_i32_0 = arith.constant 0 : i32
    %c0_i32_1 = arith.constant 0 : i32
    return %c0_i32, %c0_i32_0 : i32, i32
  }
  func.func @transform_2(%arg0: i32) -> (i32, i32) {
    %c0_i32 = arith.constant 0 : i32
    %c0_i32_0 = arith.constant 0 : i32
    %c0_i32_1 = arith.constant 0 : i32
    return %c0_i32, %c0_i32_0 : i32, i32
  }
  func.func @transform_3(%arg0: i32) -> (i32, i32) {
    %c0_i32 = arith.constant 0 : i32
    %c0_i32_0 = arith.constant 0 : i32
    %c0_i32_1 = arith.constant 0 : i32
    return %c0_i32, %c0_i32_0 : i32, i32
  }
  func.func @transform_4(%arg0: i32) -> (i32, i32) {
    %c0_i32 = arith.constant 0 : i32
    %c0_i32_0 = arith.constant 0 : i32
    %c0_i32_1 = arith.constant 0 : i32
    return %c0_i32, %c0_i32_0 : i32, i32
  }
  func.func @transform_5(%arg0: i32) -> (i32, i32) {
    %c0_i32 = arith.constant 0 : i32
    %c0_i32_0 = arith.constant 0 : i32
    %c0_i32_1 = arith.constant 0 : i32
    return %c0_i32, %c0_i32_0 : i32, i32
  }
  func.func @transform_6(%arg0: i32) -> (i32, i32) {
    %c0_i32 = arith.constant 0 : i32
    %c0_i32_0 = arith.constant 0 : i32
    %c0_i32_1 = arith.constant 0 : i32
    return %c0_i32, %c0_i32_0 : i32, i32
  }
  func.func @transform_7(%arg0: i32) -> (i32, i32) {
    %c0_i32 = arith.constant 0 : i32
    %c0_i32_0 = arith.constant 0 : i32
    %c0_i32_1 = arith.constant 0 : i32
    return %c0_i32, %c0_i32_0 : i32, i32
  }
  func.func @transform_8(%arg0: i32) -> (i32, i32, i32) {
    %c0_i32 = arith.constant 0 : i32
    %c0_i32_0 = arith.constant 0 : i32
    %c0_i32_1 = arith.constant 0 : i32
    %c0_i32_2 = arith.constant 0 : i32
    return %c0_i32, %c0_i32_0, %c0_i32_1 : i32, i32, i32
  }
}

module attributes {stable_mosaic.version = 11 : i64} {
  func.func @pool_fc_kernel(%arg0: i32, %arg1: memref<2x16x128xf32, #tpu.memory_space<vmem>>, %arg2: memref<128x128xf32, #tpu.memory_space<vmem>>, %arg3: memref<1x128xf32, #tpu.memory_space<vmem>>, %arg4: memref<2x128xf32, #tpu.memory_space<vmem>>) attributes {dimension_semantics = [#tpu.dimension_semantics<arbitrary>], iteration_bounds = array<i64: 1>, scalar_prefetch = 0 : i64, scratch_operands = 0 : i64, tpu.core_type = #tpu.core_type<tc>, window_params = [{pipeline_mode = #tpu.pipeline_mode<synchronous>, transform_indices = @transform_0, window_bounds = array<i64: 2, 16, 128>}, {pipeline_mode = #tpu.pipeline_mode<synchronous>, transform_indices = @transform_1, window_bounds = array<i64: 128, 128>}, {pipeline_mode = #tpu.pipeline_mode<synchronous>, transform_indices = @transform_2, window_bounds = array<i64: 1, 128>}, {pipeline_mode = #tpu.pipeline_mode<synchronous>, transform_indices = @transform_3, window_bounds = array<i64: 2, 128>}]} {
    %c0 = arith.constant 0 : index
    %c0_0 = arith.constant 0 : index
    %c0_1 = arith.constant 0 : index
    %0 = vector.load %arg1[%c0, %c0_0, %c0_1] : memref<2x16x128xf32, #tpu.memory_space<vmem>>, vector<2x16x128xf32>
    %cst = arith.constant dense<0.000000e+00> : vector<2x128xf32>
    %1 = vector.multi_reduction <add>, %0, %cst [1] : vector<2x16x128xf32> to vector<2x128xf32>
    %cst_2 = arith.constant 1.600000e+01 : f32
    %2 = vector.broadcast %cst_2 : f32 to vector<2x128xf32>
    %3 = arith.divf %1, %2 : vector<2x128xf32>
    %c0_3 = arith.constant 0 : index
    %c0_4 = arith.constant 0 : index
    %4 = vector.load %arg2[%c0_3, %c0_4] : memref<128x128xf32, #tpu.memory_space<vmem>>, vector<128x128xf32>
    %cst_5 = arith.constant dense<0.000000e+00> : vector<2x128xf32>
    %5 = tpu.matmul %3, %4, %cst_5 {dimension_numbers = #tpu.dot_dimension_numbers<[1], [0], [0], [1], [0, 0, 1, 1], [], []>} : vector<2x128xf32>, vector<128x128xf32>, vector<2x128xf32> -> vector<2x128xf32>
    %c0_6 = arith.constant 0 : index
    %c0_7 = arith.constant 0 : index
    %6 = vector.load %arg3[%c0_6, %c0_7] : memref<1x128xf32, #tpu.memory_space<vmem>>, vector<1x128xf32>
    %7 = vector.broadcast %6 : vector<1x128xf32> to vector<2x128xf32>
    %8 = arith.addf %5, %7 : vector<2x128xf32>
    %c0_8 = arith.constant 0 : index
    %c0_9 = arith.constant 0 : index
    %9 = vector.load %arg4[%c0_8, %c0_9] : memref<2x128xf32, #tpu.memory_space<vmem>>, vector<2x128xf32>
    tpu.vector_store %arg4[%c0_8, %c0_9], %8 {strides = array<i32>} : memref<2x128xf32, #tpu.memory_space<vmem>>, vector<2x128xf32>,
    return
  }
  func.func @transform_0(%arg0: i32) -> (i32, i32, i32) {
    %c0_i32 = arith.constant 0 : i32
    %c0_i32_0 = arith.constant 0 : i32
    %c0_i32_1 = arith.constant 0 : i32
    %c0_i32_2 = arith.constant 0 : i32
    return %c0_i32, %c0_i32_0, %c0_i32_1 : i32, i32, i32
  }
  func.func @transform_1(%arg0: i32) -> (i32, i32) {
    %c0_i32 = arith.constant 0 : i32
    %c0_i32_0 = arith.constant 0 : i32
    %c0_i32_1 = arith.constant 0 : i32
    return %c0_i32, %c0_i32_0 : i32, i32
  }
  func.func @transform_2(%arg0: i32) -> (i32, i32) {
    %c0_i32 = arith.constant 0 : i32
    %c0_i32_0 = arith.constant 0 : i32
    %c0_i32_1 = arith.constant 0 : i32
    return %c0_i32, %c0_i32_0 : i32, i32
  }
  func.func @transform_3(%arg0: i32) -> (i32, i32) {
    %c0_i32 = arith.constant 0 : i32
    %c0_i32_0 = arith.constant 0 : i32
    %c0_i32_1 = arith.constant 0 : i32
    return %c0_i32, %c0_i32_0 : i32, i32
  }
}

</mosaic_0001>

<llo_original>
// kernel: noisy_classifier_forward.4
$region0: #{noisy_classifier_forward.4}
  #allocation0 [shape = 'u32[]', space=smem, size = 0x4, offset = 0x4, fixed_abs, tag = 'smem constant byte address 0x4 - core index']
  #allocation1 [shape = 'u32[72,128]{1,0:T(1,128)}', space=vmem, size = 0x9000, scoped, tag = 'internal scratch']
  %s0 = inlined_call_operand.vmem [shape: f32[512,9], index: 0, kind: input, shape index: {}]
  %s1 = inlined_call_operand.vmem [shape: f32[9,128], index: 1, kind: input, shape index: {}]
  %s2 = inlined_call_operand.vmem [shape: f32[1,128], index: 2, kind: input, shape index: {}]
  %s3 = inlined_call_operand.vmem [shape: f32[1,128], index: 3, kind: input, shape index: {}]
  %s4 = inlined_call_operand.vmem [shape: f32[1,128], index: 4, kind: input, shape index: {}]
  %s5 = inlined_call_operand.vmem [shape: f32[2,32], index: 5, kind: input, shape index: {}]
  %s6 = inlined_call_operand.vmem [shape: f32[32,128], index: 6, kind: input, shape index: {}]
  %s7 = inlined_call_operand.vmem [shape: f32[1,128], index: 7, kind: input, shape index: {}]
  %s8 = inlined_call_operand.vmem [shape: f32[2,256,128], index: 8, kind: output, shape index: {}]
  %s9 = sld [smem:[#allocation0]]
  $region42: #{noisy_classifier_forward.4} parent=0
    _
  %s11 = ssub.s32 1, %s9
  %s12 = scalar_select 0, %s11, %s9
  // Predicated region
  $region2: #{noisy_classifier_forward.4} parent=0 // pred_check
    _
  $region3: #{noisy_classifier_forward.4} parent=0 // pred_check_branch
    %14 = sbr.rel (0) target = $region5
  $region4: #{noisy_classifier_forward.4} parent=0 // pred_region
    _
  $region5: #{noisy_classifier_forward.4} parent=0 // pred_fallthru
    _
  // Predicated region
  $region6: #{noisy_classifier_forward.4} parent=0 // pred_check
    _
  $region7: #{noisy_classifier_forward.4} parent=0 // pred_check_branch
    %16 = sbr.rel (0) target = $region9
  $region8: #{noisy_classifier_forward.4} parent=0 // pred_region
    _
  $region9: #{noisy_classifier_forward.4} parent=0 // pred_fallthru
    _
  // Predicated region
  $region10: #{noisy_classifier_forward.4} parent=0 // pred_check
    _
  $region11: #{noisy_classifier_forward.4} parent=0 // pred_check_branch
    %18 = sbr.rel (0) target = $region13
  $region12: #{noisy_classifier_forward.4} parent=0 // pred_region
    _
  $region13: #{noisy_classifier_forward.4} parent=0 // pred_fallthru
    _
  // Predicated region
  $region14: #{noisy_classifier_forward.4} parent=0 // pred_check
    _
  $region15: #{noisy_classifier_forward.4} parent=0 // pred_check_branch
    %20 = sbr.rel (0) target = $region17
  $region16: #{noisy_classifier_forward.4} parent=0 // pred_region
    _
  $region17: #{noisy_classifier_forward.4} parent=0 // pred_fallthru
    _
  // Predicated region
  $region18: #{noisy_classifier_forward.4} parent=0 // pred_check
    _
  $region19: #{noisy_classifier_forward.4} parent=0 // pred_check_branch
    %22 = sbr.rel (0) target = $region21
  $region20: #{noisy_classifier_forward.4} parent=0 // pred_region
    _
  $region21: #{noisy_classifier_forward.4} parent=0 // pred_fallthru
    _
  // Predicated region
  $region22: #{noisy_classifier_forward.4} parent=0 // pred_check
    _
  $region23: #{noisy_classifier_forward.4} parent=0 // pred_check_branch
    %24 = sbr.rel (0) target = $region25
  $region24: #{noisy_classifier_forward.4} parent=0 // pred_region
    _
  $region25: #{noisy_classifier_forward.4} parent=0 // pred_fallthru
    _
  // Predicated region
  $region26: #{noisy_classifier_forward.4} parent=0 // pred_check
    _
  $region27: #{noisy_classifier_forward.4} parent=0 // pred_check_branch
    %26 = sbr.rel (0) target = $region29
  $region28: #{noisy_classifier_forward.4} parent=0 // pred_region
    _
  $region29: #{noisy_classifier_forward.4} parent=0 // pred_fallthru
    _
  // Predicated region
  $region30: #{noisy_classifier_forward.4} parent=0 // pred_check
    _
  $region31: #{noisy_classifier_forward.4} parent=0 // pred_check_branch
    %28 = sbr.rel (0) target = $region33
  $region32: #{noisy_classifier_forward.4} parent=0 // pred_region
    _
  $region33: #{noisy_classifier_forward.4} parent=0 // pred_fallthru
    _
  %v29 = vld [vmem:[%s0] sm:$0xff]
  %v30 = vld [vmem:[%s0 + $0x8] sm:$0xff]
  %v31 = vld [vmem:[%s0 + $0x10] sm:$0xff]
  %v32 = vld [vmem:[%s0 + $0x18] sm:$0xff]
  %v33 = vld [vmem:[%s0 + $0x20] sm:$0xff]
  %v34 = vld [vmem:[%s0 + $0x28] sm:$0xff]
  %v35 = vld [vmem:[%s0 + $0x30] sm:$0xff]
  %v36 = vld [vmem:[%s0 + $0x38] sm:$0xff]
  %v37 = vld [vmem:[%s0 + $0x40] sm:$0xff]
  %v38 = vld [vmem:[%s0 + $0x48] sm:$0xff]
  %v39 = vld [vmem:[%s0 + $0x50] sm:$0xff]
  %v40 = vld [vmem:[%s0 + $0x58] sm:$0xff]
  %v41 = vld [vmem:[%s0 + $0x60] sm:$0xff]
  %v42 = vld [vmem:[%s0 + $0x68] sm:$0xff]
  %v43 = vld [vmem:[%s0 + $0x70] sm:$0xff]
  %v44 = vld [vmem:[%s0 + $0x78] sm:$0xff]
  %v45 = vld [vmem:[%s0 + $0x80] sm:$0xff]
  %v46 = vld [vmem:[%s0 + $0x88] sm:$0xff]
  %v47 = vld [vmem:[%s0 + $0x90] sm:$0xff]
  %v48 = vld [vmem:[%s0 + $0x98] sm:$0xff]
  %v49 = vld [vmem:[%s0 + $0xa0] sm:$0xff]
  %v50 = vld [vmem:[%s0 + $0xa8] sm:$0xff]
  %v51 = vld [vmem:[%s0 + $0xb0] sm:$0xff]
  %v52 = vld [vmem:[%s0 + $0xb8] sm:$0xff]
  %v53 = vld [vmem:[%s0 + $0xc0] sm:$0xff]
  %v54 = vld [vmem:[%s0 + $0xc8] sm:$0xff]
  %v55 = vld [vmem:[%s0 + $0xd0] sm:$0xff]
  %v56 = vld [vmem:[%s0 + $0xd8] sm:$0xff]
  %v57 = vld [vmem:[%s0 + $0xe0] sm:$0xff]
  %v58 = vld [vmem:[%s0 + $0xe8] sm:$0xff]
  %v59 = vld [vmem:[%s0 + $0xf0] sm:$0xff]
  %v60 = vld [vmem:[%s0 + $0xf8] sm:$0xff]
  %v61 = vld [vmem:[%s0 + $0x100] sm:$0xff]
  %v62 = vld [vmem:[%s0 + $0x108] sm:$0xff]
  %v63 = vld [vmem:[%s0 + $0x110] sm:$0xff]
  %v64 = vld [vmem:[%s0 + $0x118] sm:$0xff]
  %v65 = vld [vmem:[%s0 + $0x120] sm:$0xff]
  %v66 = vld [vmem:[%s0 + $0x128] sm:$0xff]
  %v67 = vld [vmem:[%s0 + $0x130] sm:$0xff]
  %v68 = vld [vmem:[%s0 + $0x138] sm:$0xff]
  %v69 = vld [vmem:[%s0 + $0x140] sm:$0xff]
  %v70 = vld [vmem:[%s0 + $0x148] sm:$0xff]
  %v71 = vld [vmem:[%s0 + $0x150] sm:$0xff]
  %v72 = vld [vmem:[%s0 + $0x158] sm:$0xff]
  %v73 = vld [vmem:[%s0 + $0x160] sm:$0xff]
  %v74 = vld [vmem:[%s0 + $0x168] sm:$0xff]
  %v75 = vld [vmem:[%s0 + $0x170] sm:$0xff]
  %v76 = vld [vmem:[%s0 + $0x178] sm:$0xff]
  %v77 = vld [vmem:[%s0 + $0x180] sm:$0xff]
  %v78 = vld [vmem:[%s0 + $0x188] sm:$0xff]
  %v79 = vld [vmem:[%s0 + $0x190] sm:$0xff]
  %v80 = vld [vmem:[%s0 + $0x198] sm:$0xff]
  %v81 = vld [vmem:[%s0 + $0x1a0] sm:$0xff]
  %v82 = vld [vmem:[%s0 + $0x1a8] sm:$0xff]
  %v83 = vld [vmem:[%s0 + $0x1b0] sm:$0xff]
  %v84 = vld [vmem:[%s0 + $0x1b8] sm:$0xff]
  %v85 = vld [vmem:[%s0 + $0x1c0] sm:$0xff]
  %v86 = vld [vmem:[%s0 + $0x1c8] sm:$0xff]
  %v87 = vld [vmem:[%s0 + $0x1d0] sm:$0xff]
  %v88 = vld [vmem:[%s0 + $0x1d8] sm:$0xff]
  %v89 = vld [vmem:[%s0 + $0x1e0] sm:$0xff]
  %v90 = vld [vmem:[%s0 + $0x1e8] sm:$0xff]
  %v91 = vld [vmem:[%s0 + $0x1f0] sm:$0xff]
  %v92 = vld [vmem:[%s0 + $0x1f8] sm:$0xff]
  %v93 = vld [vmem:[%s1] sm:$0xff]
  %v94 = vld [vmem:[%s1 + $0x8] sm:$0x1]
  %v95 = vld [vmem:[%s2] sm:$0x1]
  %v97 = vperm.slane %v95, 0
  %vm99 = vcmask 72704
  %v101 = vsel %vm99, %v29, 0
  %v104 = vsel %vm99, %v30, 0
  %v107 = vsel %vm99, %v31, 0
  %v110 = vsel %vm99, %v32, 0
  %v113 = vsel %vm99, %v33, 0
  %v116 = vsel %vm99, %v34, 0
  %v119 = vsel %vm99, %v35, 0
  %v122 = vsel %vm99, %v36, 0
  %v125 = vsel %vm99, %v37, 0
  %v128 = vsel %vm99, %v38, 0
  %v131 = vsel %vm99, %v39, 0
  %v134 = vsel %vm99, %v40, 0
  %v137 = vsel %vm99, %v41, 0
  %v140 = vsel %vm99, %v42, 0
  %v143 = vsel %vm99, %v43, 0
  %v146 = vsel %vm99, %v44, 0
  %v149 = vsel %vm99, %v45, 0
  %v152 = vsel %vm99, %v46, 0
  %v155 = vsel %vm99, %v47, 0
  %v158 = vsel %vm99, %v48, 0
  %v161 = vsel %vm99, %v49, 0
  %v164 = vsel %vm99, %v50, 0
  %v167 = vsel %vm99, %v51, 0
  %v170 = vsel %vm99, %v52, 0
  %v173 = vsel %vm99, %v53, 0
  %v176 = vsel %vm99, %v54, 0
  %v179 = vsel %vm99, %v55, 0
  %v182 = vsel %vm99, %v56, 0
  %v185 = vsel %vm99, %v57, 0
  %v188 = vsel %vm99, %v58, 0
  %v191 = vsel %vm99, %v59, 0
  %v194 = vsel %vm99, %v60, 0
  %v197 = vsel %vm99, %v61, 0
  %v200 = vsel %vm99, %v62, 0
  %v203 = vsel %vm99, %v63, 0
  %v206 = vsel %vm99, %v64, 0
  %v209 = vsel %vm99, %v65, 0
  %v212 = vsel %vm99, %v66, 0
  %v215 = vsel %vm99, %v67, 0
  %v218 = vsel %vm99, %v68, 0
  %v221 = vsel %vm99, %v69, 0
  %v224 = vsel %vm99, %v70, 0
  %v227 = vsel %vm99, %v71, 0
  %v230 = vsel %vm99, %v72, 0
  %v233 = vsel %vm99, %v73, 0
  %v236 = vsel %vm99, %v74, 0
  %v239 = vsel %vm99, %v75, 0
  %v242 = vsel %vm99, %v76, 0
  %v245 = vsel %vm99, %v77, 0
  %v248 = vsel %vm99, %v78, 0
  %v251 = vsel %vm99, %v79, 0
  %v254 = vsel %vm99, %v80, 0
  %v257 = vsel %vm99, %v81, 0
  %v260 = vsel %vm99, %v82, 0
  %v263 = vsel %vm99, %v83, 0
  %v266 = vsel %vm99, %v84, 0
  %v269 = vsel %vm99, %v85, 0
  %v272 = vsel %vm99, %v86, 0
  %v275 = vsel %vm99, %v87, 0
  %v278 = vsel %vm99, %v88, 0
  %v281 = vsel %vm99, %v89, 0
  %v284 = vsel %vm99, %v90, 0
  %v287 = vsel %vm99, %v91, 0
  %v290 = vsel %vm99, %v92, 0
  %vm292 = vcmask 1040384
  %v294 = vsel %vm292, %v94, 0
  %296 = vmatpush.msra.mxu0 0.0
  %297 = vmatpush.msra.mxu0 0.0
  %298 = vmatpush.msra.mxu0 0.0
  %299 = vmatpush.msra.mxu0 0.0
  %300 = vmatpush.msra.mxu0 0.0
  %301 = vmatpush.msra.mxu0 0.0
  %302 = vmatpush.msra.mxu0 0.0
  %303 = vmatpush.msra.mxu0 0.0
  %304 = vmatpush.msra.mxu0 0.0
  %305 = vmatpush.msra.mxu0 0.0
  %306 = vmatpush.msra.mxu0 0.0
  %307 = vmatpush.msra.mxu0 0.0
  %308 = vmatpush.msra.mxu0 0.0
  %309 = vmatpush.msra.mxu0 0.0
  %310 = vmatpush.msra.mxu0 %v294
  %311 = vmatpush.msra.mxu0 %v93
  %312 = vmatmul.f32.gmra.mxu0 %v101
  %v313 = vpop.f32.mrf.mxu0
  %v314 = vadd.f32 %v97, %v313
  %315 = vmatmul.f32.gmra.mxu0 %v104
  %v316 = vpop.f32.mrf.mxu0
  %v317 = vadd.f32 %v97, %v316
  %318 = vmatmul.f32.gmra.mxu0 %v107
  %v319 = vpop.f32.mrf.mxu0
  %v320 = vadd.f32 %v97, %v319
  %321 = vmatmul.f32.gmra.mxu0 %v110
  %v322 = vpop.f32.mrf.mxu0
  %v323 = vadd.f32 %v97, %v322
  %324 = vmatmul.f32.gmra.mxu0 %v113
  %v325 = vpop.f32.mrf.mxu0
  %v326 = vadd.f32 %v97, %v325
  %327 = vmatmul.f32.gmra.mxu0 %v116
  %v328 = vpop.f32.mrf.mxu0
  %v329 = vadd.f32 %v97, %v328
  %330 = vmatmul.f32.gmra.mxu0 %v119
  %v331 = vpop.f32.mrf.mxu0
  %v332 = vadd.f32 %v97, %v331
  %333 = vmatmul.f32.gmra.mxu0 %v122
  %v334 = vpop.f32.mrf.mxu0
  %v335 = vadd.f32 %v97, %v334
  %336 = vmatmul.f32.gmra.mxu0 %v125
  %v337 = vpop.f32.mrf.mxu0
  %v338 = vadd.f32 %v97, %v337
  %339 = vmatmul.f32.gmra.mxu0 %v128
  %v340 = vpop.f32.mrf.mxu0
  %v341 = vadd.f32 %v97, %v340
  %342 = vmatmul.f32.gmra.mxu0 %v131
  %v343 = vpop.f32.mrf.mxu0
  %v344 = vadd.f32 %v97, %v343
  %345 = vmatmul.f32.gmra.mxu0 %v134
  %v346 = vpop.f32.mrf.mxu0
  %v347 = vadd.f32 %v97, %v346
  %348 = vmatmul.f32.gmra.mxu0 %v137
  %v349 = vpop.f32.mrf.mxu0
  %v350 = vadd.f32 %v97, %v349
  %351 = vmatmul.f32.gmra.mxu0 %v140
  %v352 = vpop.f32.mrf.mxu0
  %v353 = vadd.f32 %v97, %v352
  %354 = vmatmul.f32.gmra.mxu0 %v143
  %v355 = vpop.f32.mrf.mxu0
  %v356 = vadd.f32 %v97, %v355
  %357 = vmatmul.f32.gmra.mxu0 %v146
  %v358 = vpop.f32.mrf.mxu0
  %v359 = vadd.f32 %v97, %v358
  %360 = vmatmul.f32.gmra.mxu0 %v149
  %v361 = vpop.f32.mrf.mxu0
  %v362 = vadd.f32 %v97, %v361
  %363 = vmatmul.f32.gmra.mxu0 %v152
  %v364 = vpop.f32.mrf.mxu0
  %v365 = vadd.f32 %v97, %v364
  %366 = vmatmul.f32.gmra.mxu0 %v155
  %v367 = vpop.f32.mrf.mxu0
  %v368 = vadd.f32 %v97, %v367
  %369 = vmatmul.f32.gmra.mxu0 %v158
  %v370 = vpop.f32.mrf.mxu0
  %v371 = vadd.f32 %v97, %v370
  %372 = vmatmul.f32.gmra.mxu0 %v161
  %v373 = vpop.f32.mrf.mxu0
  %v374 = vadd.f32 %v97, %v373
  %375 = vmatmul.f32.gmra.mxu0 %v164
  %v376 = vpop.f32.mrf.mxu0
  %v377 = vadd.f32 %v97, %v376
  %378 = vmatmul.f32.gmra.mxu0 %v167
  %v379 = vpop.f32.mrf.mxu0
  %v380 = vadd.f32 %v97, %v379
  %381 = vmatmul.f32.gmra.mxu0 %v170
  %v382 = vpop.f32.mrf.mxu0
  %v383 = vadd.f32 %v97, %v382
  %384 = vmatmul.f32.gmra.mxu0 %v173
  %v385 = vpop.f32.mrf.mxu0
  %v386 = vadd.f32 %v97, %v385
  %387 = vmatmul.f32.gmra.mxu0 %v176
  %v388 = vpop.f32.mrf.mxu0
  %v389 = vadd.f32 %v97, %v388
  %390 = vmatmul.f32.gmra.mxu0 %v179
  %v391 = vpop.f32.mrf.mxu0
  %v392 = vadd.f32 %v97, %v391
  %393 = vmatmul.f32.gmra.mxu0 %v182
  %v394 = vpop.f32.mrf.mxu0
  %v395 = vadd.f32 %v97, %v394
  %396 = vmatmul.f32.gmra.mxu0 %v185
  %v397 = vpop.f32.mrf.mxu0
  %v398 = vadd.f32 %v97, %v397
  %399 = vmatmul.f32.gmra.mxu0 %v188
  %v400 = vpop.f32.mrf.mxu0
  %v401 = vadd.f32 %v97, %v400
  %402 = vmatmul.f32.gmra.mxu0 %v191
  %v403 = vpop.f32.mrf.mxu0
  %v404 = vadd.f32 %v97, %v403
  %405 = vmatmul.f32.gmra.mxu0 %v194
  %v406 = vpop.f32.mrf.mxu0
  %v407 = vadd.f32 %v97, %v406
  %408 = vmatmul.f32.gmra.mxu0 %v197
  %v409 = vpop.f32.mrf.mxu0
  %v410 = vadd.f32 %v97, %v409
  %411 = vmatmul.f32.gmra.mxu0 %v200
  %v412 = vpop.f32.mrf.mxu0
  %v413 = vadd.f32 %v97, %v412
  %414 = vmatmul.f32.gmra.mxu0 %v203
  %v415 = vpop.f32.mrf.mxu0
  %v416 = vadd.f32 %v97, %v415
  %417 = vmatmul.f32.gmra.mxu0 %v206
  %v418 = vpop.f32.mrf.mxu0
  %v419 = vadd.f32 %v97, %v418
  %420 = vmatmul.f32.gmra.mxu0 %v209
  %v421 = vpop.f32.mrf.mxu0
  %v422 = vadd.f32 %v97, %v421
  %423 = vmatmul.f32.gmra.mxu0 %v212
  %v424 = vpop.f32.mrf.mxu0
  %v425 = vadd.f32 %v97, %v424
  %426 = vmatmul.f32.gmra.mxu0 %v215
  %v427 = vpop.f32.mrf.mxu0
  %v428 = vadd.f32 %v97, %v427
  %429 = vmatmul.f32.gmra.mxu0 %v218
  %v430 = vpop.f32.mrf.mxu0
  %v431 = vadd.f32 %v97, %v430
  %432 = vmatmul.f32.gmra.mxu0 %v221
  %v433 = vpop.f32.mrf.mxu0
  %v434 = vadd.f32 %v97, %v433
  %435 = vmatmul.f32.gmra.mxu0 %v224
  %v436 = vpop.f32.mrf.mxu0
  %v437 = vadd.f32 %v97, %v436
  %438 = vmatmul.f32.gmra.mxu0 %v227
  %v439 = vpop.f32.mrf.mxu0
  %v440 = vadd.f32 %v97, %v439
  %441 = vmatmul.f32.gmra.mxu0 %v230
  %v442 = vpop.f32.mrf.mxu0
  %v443 = vadd.f32 %v97, %v442
  %444 = vmatmul.f32.gmra.mxu0 %v233
  %v445 = vpop.f32.mrf.mxu0
  %v446 = vadd.f32 %v97, %v445
  %447 = vmatmul.f32.gmra.mxu0 %v236
  %v448 = vpop.f32.mrf.mxu0
  %v449 = vadd.f32 %v97, %v448
  %450 = vmatmul.f32.gmra.mxu0 %v239
  %v451 = vpop.f32.mrf.mxu0
  %v452 = vadd.f32 %v97, %v451
  %453 = vmatmul.f32.gmra.mxu0 %v242
  %v454 = vpop.f32.mrf.mxu0
  %v455 = vadd.f32 %v97, %v454
  %456 = vmatmul.f32.gmra.mxu0 %v245
  %v457 = vpop.f32.mrf.mxu0
  %v458 = vadd.f32 %v97, %v457
  %459 = vmatmul.f32.gmra.mxu0 %v248
  %v460 = vpop.f32.mrf.mxu0
  %v461 = vadd.f32 %v97, %v460
  %462 = vmatmul.f32.gmra.mxu0 %v251
  %v463 = vpop.f32.mrf.mxu0
  %v464 = vadd.f32 %v97, %v463
  %465 = vmatmul.f32.gmra.mxu0 %v254
  %v466 = vpop.f32.mrf.mxu0
  %v467 = vadd.f32 %v97, %v466
  %468 = vmatmul.f32.gmra.mxu0 %v257
  %v469 = vpop.f32.mrf.mxu0
  %v470 = vadd.f32 %v97, %v469
  %471 = vmatmul.f32.gmra.mxu0 %v260
  %v472 = vpop.f32.mrf.mxu0
  %v473 = vadd.f32 %v97, %v472
  %474 = vmatmul.f32.gmra.mxu0 %v263
  %v475 = vpop.f32.mrf.mxu0
  %v476 = vadd.f32 %v97, %v475
  %477 = vmatmul.f32.gmra.mxu0 %v266
  %v478 = vpop.f32.mrf.mxu0
  %v479 = vadd.f32 %v97, %v478
  %480 = vmatmul.f32.gmra.mxu0 %v269
  %v481 = vpop.f32.mrf.mxu0
  %v482 = vadd.f32 %v97, %v481
  %483 = vmatmul.f32.gmra.mxu0 %v272
  %v484 = vpop.f32.mrf.mxu0
  %v485 = vadd.f32 %v97, %v484
  %486 = vmatmul.f32.gmra.mxu0 %v275
  %v487 = vpop.f32.mrf.mxu0
  %v488 = vadd.f32 %v97, %v487
  %489 = vmatmul.f32.gmra.mxu0 %v278
  %v490 = vpop.f32.mrf.mxu0
  %v491 = vadd.f32 %v97, %v490
  %492 = vmatmul.f32.gmra.mxu0 %v281
  %v493 = vpop.f32.mrf.mxu0
  %v494 = vadd.f32 %v97, %v493
  %495 = vmatmul.f32.gmra.mxu0 %v284
  %v496 = vpop.f32.mrf.mxu0
  %v497 = vadd.f32 %v97, %v496
  %498 = vmatmul.f32.gmra.mxu0 %v287
  %v499 = vpop.f32.mrf.mxu0
  %v500 = vadd.f32 %v97, %v499
  %501 = vmatmul.f32.gmra.mxu0 %v290
  %v502 = vpop.f32.mrf.mxu0
  %v503 = vadd.f32 %v97, %v502
  %504 = vdwg.mxu0
  %v505 = vadd.f32 %v314, %v317
  %v506 = vadd.f32 %v505, %v320
  %v507 = vadd.f32 %v506, %v323
  %v508 = vadd.f32 %v507, %v326
  %v509 = vadd.f32 %v508, %v329
  %v510 = vadd.f32 %v509, %v332
  %v511 = vadd.f32 %v510, %v335
  %v512 = vadd.f32 %v511, %v338
  %v513 = vadd.f32 %v512, %v341
  %v514 = vadd.f32 %v513, %v344
  %v515 = vadd.f32 %v514, %v347
  %v516 = vadd.f32 %v515, %v350
  %v517 = vadd.f32 %v516, %v353
  %v518 = vadd.f32 %v517, %v356
  %v519 = vadd.f32 %v518, %v359
  %v520 = vadd.f32 %v519, %v362
  %v521 = vadd.f32 %v520, %v365
  %v522 = vadd.f32 %v521, %v368
  %v523 = vadd.f32 %v522, %v371
  %v524 = vadd.f32 %v523, %v374
  %v525 = vadd.f32 %v524, %v377
  %v526 = vadd.f32 %v525, %v380
  %v527 = vadd.f32 %v526, %v383
  %v528 = vadd.f32 %v527, %v386
  %v529 = vadd.f32 %v528, %v389
  %v530 = vadd.f32 %v529, %v392
  %v531 = vadd.f32 %v530, %v395
  %v532 = vadd.f32 %v531, %v398
  %v533 = vadd.f32 %v532, %v401
  %v534 = vadd.f32 %v533, %v404
  %v535 = vadd.f32 %v534, %v407
  %v536 = vadd.f32 %v535, %v410
  %v537 = vadd.f32 %v536, %v413
  %v538 = vadd.f32 %v537, %v416
  %v539 = vadd.f32 %v538, %v419
  %v540 = vadd.f32 %v539, %v422
  %v541 = vadd.f32 %v540, %v425
  %v542 = vadd.f32 %v541, %v428
  %v543 = vadd.f32 %v542, %v431
  %v544 = vadd.f32 %v543, %v434
  %v545 = vadd.f32 %v544, %v437
  %v546 = vadd.f32 %v545, %v440
  %v547 = vadd.f32 %v546, %v443
  %v548 = vadd.f32 %v547, %v446
  %v549 = vadd.f32 %v548, %v449
  %v550 = vadd.f32 %v549, %v452
  %v551 = vadd.f32 %v550, %v455
  %v552 = vadd.f32 %v551, %v458
  %v553 = vadd.f32 %v552, %v461
  %v554 = vadd.f32 %v553, %v464
  %v555 = vadd.f32 %v554, %v467
  %v556 = vadd.f32 %v555, %v470
  %v557 = vadd.f32 %v556, %v473
  %v558 = vadd.f32 %v557, %v476
  %v559 = vadd.f32 %v558, %v479
  %v560 = vadd.f32 %v559, %v482
  %v561 = vadd.f32 %v560, %v485
  %v562 = vadd.f32 %v561, %v488
  %v563 = vadd.f32 %v562, %v491
  %v564 = vadd.f32 %v563, %v494
  %v565 = vadd.f32 %v564, %v497
  %v566 = vadd.f32 %v565, %v500
  %v567 = vadd.f32 %v566, %v503
  %v568 = vrot.slane %v567, 4
  %v569 = vadd.f32 %v567, %v568
  %v570 = vrot.slane %v569, 2
  %v571 = vadd.f32 %v569, %v570
  %v572 = vrot.slane %v571, 1
  %v573 = vadd.f32 %v571, %v572
  %v574 = vrcp.pop 512.0
  %v575 = vmul.f32 512.0, %v574
  %v576 = vsub.f32 1.0, %v575
  %v577 = vmul.f32 %v574, %v576
  %v578 = vadd.f32 %v574, %v577
  %vm579 = vweird.f32 %v574
  %v580 = vsel %vm579, %v574, %v578
  %v581 = vmul.f32 %v573, %v580
  %v582 = vsub.f32 %v314, %v581
  %v583 = vsub.f32 %v317, %v581
  %v584 = vsub.f32 %v320, %v581
  %v585 = vsub.f32 %v323, %v581
  %v586 = vsub.f32 %v326, %v581
  %v587 = vsub.f32 %v329, %v581
  %v588 = vsub.f32 %v332, %v581
  %v589 = vsub.f32 %v335, %v581
  %v590 = vsub.f32 %v338, %v581
  %v591 = vsub.f32 %v341, %v581
  %v592 = vsub.f32 %v344, %v581
  %v593 = vsub.f32 %v347, %v581
  %v594 = vsub.f32 %v350, %v581
  %v595 = vsub.f32 %v353, %v581
  %v596 = vsub.f32 %v356, %v581
  %v597 = vsub.f32 %v359, %v581
  %v598 = vsub.f32 %v362, %v581
  %v599 = vsub.f32 %v365, %v581
  %v600 = vsub.f32 %v368, %v581
  %v601 = vsub.f32 %v371, %v581
  %v602 = vsub.f32 %v374, %v581
  %v603 = vsub.f32 %v377, %v581
  %v604 = vsub.f32 %v380, %v581
  %v605 = vsub.f32 %v383, %v581
  %v606 = vsub.f32 %v386, %v581
  %v607 = vsub.f32 %v389, %v581
  %v608 = vsub.f32 %v392, %v581
  %v609 = vsub.f32 %v395, %v581
  %v610 = vsub.f32 %v398, %v581
  %v611 = vsub.f32 %v401, %v581
  %v612 = vsub.f32 %v404, %v581
  %v613 = vsub.f32 %v407, %v581
  %v614 = vsub.f32 %v410, %v581
  %v615 = vsub.f32 %v413, %v581
  %v616 = vsub.f32 %v416, %v581
  %v617 = vsub.f32 %v419, %v581
  %v618 = vsub.f32 %v422, %v581
  %v619 = vsub.f32 %v425, %v581
  %v620 = vsub.f32 %v428, %v581
  %v621 = vsub.f32 %v431, %v581
  %v622 = vsub.f32 %v434, %v581
  %v623 = vsub.f32 %v437, %v581
  %v624 = vsub.f32 %v440, %v581
  %v625 = vsub.f32 %v443, %v581
  %v626 = vsub.f32 %v446, %v581
  %v627 = vsub.f32 %v449, %v581
  %v628 = vsub.f32 %v452, %v581
  %v629 = vsub.f32 %v455, %v581
  %v630 = vsub.f32 %v458, %v581
  %v631 = vsub.f32 %v461, %v581
  %v632 = vsub.f32 %v464, %v581
  %v633 = vsub.f32 %v467, %v581
  %v634 = vsub.f32 %v470, %v581
  %v635 = vsub.f32 %v473, %v581
  %v636 = vsub.f32 %v476, %v581
  %v637 = vsub.f32 %v479, %v581
  %v638 = vsub.f32 %v482, %v581
  %v639 = vsub.f32 %v485, %v581
  %v640 = vsub.f32 %v488, %v581
  %v641 = vsub.f32 %v491, %v581
  %v642 = vsub.f32 %v494, %v581
  %v643 = vsub.f32 %v497, %v581
  %v644 = vsub.f32 %v500, %v581
  %v645 = vsub.f32 %v503, %v581
  %v646 = vmul.f32 %v582, %v582
  %v647 = vmul.f32 %v583, %v583
  %v648 = vmul.f32 %v584, %v584
  %v649 = vmul.f32 %v585, %v585
  %v650 = vmul.f32 %v586, %v586
  %v651 = vmul.f32 %v587, %v587
  %v652 = vmul.f32 %v588, %v588
  %v653 = vmul.f32 %v589, %v589
  %v654 = vmul.f32 %v590, %v590
  %v655 = vmul.f32 %v591, %v591
  %v656 = vmul.f32 %v592, %v592
  %v657 = vmul.f32 %v593, %v593
  %v658 = vmul.f32 %v594, %v594
  %v659 = vmul.f32 %v595, %v595
  %v660 = vmul.f32 %v596, %v596
  %v661 = vmul.f32 %v597, %v597
  %v662 = vmul.f32 %v598, %v598
  %v663 = vmul.f32 %v599, %v599
  %v664 = vmul.f32 %v600, %v600
  %v665 = vmul.f32 %v601, %v601
  %v666 = vmul.f32 %v602, %v602
  %v667 = vmul.f32 %v603, %v603
  %v668 = vmul.f32 %v604, %v604
  %v669 = vmul.f32 %v605, %v605
  %v670 = vmul.f32 %v606, %v606
  %v671 = vmul.f32 %v607, %v607
  %v672 = vmul.f32 %v608, %v608
  %v673 = vmul.f32 %v609, %v609
  %v674 = vmul.f32 %v610, %v610
  %v675 = vmul.f32 %v611, %v611
  %v676 = vmul.f32 %v612, %v612
  %v677 = vmul.f32 %v613, %v613
  %v678 = vmul.f32 %v614, %v614
  %v679 = vmul.f32 %v615, %v615
  %v680 = vmul.f32 %v616, %v616
  %v681 = vmul.f32 %v617, %v617
  %v682 = vmul.f32 %v618, %v618
  %v683 = vmul.f32 %v619, %v619
  %v684 = vmul.f32 %v620, %v620
  %v685 = vmul.f32 %v621, %v621
  %v686 = vmul.f32 %v622, %v622
  %v687 = vmul.f32 %v623, %v623
  %v688 = vmul.f32 %v624, %v624
  %v689 = vmul.f32 %v625, %v625
  %v690 = vmul.f32 %v626, %v626
  %v691 = vmul.f32 %v627, %v627
  %v692 = vmul.f32 %v628, %v628
  %v693 = vmul.f32 %v629, %v629
  %v694 = vmul.f32 %v630, %v630
  %v695 = vmul.f32 %v631, %v631
  %v696 = vmul.f32 %v632, %v632
  %v697 = vmul.f32 %v633, %v633
  %v698 = vmul.f32 %v634, %v634
  %v699 = vmul.f32 %v635, %v635
  %v700 = vmul.f32 %v636, %v636
  %v701 = vmul.f32 %v637, %v637
  %v702 = vmul.f32 %v638, %v638
  %v703 = vmul.f32 %v639, %v639
  %v704 = vmul.f32 %v640, %v640
  %v705 = vmul.f32 %v641, %v641
  %v706 = vmul.f32 %v642, %v642
  %v707 = vmul.f32 %v643, %v643
  %v708 = vmul.f32 %v644, %v644
  %v709 = vmul.f32 %v645, %v645
  %v710 = vadd.f32 %v646, %v647
  %v711 = vadd.f32 %v710, %v648
  %v712 = vadd.f32 %v711, %v649
  %v713 = vadd.f32 %v712, %v650
  %v714 = vadd.f32 %v713, %v651
  %v715 = vadd.f32 %v714, %v652
  %v716 = vadd.f32 %v715, %v653
  %v717 = vadd.f32 %v716, %v654
  %v718 = vadd.f32 %v717, %v655
  %v719 = vadd.f32 %v718, %v656
  %v720 = vadd.f32 %v719, %v657
  %v721 = vadd.f32 %v720, %v658
  %v722 = vadd.f32 %v721, %v659
  %v723 = vadd.f32 %v722, %v660
  %v724 = vadd.f32 %v723, %v661
  %v725 = vadd.f32 %v724, %v662
  %v726 = vadd.f32 %v725, %v663
  %v727 = vadd.f32 %v726, %v664
  %v728 = vadd.f32 %v727, %v665
  %v729 = vadd.f32 %v728, %v666
  %v730 = vadd.f32 %v729, %v667
  %v731 = vadd.f32 %v730, %v668
  %v732 = vadd.f32 %v731, %v669
  %v733 = vadd.f32 %v732, %v670
  %v734 = vadd.f32 %v733, %v671
  %v735 = vadd.f32 %v734, %v672
  %v736 = vadd.f32 %v735, %v673
  %v737 = vadd.f32 %v736, %v674
  %v738 = vadd.f32 %v737, %v675
  %v739 = vadd.f32 %v738, %v676
  %v740 = vadd.f32 %v739, %v677
  %v741 = vadd.f32 %v740, %v678
  %v742 = vadd.f32 %v741, %v679
  %v743 = vadd.f32 %v742, %v680
  %v744 = vadd.f32 %v743, %v681
  %v745 = vadd.f32 %v744, %v682
  %v746 = vadd.f32 %v745, %v683
  %v747 = vadd.f32 %v746, %v684
  %v748 = vadd.f32 %v747, %v685
  %v749 = vadd.f32 %v748, %v686
  %v750 = vadd.f32 %v749, %v687
  %v751 = vadd.f32 %v750, %v688
  %v752 = vadd.f32 %v751, %v689
  %v753 = vadd.f32 %v752, %v690
  %v754 = vadd.f32 %v753, %v691
  %v755 = vadd.f32 %v754, %v692
  %v756 = vadd.f32 %v755, %v693
  %v757 = vadd.f32 %v756, %v694
  %v758 = vadd.f32 %v757, %v695
  %v759 = vadd.f32 %v758, %v696
  %v760 = vadd.f32 %v759, %v697
  %v761 = vadd.f32 %v760, %v698
  %v762 = vadd.f32 %v761, %v699
  %v763 = vadd.f32 %v762, %v700
  %v764 = vadd.f32 %v763, %v701
  %v765 = vadd.f32 %v764, %v702
  %v766 = vadd.f32 %v765, %v703
  %v767 = vadd.f32 %v766, %v704
  %v768 = vadd.f32 %v767, %v705
  %v769 = vadd.f32 %v768, %v706
  %v770 = vadd.f32 %v769, %v707
  %v771 = vadd.f32 %v770, %v708
  %v772 = vadd.f32 %v771, %v709
  %v773 = vrot.slane %v772, 4
  %v774 = vadd.f32 %v772, %v773
  %v775 = vrot.slane %v774, 2
  %v776 = vadd.f32 %v774, %v775
  %v777 = vrot.slane %v776, 1
  %v778 = vadd.f32 %v776, %v777
  %v779 = vmul.f32 %v778, %v580
  %v780 = vadd.f32 %v779, 1e-05
  %v781 = vrsqrt.pop %v780
  %v782 = vmul.f32 %v781, %v780
  %v783 = vmul.f32 %v782, %v781
  %v784 = vmul.f32 0.5, %v783
  %v785 = vsub.f32 1.5, %v784
  %v786 = vmul.f32 %v781, %v785
  %vm787 = vweird.f32 %v780
  %vm788 = vweird.f32 %v781
  %vm789 = vmor %vm787, %vm788
  %v790 = vsel %vm789, %v781, %v786
  %v791 = vmul.f32 %v582, %v790
  %v792 = vmul.f32 %v583, %v790
  %v793 = vmul.f32 %v584, %v790
  %v794 = vmul.f32 %v585, %v790
  %v795 = vmul.f32 %v586, %v790
  %v796 = vmul.f32 %v587, %v790
  %v797 = vmul.f32 %v588, %v790
  %v798 = vmul.f32 %v589, %v790
  %v799 = vmul.f32 %v590, %v790
  %v800 = vmul.f32 %v591, %v790
  %v801 = vmul.f32 %v592, %v790
  %v802 = vmul.f32 %v593, %v790
  %v803 = vmul.f32 %v594, %v790
  %v804 = vmul.f32 %v595, %v790
  %v805 = vmul.f32 %v596, %v790
  %v806 = vmul.f32 %v597, %v790
  %v807 = vmul.f32 %v598, %v790
  %v808 = vmul.f32 %v599, %v790
  %v809 = vmul.f32 %v600, %v790
  %v810 = vmul.f32 %v601, %v790
  %v811 = vmul.f32 %v602, %v790
  %v812 = vmul.f32 %v603, %v790
  %v813 = vmul.f32 %v604, %v790
  %v814 = vmul.f32 %v605, %v790
  %v815 = vmul.f32 %v606, %v790
  %v816 = vmul.f32 %v607, %v790
  %v817 = vmul.f32 %v608, %v790
  %v818 = vmul.f32 %v609, %v790
  %v819 = vmul.f32 %v610, %v790
  %v820 = vmul.f32 %v611, %v790
  %v821 = vmul.f32 %v612, %v790
  %v822 = vmul.f32 %v613, %v790
  %v823 = vmul.f32 %v614, %v790
  %v824 = vmul.f32 %v615, %v790
  %v825 = vmul.f32 %v616, %v790
  %v826 = vmul.f32 %v617, %v790
  %v827 = vmul.f32 %v618, %v790
  %v828 = vmul.f32 %v619, %v790
  %v829 = vmul.f32 %v620, %v790
  %v830 = vmul.f32 %v621, %v790
  %v831 = vmul.f32 %v622, %v790
  %v832 = vmul.f32 %v623, %v790
  %v833 = vmul.f32 %v624, %v790
  %v834 = vmul.f32 %v625, %v790
  %v835 = vmul.f32 %v626, %v790
  %v836 = vmul.f32 %v627, %v790
  %v837 = vmul.f32 %v628, %v790
  %v838 = vmul.f32 %v629, %v790
  %v839 = vmul.f32 %v630, %v790
  %v840 = vmul.f32 %v631, %v790
  %v841 = vmul.f32 %v632, %v790
  %v842 = vmul.f32 %v633, %v790
  %v843 = vmul.f32 %v634, %v790
  %v844 = vmul.f32 %v635, %v790
  %v845 = vmul.f32 %v636, %v790
  %v846 = vmul.f32 %v637, %v790
  %v847 = vmul.f32 %v638, %v790
  %v848 = vmul.f32 %v639, %v790
  %v849 = vmul.f32 %v640, %v790
  %v850 = vmul.f32 %v641, %v790
  %v851 = vmul.f32 %v642, %v790
  %v852 = vmul.f32 %v643, %v790
  %v853 = vmul.f32 %v644, %v790
  %v854 = vmul.f32 %v645, %v790
  %v855 = vld [vmem:[%s3] sm:$0x1]
  %v857 = vperm.slane %v855, 0
  %v859 = vmul.f32 %v791, %v857
  %v860 = vmul.f32 %v792, %v857
  %v861 = vmul.f32 %v793, %v857
  %v862 = vmul.f32 %v794, %v857
  %v863 = vmul.f32 %v795, %v857
  %v864 = vmul.f32 %v796, %v857
  %v865 = vmul.f32 %v797, %v857
  %v866 = vmul.f32 %v798, %v857
  %v867 = vmul.f32 %v799, %v857
  %v868 = vmul.f32 %v800, %v857
  %v869 = vmul.f32 %v801, %v857
  %v870 = vmul.f32 %v802, %v857
  %v871 = vmul.f32 %v803, %v857
  %v872 = vmul.f32 %v804, %v857
  %v873 = vmul.f32 %v805, %v857
  %v874 = vmul.f32 %v806, %v857
  %v875 = vmul.f32 %v807, %v857
  %v876 = vmul.f32 %v808, %v857
  %v877 = vmul.f32 %v809, %v857
  %v878 = vmul.f32 %v810, %v857
  %v879 = vmul.f32 %v811, %v857
  %v880 = vmul.f32 %v812, %v857
  %v881 = vmul.f32 %v813, %v857
  %v882 = vmul.f32 %v814, %v857
  %v883 = vmul.f32 %v815, %v857
  %v884 = vmul.f32 %v816, %v857
  %v885 = vmul.f32 %v817, %v857
  %v886 = vmul.f32 %v818, %v857
  %v887 = vmul.f32 %v819, %v857
  %v888 = vmul.f32 %v820, %v857
  %v889 = vmul.f32 %v821, %v857
  %v890 = vmul.f32 %v822, %v857
  %v891 = vmul.f32 %v823, %v857
  %v892 = vmul.f32 %v824, %v857
  %v893 = vmul.f32 %v825, %v857
  %v894 = vmul.f32 %v826, %v857
  %v895 = vmul.f32 %v827, %v857
  %v896 = vmul.f32 %v828, %v857
  %v897 = vmul.f32 %v829, %v857
  %v898 = vmul.f32 %v830, %v857
  %v899 = vmul.f32 %v831, %v857
  %v900 = vmul.f32 %v832, %v857
  %v901 = vmul.f32 %v833, %v857
  %v902 = vmul.f32 %v834, %v857
  %v903 = vmul.f32 %v835, %v857
  %v904 = vmul.f32 %v836, %v857
  %v905 = vmul.f32 %v837, %v857
  %v906 = vmul.f32 %v838, %v857
  %v907 = vmul.f32 %v839, %v857
  %v908 = vmul.f32 %v840, %v857
  %v909 = vmul.f32 %v841, %v857
  %v910 = vmul.f32 %v842, %v857
  %v911 = vmul.f32 %v843, %v857
  %v912 = vmul.f32 %v844, %v857
  %v913 = vmul.f32 %v845, %v857
  %v914 = vmul.f32 %v846, %v857
  %v915 = vmul.f32 %v847, %v857
  %v916 = vmul.f32 %v848, %v857
  %v917 = vmul.f32 %v849, %v857
  %v918 = vmul.f32 %v850, %v857
  %v919 = vmul.f32 %v851, %v857
  %v920 = vmul.f32 %v852, %v857
  %v921 = vmul.f32 %v853, %v857
  %v922 = vmul.f32 %v854, %v857
  %v923 = vld [vmem:[%s4] sm:$0x1]
  %v925 = vperm.slane %v923, 0
  %v927 = vadd.f32 %v859, %v925
  %v928 = vadd.f32 %v860, %v925
  %v929 = vadd.f32 %v861, %v925
  %v930 = vadd.f32 %v862, %v925
  %v931 = vadd.f32 %v863, %v925
  %v932 = vadd.f32 %v864, %v925
  %v933 = vadd.f32 %v865, %v925
  %v934 = vadd.f32 %v866, %v925
  %v935 = vadd.f32 %v867, %v925
  %v936 = vadd.f32 %v868, %v925
  %v937 = vadd.f32 %v869, %v925
  %v938 = vadd.f32 %v870, %v925
  %v939 = vadd.f32 %v871, %v925
  %v940 = vadd.f32 %v872, %v925
  %v941 = vadd.f32 %v873, %v925
  %v942 = vadd.f32 %v874, %v925
  %v943 = vadd.f32 %v875, %v925
  %v944 = vadd.f32 %v876, %v925
  %v945 = vadd.f32 %v877, %v925
  %v946 = vadd.f32 %v878, %v925
  %v947 = vadd.f32 %v879, %v925
  %v948 = vadd.f32 %v880, %v925
  %v949 = vadd.f32 %v881, %v925
  %v950 = vadd.f32 %v882, %v925
  %v951 = vadd.f32 %v883, %v925
  %v952 = vadd.f32 %v884, %v925
  %v953 = vadd.f32 %v885, %v925
  %v954 = vadd.f32 %v886, %v925
  %v955 = vadd.f32 %v887, %v925
  %v956 = vadd.f32 %v888, %v925
  %v957 = vadd.f32 %v889, %v925
  %v958 = vadd.f32 %v890, %v925
  %v959 = vadd.f32 %v891, %v925
  %v960 = vadd.f32 %v892, %v925
  %v961 = vadd.f32 %v893, %v925
  %v962 = vadd.f32 %v894, %v925
  %v963 = vadd.f32 %v895, %v925
  %v964 = vadd.f32 %v896, %v925
  %v965 = vadd.f32 %v897, %v925
  %v966 = vadd.f32 %v898, %v925
  %v967 = vadd.f32 %v899, %v925
  %v968 = vadd.f32 %v900, %v925
  %v969 = vadd.f32 %v901, %v925
  %v970 = vadd.f32 %v902, %v925
  %v971 = vadd.f32 %v903, %v925
  %v972 = vadd.f32 %v904, %v925
  %v973 = vadd.f32 %v905, %v925
  %v974 = vadd.f32 %v906, %v925
  %v975 = vadd.f32 %v907, %v925
  %v976 = vadd.f32 %v908, %v925
  %v977 = vadd.f32 %v909, %v925
  %v978 = vadd.f32 %v910, %v925
  %v979 = vadd.f32 %v911, %v925
  %v980 = vadd.f32 %v912, %v925
  %v981 = vadd.f32 %v913, %v925
  %v982 = vadd.f32 %v914, %v925
  %v983 = vadd.f32 %v915, %v925
  %v984 = vadd.f32 %v916, %v925
  %v985 = vadd.f32 %v917, %v925
  %v986 = vadd.f32 %v918, %v925
  %v987 = vadd.f32 %v919, %v925
  %v988 = vadd.f32 %v920, %v925
  %v989 = vadd.f32 %v921, %v925
  %v990 = vadd.f32 %v922, %v925
  %v991 = vmax.f32 %v927, 0.0
  %v992 = vmax.f32 %v928, 0.0
  %v993 = vmax.f32 %v929, 0.0
  %v994 = vmax.f32 %v930, 0.0
  %v995 = vmax.f32 %v931, 0.0
  %v996 = vmax.f32 %v932, 0.0
  %v997 = vmax.f32 %v933, 0.0
  %v998 = vmax.f32 %v934, 0.0
  %v999 = vmax.f32 %v935, 0.0
  %v1000 = vmax.f32 %v936, 0.0
  %v1001 = vmax.f32 %v937, 0.0
  %v1002 = vmax.f32 %v938, 0.0
  %v1003 = vmax.f32 %v939, 0.0
  %v1004 = vmax.f32 %v940, 0.0
  %v1005 = vmax.f32 %v941, 0.0
  %v1006 = vmax.f32 %v942, 0.0
  %v1007 = vmax.f32 %v943, 0.0
  %v1008 = vmax.f32 %v944, 0.0
  %v1009 = vmax.f32 %v945, 0.0
  %v1010 = vmax.f32 %v946, 0.0
  %v1011 = vmax.f32 %v947, 0.0
  %v1012 = vmax.f32 %v948, 0.0
  %v1013 = vmax.f32 %v949, 0.0
  %v1014 = vmax.f32 %v950, 0.0
  %v1015 = vmax.f32 %v951, 0.0
  %v1016 = vmax.f32 %v952, 0.0
  %v1017 = vmax.f32 %v953, 0.0
  %v1018 = vmax.f32 %v954, 0.0
  %v1019 = vmax.f32 %v955, 0.0
  %v1020 = vmax.f32 %v956, 0.0
  %v1021 = vmax.f32 %v957, 0.0
  %v1022 = vmax.f32 %v958, 0.0
  %v1023 = vmax.f32 %v959, 0.0
  %v1024 = vmax.f32 %v960, 0.0
  %v1025 = vmax.f32 %v961, 0.0
  %v1026 = vmax.f32 %v962, 0.0
  %v1027 = vmax.f32 %v963, 0.0
  %v1028 = vmax.f32 %v964, 0.0
  %v1029 = vmax.f32 %v965, 0.0
  %v1030 = vmax.f32 %v966, 0.0
  %v1031 = vmax.f32 %v967, 0.0
  %v1032 = vmax.f32 %v968, 0.0
  %v1033 = vmax.f32 %v969, 0.0
  %v1034 = vmax.f32 %v970, 0.0
  %v1035 = vmax.f32 %v971, 0.0
  %v1036 = vmax.f32 %v972, 0.0
  %v1037 = vmax.f32 %v973, 0.0
  %v1038 = vmax.f32 %v974, 0.0
  %v1039 = vmax.f32 %v975, 0.0
  %v1040 = vmax.f32 %v976, 0.0
  %v1041 = vmax.f32 %v977, 0.0
  %v1042 = vmax.f32 %v978, 0.0
  %v1043 = vmax.f32 %v979, 0.0
  %v1044 = vmax.f32 %v980, 0.0
  %v1045 = vmax.f32 %v981, 0.0
  %v1046 = vmax.f32 %v982, 0.0
  %v1047 = vmax.f32 %v983, 0.0
  %v1048 = vmax.f32 %v984, 0.0
  %v1049 = vmax.f32 %v985, 0.0
  %v1050 = vmax.f32 %v986, 0.0
  %v1051 = vmax.f32 %v987, 0.0
  %v1052 = vmax.f32 %v988, 0.0
  %v1053 = vmax.f32 %v989, 0.0
  %v1054 = vmax.f32 %v990, 0.0
  %v1055 = vld [vmem:[%s5] sm:$0x3]
  %v1056 = vld [vmem:[%s6] sm:$0xff]
  %v1057 = vld [vmem:[%s6 + $0x8] sm:$0xff]
  %v1058 = vld [vmem:[%s6 + $0x10] sm:$0xff]
  %v1059 = vld [vmem:[%s6 + $0x18] sm:$0xff]
  %v1060 = vld [vmem:[%s7] sm:$0x1]
  %v1062 = vperm.slane %v1060, 0
  %vm1064 = vcmask 261120
  %v1066 = vsel %vm1064, %v1055, 0
  %1068 = vmatpush.msra.mxu0 0.0
  %1069 = vmatpush.msra.mxu0 0.0
  %1070 = vmatpush.msra.mxu0 0.0
  %1071 = vmatpush.msra.mxu0 0.0
  %1072 = vmatpush.msra.mxu0 0.0
  %1073 = vmatpush.msra.mxu0 0.0
  %1074 = vmatpush.msra.mxu0 0.0
  %1075 = vmatpush.msra.mxu0 0.0
  %1076 = vmatpush.msra.mxu0 0.0
  %1077 = vmatpush.msra.mxu0 0.0
  %1078 = vmatpush.msra.mxu0 0.0
  %1079 = vmatpush.msra.mxu0 0.0
  %1080 = vmatpush.msra.mxu0 %v1059
  %1081 = vmatpush.msra.mxu0 %v1058
  %1082 = vmatpush.msra.mxu0 %v1057
  %1083 = vmatpush.msra.mxu0 %v1056
  %1084 = vmatmul.f32.gmra.mxu0 %v1066
  %v1085 = vpop.f32.mrf.mxu0
  %v1086 = vadd.f32 %v1062, %v1085
  %1087 = vdwg.mxu0
  %v1089 = vrot.slane %v1086, 1
  %v1090 = vperm.slane %v1086, 0
  %v1091 = vperm.slane %v1089, 0
  %v1094 = vadd.f32 %v991, %v1090
  %v1095 = vadd.f32 %v992, %v1090
  %v1096 = vadd.f32 %v993, %v1090
  %v1097 = vadd.f32 %v994, %v1090
  %v1098 = vadd.f32 %v995, %v1090
  %v1099 = vadd.f32 %v996, %v1090
  %v1100 = vadd.f32 %v997, %v1090
  %v1101 = vadd.f32 %v998, %v1090
  %v1102 = vadd.f32 %v999, %v1090
  %v1103 = vadd.f32 %v1000, %v1090
  %v1104 = vadd.f32 %v1001, %v1090
  %v1105 = vadd.f32 %v1002, %v1090
  %v1106 = vadd.f32 %v1003, %v1090
  %v1107 = vadd.f32 %v1004, %v1090
  %v1108 = vadd.f32 %v1005, %v1090
  %v1109 = vadd.f32 %v1006, %v1090
  %v1110 = vadd.f32 %v1007, %v1090
  %v1111 = vadd.f32 %v1008, %v1090
  %v1112 = vadd.f32 %v1009, %v1090
  %v1113 = vadd.f32 %v1010, %v1090
  %v1114 = vadd.f32 %v1011, %v1090
  %v1115 = vadd.f32 %v1012, %v1090
  %v1116 = vadd.f32 %v1013, %v1090
  %v1117 = vadd.f32 %v1014, %v1090
  %v1118 = vadd.f32 %v1015, %v1090
  %v1119 = vadd.f32 %v1016, %v1090
  %v1120 = vadd.f32 %v1017, %v1090
  %v1121 = vadd.f32 %v1018, %v1090
  %v1122 = vadd.f32 %v1019, %v1090
  %v1123 = vadd.f32 %v1020, %v1090
  %v1124 = vadd.f32 %v1021, %v1090
  %v1125 = vadd.f32 %v1022, %v1090
  %v1126 = vadd.f32 %v1023, %v1091
  %v1127 = vadd.f32 %v1024, %v1091
  %v1128 = vadd.f32 %v1025, %v1091
  %v1129 = vadd.f32 %v1026, %v1091
  %v1130 = vadd.f32 %v1027, %v1091
  %v1131 = vadd.f32 %v1028, %v1091
  %v1132 = vadd.f32 %v1029, %v1091
  %v1133 = vadd.f32 %v1030, %v1091
  %v1134 = vadd.f32 %v1031, %v1091
  %v1135 = vadd.f32 %v1032, %v1091
  %v1136 = vadd.f32 %v1033, %v1091
  %v1137 = vadd.f32 %v1034, %v1091
  %v1138 = vadd.f32 %v1035, %v1091
  %v1139 = vadd.f32 %v1036, %v1091
  %v1140 = vadd.f32 %v1037, %v1091
  %v1141 = vadd.f32 %v1038, %v1091
  %v1142 = vadd.f32 %v1039, %v1091
  %v1143 = vadd.f32 %v1040, %v1091
  %v1144 = vadd.f32 %v1041, %v1091
  %v1145 = vadd.f32 %v1042, %v1091
  %v1146 = vadd.f32 %v1043, %v1091
  %v1147 = vadd.f32 %v1044, %v1091
  %v1148 = vadd.f32 %v1045, %v1091
  %v1149 = vadd.f32 %v1046, %v1091
  %v1150 = vadd.f32 %v1047, %v1091
  %v1151 = vadd.f32 %v1048, %v1091
  %v1152 = vadd.f32 %v1049, %v1091
  %v1153 = vadd.f32 %v1050, %v1091
  %v1154 = vadd.f32 %v1051, %v1091
  %v1155 = vadd.f32 %v1052, %v1091
  %v1156 = vadd.f32 %v1053, %v1091
  %v1157 = vadd.f32 %v1054, %v1091
  %1158 = vst [vmem:[%s8] sm:$0xff] %v1094
  %1159 = vst [vmem:[%s8 + $0x8] sm:$0xff] %v1095
  %1160 = vst [vmem:[%s8 + $0x10] sm:$0xff] %v1096
  %1161 = vst [vmem:[%s8 + $0x18] sm:$0xff] %v1097
  %1162 = vst [vmem:[%s8 + $0x20] sm:$0xff] %v1098
  %1163 = vst [vmem:[%s8 + $0x28] sm:$0xff] %v1099
  %1164 = vst [vmem:[%s8 + $0x30] sm:$0xff] %v1100
  %1165 = vst [vmem:[%s8 + $0x38] sm:$0xff] %v1101
  %1166 = vst [vmem:[%s8 + $0x40] sm:$0xff] %v1102
  %1167 = vst [vmem:[%s8 + $0x48] sm:$0xff] %v1103
  %1168 = vst [vmem:[%s8 + $0x50] sm:$0xff] %v1104
  %1169 = vst [vmem:[%s8 + $0x58] sm:$0xff] %v1105
  %1170 = vst [vmem:[%s8 + $0x60] sm:$0xff] %v1106
  %1171 = vst [vmem:[%s8 + $0x68] sm:$0xff] %v1107
  %1172 = vst [vmem:[%s8 + $0x70] sm:$0xff] %v1108
  %1173 = vst [vmem:[%s8 + $0x78] sm:$0xff] %v1109
  %1174 = vst [vmem:[%s8 + $0x80] sm:$0xff] %v1110
  %1175 = vst [vmem:[%s8 + $0x88] sm:$0xff] %v1111
  %1176 = vst [vmem:[%s8 + $0x90] sm:$0xff] %v1112
  %1177 = vst [vmem:[%s8 + $0x98] sm:$0xff] %v1113
  %1178 = vst [vmem:[%s8 + $0xa0] sm:$0xff] %v1114
  %1179 = vst [vmem:[%s8 + $0xa8] sm:$0xff] %v1115
  %1180 = vst [vmem:[%s8 + $0xb0] sm:$0xff] %v1116
  %1181 = vst [vmem:[%s8 + $0xb8] sm:$0xff] %v1117
  %1182 = vst [vmem:[%s8 + $0xc0] sm:$0xff] %v1118
  %1183 = vst [vmem:[%s8 + $0xc8] sm:$0xff] %v1119
  %1184 = vst [vmem:[%s8 + $0xd0] sm:$0xff] %v1120
  %1185 = vst [vmem:[%s8 + $0xd8] sm:$0xff] %v1121
  %1186 = vst [vmem:[%s8 + $0xe0] sm:$0xff] %v1122
  %1187 = vst [vmem:[%s8 + $0xe8] sm:$0xff] %v1123
  %1188 = vst [vmem:[%s8 + $0xf0] sm:$0xff] %v1124
  %1189 = vst [vmem:[%s8 + $0xf8] sm:$0xff] %v1125
  %1190 = vst [vmem:[%s8 + $0x100] sm:$0xff] %v1126
  %1191 = vst [vmem:[%s8 + $0x108] sm:$0xff] %v1127
  %1192 = vst [vmem:[%s8 + $0x110] sm:$0xff] %v1128
  %1193 = vst [vmem:[%s8 + $0x118] sm:$0xff] %v1129
  %1194 = vst [vmem:[%s8 + $0x120] sm:$0xff] %v1130
  %1195 = vst [vmem:[%s8 + $0x128] sm:$0xff] %v1131
  %1196 = vst [vmem:[%s8 + $0x130] sm:$0xff] %v1132
  %1197 = vst [vmem:[%s8 + $0x138] sm:$0xff] %v1133
  %1198 = vst [vmem:[%s8 + $0x140] sm:$0xff] %v1134
  %1199 = vst [vmem:[%s8 + $0x148] sm:$0xff] %v1135
  %1200 = vst [vmem:[%s8 + $0x150] sm:$0xff] %v1136
  %1201 = vst [vmem:[%s8 + $0x158] sm:$0xff] %v1137
  %1202 = vst [vmem:[%s8 + $0x160] sm:$0xff] %v1138
  %1203 = vst [vmem:[%s8 + $0x168] sm:$0xff] %v1139
  %1204 = vst [vmem:[%s8 + $0x170] sm:$0xff] %v1140
  %1205 = vst [vmem:[%s8 + $0x178] sm:$0xff] %v1141
  %1206 = vst [vmem:[%s8 + $0x180] sm:$0xff] %v1142
  %1207 = vst [vmem:[%s8 + $0x188] sm:$0xff] %v1143
  %1208 = vst [vmem:[%s8 + $0x190] sm:$0xff] %v1144
  %1209 = vst [vmem:[%s8 + $0x198] sm:$0xff] %v1145
  %1210 = vst [vmem:[%s8 + $0x1a0] sm:$0xff] %v1146
  %1211 = vst [vmem:[%s8 + $0x1a8] sm:$0xff] %v1147
  %1212 = vst [vmem:[%s8 + $0x1b0] sm:$0xff] %v1148
  %1213 = vst [vmem:[%s8 + $0x1b8] sm:$0xff] %v1149
  %1214 = vst [vmem:[%s8 + $0x1c0] sm:$0xff] %v1150
  %1215 = vst [vmem:[%s8 + $0x1c8] sm:$0xff] %v1151
  %1216 = vst [vmem:[%s8 + $0x1d0] sm:$0xff] %v1152
  %1217 = vst [vmem:[%s8 + $0x1d8] sm:$0xff] %v1153
  %1218 = vst [vmem:[%s8 + $0x1e0] sm:$0xff] %v1154
  %1219 = vst [vmem:[%s8 + $0x1e8] sm:$0xff] %v1155
  %1220 = vst [vmem:[%s8 + $0x1f0] sm:$0xff] %v1156
  %1221 = vst [vmem:[%s8 + $0x1f8] sm:$0xff] %v1157
  // Predicated region
  $region34: #{noisy_classifier_forward.4} parent=0 // pred_check
    _
  $region35: #{noisy_classifier_forward.4} parent=0 // pred_check_branch
    %1223 = sbr.rel (0) target = $region37
  $region36: #{noisy_classifier_forward.4} parent=0 // pred_region
    _
  $region37: #{noisy_classifier_forward.4} parent=0 // pred_fallthru
    _
  // Predicated region
  $region38: #{noisy_classifier_forward.4} parent=0 // pred_check
    _
  $region39: #{noisy_classifier_forward.4} parent=0 // pred_check_branch
    %1225 = sbr.rel (0) target = $region41
  $region40: #{noisy_classifier_forward.4} parent=0 // pred_region
    _
  $region41: #{noisy_classifier_forward.4} parent=0 // pred_fallthru
    _

// kernel: noisy_classifier_forward.5
$region0: #{noisy_classifier_forward.5}
  #allocation0 [shape = 'u32[]', space=smem, size = 0x4, offset = 0x4, fixed_abs, tag = 'smem constant byte address 0x4 - core index']
  #allocation1 [shape = 'u32[72,128]{1,0:T(1,128)}', space=vmem, size = 0x9000, scoped, tag = 'internal scratch']
  %s0 = inlined_call_operand.vmem [shape: f32[128,1152], index: 0, kind: input, shape index: {}]
  %s1 = inlined_call_operand.vmem [shape: f32[1152,128], index: 1, kind: input, shape index: {}]
  %s2 = inlined_call_operand.vmem [shape: f32[1,128], index: 2, kind: input, shape index: {}]
  %s3 = inlined_call_operand.vmem [shape: f32[1,128], index: 3, kind: input, shape index: {}]
  %s4 = inlined_call_operand.vmem [shape: f32[1,128], index: 4, kind: input, shape index: {}]
  %s5 = inlined_call_operand.vmem [shape: f32[2,32], index: 5, kind: input, shape index: {}]
  %s6 = inlined_call_operand.vmem [shape: f32[32,128], index: 6, kind: input, shape index: {}]
  %s7 = inlined_call_operand.vmem [shape: f32[1,128], index: 7, kind: input, shape index: {}]
  %s8 = inlined_call_operand.vmem [shape: f32[2,64,128], index: 8, kind: output, shape index: {}]
  %s9 = sld [smem:[#allocation0]]
  $region42: #{noisy_classifier_forward.5} parent=0
    _
  %s11 = ssub.s32 1, %s9
  %s12 = scalar_select 0, %s11, %s9
  // Predicated region
  $region2: #{noisy_classifier_forward.5} parent=0 // pred_check
    _
  $region3: #{noisy_classifier_forward.5} parent=0 // pred_check_branch
    %14 = sbr.rel (0) target = $region5
  $region4: #{noisy_classifier_forward.5} parent=0 // pred_region
    _
  $region5: #{noisy_classifier_forward.5} parent=0 // pred_fallthru
    _
  // Predicated region
  $region6: #{noisy_classifier_forward.5} parent=0 // pred_check
    _
  $region7: #{noisy_classifier_forward.5} parent=0 // pred_check_branch
    %16 = sbr.rel (0) target = $region9
  $region8: #{noisy_classifier_forward.5} parent=0 // pred_region
    _
  $region9: #{noisy_classifier_forward.5} parent=0 // pred_fallthru
    _
  // Predicated region
  $region10: #{noisy_classifier_forward.5} parent=0 // pred_check
    _
  $region11: #{noisy_classifier_forward.5} parent=0 // pred_check_branch
    %18 = sbr.rel (0) target = $region13
  $region12: #{noisy_classifier_forward.5} parent=0 // pred_region
    _
  $region13: #{noisy_classifier_forward.5} parent=0 // pred_fallthru
    _
  // Predicated region
  $region14: #{noisy_classifier_forward.5} parent=0 // pred_check
    _
  $region15: #{noisy_classifier_forward.5} parent=0 // pred_check_branch
    %20 = sbr.rel (0) target = $region17
  $region16: #{noisy_classifier_forward.5} parent=0 // pred_region
    _
  $region17: #{noisy_classifier_forward.5} parent=0 // pred_fallthru
    _
  // Predicated region
  $region18: #{noisy_classifier_forward.5} parent=0 // pred_check
    _
  $region19: #{noisy_classifier_forward.5} parent=0 // pred_check_branch
    %22 = sbr.rel (0) target = $region21
  $region20: #{noisy_classifier_forward.5} parent=0 // pred_region
    _
  $region21: #{noisy_classifier_forward.5} parent=0 // pred_fallthru
    _
  // Predicated region
  $region22: #{noisy_classifier_forward.5} parent=0 // pred_check
    _
  $region23: #{noisy_classifier_forward.5} parent=0 // pred_check_branch
    %24 = sbr.rel (0) target = $region25
  $region24: #{noisy_classifier_forward.5} parent=0 // pred_region
    _
  $region25: #{noisy_classifier_forward.5} parent=0 // pred_fallthru
    _
  // Predicated region
  $region26: #{noisy_classifier_forward.5} parent=0 // pred_check
    _
  $region27: #{noisy_classifier_forward.5} parent=0 // pred_check_branch
    %26 = sbr.rel (0) target = $region29
  $region28: #{noisy_classifier_forward.5} parent=0 // pred_region
    _
  $region29: #{noisy_classifier_forward.5} parent=0 // pred_fallthru
    _
  // Predicated region
  $region30: #{noisy_classifier_forward.5} parent=0 // pred_check
    _
  $region31: #{noisy_classifier_forward.5} parent=0 // pred_check_branch
    %28 = sbr.rel (0) target = $region33
  $region32: #{noisy_classifier_forward.5} parent=0 // pred_region
    _
  $region33: #{noisy_classifier_forward.5} parent=0 // pred_fallthru
    _
  %v29 = vld [vmem:[%s0] sm:$0xff]
  %v30 = vld [vmem:[%s0 + $0x8] sm:$0xff]
  %v31 = vld [vmem:[%s0 + $0x10] sm:$0xff]
  %v32 = vld [vmem:[%s0 + $0x18] sm:$0xff]
  %v33 = vld [vmem:[%s0 + $0x20] sm:$0xff]
  %v34 = vld [vmem:[%s0 + $0x28] sm:$0xff]
  %v35 = vld [vmem:[%s0 + $0x30] sm:$0xff]
  %v36 = vld [vmem:[%s0 + $0x38] sm:$0xff]
  %v37 = vld [vmem:[%s0 + $0x40] sm:$0xff]
  %v38 = vld [vmem:[%s0 + $0x48] sm:$0xff]
  %v39 = vld [vmem:[%s0 + $0x50] sm:$0xff]
  %v40 = vld [vmem:[%s0 + $0x58] sm:$0xff]
  %v41 = vld [vmem:[%s0 + $0x60] sm:$0xff]
  %v42 = vld [vmem:[%s0 + $0x68] sm:$0xff]
  %v43 = vld [vmem:[%s0 + $0x70] sm:$0xff]
  %v44 = vld [vmem:[%s0 + $0x78] sm:$0xff]
  %v45 = vld [vmem:[%s0 + $0x80] sm:$0xff]
  %v46 = vld [vmem:[%s0 + $0x88] sm:$0xff]
  %v47 = vld [vmem:[%s0 + $0x90] sm:$0xff]
  %v48 = vld [vmem:[%s0 + $0x98] sm:$0xff]
  %v49 = vld [vmem:[%s0 + $0xa0] sm:$0xff]
  %v50 = vld [vmem:[%s0 + $0xa8] sm:$0xff]
  %v51 = vld [vmem:[%s0 + $0xb0] sm:$0xff]
  %v52 = vld [vmem:[%s0 + $0xb8] sm:$0xff]
  %v53 = vld [vmem:[%s0 + $0xc0] sm:$0xff]
  %v54 = vld [vmem:[%s0 + $0xc8] sm:$0xff]
  %v55 = vld [vmem:[%s0 + $0xd0] sm:$0xff]
  %v56 = vld [vmem:[%s0 + $0xd8] sm:$0xff]
  %v57 = vld [vmem:[%s0 + $0xe0] sm:$0xff]
  %v58 = vld [vmem:[%s0 + $0xe8] sm:$0xff]
  %v59 = vld [vmem:[%s0 + $0xf0] sm:$0xff]
  %v60 = vld [vmem:[%s0 + $0xf8] sm:$0xff]
  %v61 = vld [vmem:[%s0 + $0x100] sm:$0xff]
  %v62 = vld [vmem:[%s0 + $0x108] sm:$0xff]
  %v63 = vld [vmem:[%s0 + $0x110] sm:$0xff]
  %v64 = vld [vmem:[%s0 + $0x118] sm:$0xff]
  %v65 = vld [vmem:[%s0 + $0x120] sm:$0xff]
  %v66 = vld [vmem:[%s0 + $0x128] sm:$0xff]
  %v67 = vld [vmem:[%s0 + $0x130] sm:$0xff]
  %v68 = vld [vmem:[%s0 + $0x138] sm:$0xff]
  %v69 = vld [vmem:[%s0 + $0x140] sm:$0xff]
  %v70 = vld [vmem:[%s0 + $0x148] sm:$0xff]
  %v71 = vld [vmem:[%s0 + $0x150] sm:$0xff]
  %v72 = vld [vmem:[%s0 + $0x158] sm:$0xff]
  %v73 = vld [vmem:[%s0 + $0x160] sm:$0xff]
  %v74 = vld [vmem:[%s0 + $0x168] sm:$0xff]
  %v75 = vld [vmem:[%s0 + $0x170] sm:$0xff]
  %v76 = vld [vmem:[%s0 + $0x178] sm:$0xff]
  %v77 = vld [vmem:[%s0 + $0x180] sm:$0xff]
  %v78 = vld [vmem:[%s0 + $0x188] sm:$0xff]
  %v79 = vld [vmem:[%s0 + $0x190] sm:$0xff]
  %v80 = vld [vmem:[%s0 + $0x198] sm:$0xff]
  %v81 = vld [vmem:[%s0 + $0x1a0] sm:$0xff]
  %v82 = vld [vmem:[%s0 + $0x1a8] sm:$0xff]
  %v83 = vld [vmem:[%s0 + $0x1b0] sm:$0xff]
  %v84 = vld [vmem:[%s0 + $0x1b8] sm:$0xff]
  %v85 = vld [vmem:[%s0 + $0x1c0] sm:$0xff]
  %v86 = vld [vmem:[%s0 + $0x1c8] sm:$0xff]
  %v87 = vld [vmem:[%s0 + $0x1d0] sm:$0xff]
  %v88 = vld [vmem:[%s0 + $0x1d8] sm:$0xff]
  %v89 = vld [vmem:[%s0 + $0x1e0] sm:$0xff]
  %v90 = vld [vmem:[%s0 + $0x1e8] sm:$0xff]
  %v91 = vld [vmem:[%s0 + $0x1f0] sm:$0xff]
  %v92 = vld [vmem:[%s0 + $0x1f8] sm:$0xff]
  %v93 = vld [vmem:[%s0 + $0x200] sm:$0xff]
  %v94 = vld [vmem:[%s0 + $0x208] sm:$0xff]
  %v95 = vld [vmem:[%s0 + $0x210] sm:$0xff]
  %v96 = vld [vmem:[%s0 + $0x218] sm:$0xff]
  %v97 = vld [vmem:[%s0 + $0x220] sm:$0xff]
  %v98 = vld [vmem:[%s0 + $0x228] sm:$0xff]
  %v99 = vld [vmem:[%s0 + $0x230] sm:$0xff]
  %v100 = vld [vmem:[%s0 + $0x238] sm:$0xff]
  %v101 = vld [vmem:[%s0 + $0x240] sm:$0xff]
  %v102 = vld [vmem:[%s0 + $0x248] sm:$0xff]
  %v103 = vld [vmem:[%s0 + $0x250] sm:$0xff]
  %v104 = vld [vmem:[%s0 + $0x258] sm:$0xff]
  %v105 = vld [vmem:[%s0 + $0x260] sm:$0xff]
  %v106 = vld [vmem:[%s0 + $0x268] sm:$0xff]
  %v107 = vld [vmem:[%s0 + $0x270] sm:$0xff]
  %v108 = vld [vmem:[%s0 + $0x278] sm:$0xff]
  %v109 = vld [vmem:[%s0 + $0x280] sm:$0xff]
  %v110 = vld [vmem:[%s0 + $0x288] sm:$0xff]
  %v111 = vld [vmem:[%s0 + $0x290] sm:$0xff]
  %v112 = vld [vmem:[%s0 + $0x298] sm:$0xff]
  %v113 = vld [vmem:[%s0 + $0x2a0] sm:$0xff]
  %v114 = vld [vmem:[%s0 + $0x2a8] sm:$0xff]
  %v115 = vld [vmem:[%s0 + $0x2b0] sm:$0xff]
  %v116 = vld [vmem:[%s0 + $0x2b8] sm:$0xff]
  %v117 = vld [vmem:[%s0 + $0x2c0] sm:$0xff]
  %v118 = vld [vmem:[%s0 + $0x2c8] sm:$0xff]
  %v119 = vld [vmem:[%s0 + $0x2d0] sm:$0xff]
  %v120 = vld [vmem:[%s0 + $0x2d8] sm:$0xff]
  %v121 = vld [vmem:[%s0 + $0x2e0] sm:$0xff]
  %v122 = vld [vmem:[%s0 + $0x2e8] sm:$0xff]
  %v123 = vld [vmem:[%s0 + $0x2f0] sm:$0xff]
  %v124 = vld [vmem:[%s0 + $0x2f8] sm:$0xff]
  %v125 = vld [vmem:[%s0 + $0x300] sm:$0xff]
  %v126 = vld [vmem:[%s0 + $0x308] sm:$0xff]
  %v127 = vld [vmem:[%s0 + $0x310] sm:$0xff]
  %v128 = vld [vmem:[%s0 + $0x318] sm:$0xff]
  %v129 = vld [vmem:[%s0 + $0x320] sm:$0xff]
  %v130 = vld [vmem:[%s0 + $0x328] sm:$0xff]
  %v131 = vld [vmem:[%s0 + $0x330] sm:$0xff]
  %v132 = vld [vmem:[%s0 + $0x338] sm:$0xff]
  %v133 = vld [vmem:[%s0 + $0x340] sm:$0xff]
  %v134 = vld [vmem:[%s0 + $0x348] sm:$0xff]
  %v135 = vld [vmem:[%s0 + $0x350] sm:$0xff]
  %v136 = vld [vmem:[%s0 + $0x358] sm:$0xff]
  %v137 = vld [vmem:[%s0 + $0x360] sm:$0xff]
  %v138 = vld [vmem:[%s0 + $0x368] sm:$0xff]
  %v139 = vld [vmem:[%s0 + $0x370] sm:$0xff]
  %v140 = vld [vmem:[%s0 + $0x378] sm:$0xff]
  %v141 = vld [vmem:[%s0 + $0x380] sm:$0xff]
  %v142 = vld [vmem:[%s0 + $0x388] sm:$0xff]
  %v143 = vld [vmem:[%s0 + $0x390] sm:$0xff]
  %v144 = vld [vmem:[%s0 + $0x398] sm:$0xff]
  %v145 = vld [vmem:[%s0 + $0x3a0] sm:$0xff]
  %v146 = vld [vmem:[%s0 + $0x3a8] sm:$0xff]
  %v147 = vld [vmem:[%s0 + $0x3b0] sm:$0xff]
  %v148 = vld [vmem:[%s0 + $0x3b8] sm:$0xff]
  %v149 = vld [vmem:[%s0 + $0x3c0] sm:$0xff]
  %v150 = vld [vmem:[%s0 + $0x3c8] sm:$0xff]
  %v151 = vld [vmem:[%s0 + $0x3d0] sm:$0xff]
  %v152 = vld [vmem:[%s0 + $0x3d8] sm:$0xff]
  %v153 = vld [vmem:[%s0 + $0x3e0] sm:$0xff]
  %v154 = vld [vmem:[%s0 + $0x3e8] sm:$0xff]
  %v155 = vld [vmem:[%s0 + $0x3f0] sm:$0xff]
  %v156 = vld [vmem:[%s0 + $0x3f8] sm:$0xff]
  %v157 = vld [vmem:[%s0 + $0x400] sm:$0xff]
  %v158 = vld [vmem:[%s0 + $0x408] sm:$0xff]
  %v159 = vld [vmem:[%s0 + $0x410] sm:$0xff]
  %v160 = vld [vmem:[%s0 + $0x418] sm:$0xff]
  %v161 = vld [vmem:[%s0 + $0x420] sm:$0xff]
  %v162 = vld [vmem:[%s0 + $0x428] sm:$0xff]
  %v163 = vld [vmem:[%s0 + $0x430] sm:$0xff]
  %v164 = vld [vmem:[%s0 + $0x438] sm:$0xff]
  %v165 = vld [vmem:[%s0 + $0x440] sm:$0xff]
  %v166 = vld [vmem:[%s0 + $0x448] sm:$0xff]
  %v167 = vld [vmem:[%s0 + $0x450] sm:$0xff]
  %v168 = vld [vmem:[%s0 + $0x458] sm:$0xff]
  %v169 = vld [vmem:[%s0 + $0x460] sm:$0xff]
  %v170 = vld [vmem:[%s0 + $0x468] sm:$0xff]
  %v171 = vld [vmem:[%s0 + $0x470] sm:$0xff]
  %v172 = vld [vmem:[%s0 + $0x478] sm:$0xff]
  %v173 = vld [vmem:[%s1] sm:$0xff]
  %v174 = vld [vmem:[%s1 + $0x8] sm:$0xff]
  %v175 = vld [vmem:[%s1 + $0x10] sm:$0xff]
  %v176 = vld [vmem:[%s1 + $0x18] sm:$0xff]
  %v177 = vld [vmem:[%s1 + $0x20] sm:$0xff]
  %v178 = vld [vmem:[%s1 + $0x28] sm:$0xff]
  %v179 = vld [vmem:[%s1 + $0x30] sm:$0xff]
  %v180 = vld [vmem:[%s1 + $0x38] sm:$0xff]
  %v181 = vld [vmem:[%s1 + $0x40] sm:$0xff]
  %v182 = vld [vmem:[%s1 + $0x48] sm:$0xff]
  %v183 = vld [vmem:[%s1 + $0x50] sm:$0xff]
  %v184 = vld [vmem:[%s1 + $0x58] sm:$0xff]
  %v185 = vld [vmem:[%s1 + $0x60] sm:$0xff]
  %v186 = vld [vmem:[%s1 + $0x68] sm:$0xff]
  %v187 = vld [vmem:[%s1 + $0x70] sm:$0xff]
  %v188 = vld [vmem:[%s1 + $0x78] sm:$0xff]
  %v189 = vld [vmem:[%s1 + $0x80] sm:$0xff]
  %v190 = vld [vmem:[%s1 + $0x88] sm:$0xff]
  %v191 = vld [vmem:[%s1 + $0x90] sm:$0xff]
  %v192 = vld [vmem:[%s1 + $0x98] sm:$0xff]
  %v193 = vld [vmem:[%s1 + $0xa0] sm:$0xff]
  %v194 = vld [vmem:[%s1 + $0xa8] sm:$0xff]
  %v195 = vld [vmem:[%s1 + $0xb0] sm:$0xff]
  %v196 = vld [vmem:[%s1 + $0xb8] sm:$0xff]
  %v197 = vld [vmem:[%s1 + $0xc0] sm:$0xff]
  %v198 = vld [vmem:[%s1 + $0xc8] sm:$0xff]
  %v199 = vld [vmem:[%s1 + $0xd0] sm:$0xff]
  %v200 = vld [vmem:[%s1 + $0xd8] sm:$0xff]
  %v201 = vld [vmem:[%s1 + $0xe0] sm:$0xff]
  %v202 = vld [vmem:[%s1 + $0xe8] sm:$0xff]
  %v203 = vld [vmem:[%s1 + $0xf0] sm:$0xff]
  %v204 = vld [vmem:[%s1 + $0xf8] sm:$0xff]
  %v205 = vld [vmem:[%s1 + $0x100] sm:$0xff]
  %v206 = vld [vmem:[%s1 + $0x108] sm:$0xff]
  %v207 = vld [vmem:[%s1 + $0x110] sm:$0xff]
  %v208 = vld [vmem:[%s1 + $0x118] sm:$0xff]
  %v209 = vld [vmem:[%s1 + $0x120] sm:$0xff]
  %v210 = vld [vmem:[%s1 + $0x128] sm:$0xff]
  %v211 = vld [vmem:[%s1 + $0x130] sm:$0xff]
  %v212 = vld [vmem:[%s1 + $0x138] sm:$0xff]
  %v213 = vld [vmem:[%s1 + $0x140] sm:$0xff]
  %v214 = vld [vmem:[%s1 + $0x148] sm:$0xff]
  %v215 = vld [vmem:[%s1 + $0x150] sm:$0xff]
  %v216 = vld [vmem:[%s1 + $0x158] sm:$0xff]
  %v217 = vld [vmem:[%s1 + $0x160] sm:$0xff]
  %v218 = vld [vmem:[%s1 + $0x168] sm:$0xff]
  %v219 = vld [vmem:[%s1 + $0x170] sm:$0xff]
  %v220 = vld [vmem:[%s1 + $0x178] sm:$0xff]
  %v221 = vld [vmem:[%s1 + $0x180] sm:$0xff]
  %v222 = vld [vmem:[%s1 + $0x188] sm:$0xff]
  %v223 = vld [vmem:[%s1 + $0x190] sm:$0xff]
  %v224 = vld [vmem:[%s1 + $0x198] sm:$0xff]
  %v225 = vld [vmem:[%s1 + $0x1a0] sm:$0xff]
  %v226 = vld [vmem:[%s1 + $0x1a8] sm:$0xff]
  %v227 = vld [vmem:[%s1 + $0x1b0] sm:$0xff]
  %v228 = vld [vmem:[%s1 + $0x1b8] sm:$0xff]
  %v229 = vld [vmem:[%s1 + $0x1c0] sm:$0xff]
  %v230 = vld [vmem:[%s1 + $0x1c8] sm:$0xff]
  %v231 = vld [vmem:[%s1 + $0x1d0] sm:$0xff]
  %v232 = vld [vmem:[%s1 + $0x1d8] sm:$0xff]
  %v233 = vld [vmem:[%s1 + $0x1e0] sm:$0xff]
  %v234 = vld [vmem:[%s1 + $0x1e8] sm:$0xff]
  %v235 = vld [vmem:[%s1 + $0x1f0] sm:$0xff]
  %v236 = vld [vmem:[%s1 + $0x1f8] sm:$0xff]
  %v237 = vld [vmem:[%s1 + $0x200] sm:$0xff]
  %v238 = vld [vmem:[%s1 + $0x208] sm:$0xff]
  %v239 = vld [vmem:[%s1 + $0x210] sm:$0xff]
  %v240 = vld [vmem:[%s1 + $0x218] sm:$0xff]
  %v241 = vld [vmem:[%s1 + $0x220] sm:$0xff]
  %v242 = vld [vmem:[%s1 + $0x228] sm:$0xff]
  %v243 = vld [vmem:[%s1 + $0x230] sm:$0xff]
  %v244 = vld [vmem:[%s1 + $0x238] sm:$0xff]
  %v245 = vld [vmem:[%s1 + $0x240] sm:$0xff]
  %v246 = vld [vmem:[%s1 + $0x248] sm:$0xff]
  %v247 = vld [vmem:[%s1 + $0x250] sm:$0xff]
  %v248 = vld [vmem:[%s1 + $0x258] sm:$0xff]
  %v249 = vld [vmem:[%s1 + $0x260] sm:$0xff]
  %v250 = vld [vmem:[%s1 + $0x268] sm:$0xff]
  %v251 = vld [vmem:[%s1 + $0x270] sm:$0xff]
  %v252 = vld [vmem:[%s1 + $0x278] sm:$0xff]
  %v253 = vld [vmem:[%s1 + $0x280] sm:$0xff]
  %v254 = vld [vmem:[%s1 + $0x288] sm:$0xff]
  %v255 = vld [vmem:[%s1 + $0x290] sm:$0xff]
  %v256 = vld [vmem:[%s1 + $0x298] sm:$0xff]
  %v257 = vld [vmem:[%s1 + $0x2a0] sm:$0xff]
  %v258 = vld [vmem:[%s1 + $0x2a8] sm:$0xff]
  %v259 = vld [vmem:[%s1 + $0x2b0] sm:$0xff]
  %v260 = vld [vmem:[%s1 + $0x2b8] sm:$0xff]
  %v261 = vld [vmem:[%s1 + $0x2c0] sm:$0xff]
  %v262 = vld [vmem:[%s1 + $0x2c8] sm:$0xff]
  %v263 = vld [vmem:[%s1 + $0x2d0] sm:$0xff]
  %v264 = vld [vmem:[%s1 + $0x2d8] sm:$0xff]
  %v265 = vld [vmem:[%s1 + $0x2e0] sm:$0xff]
  %v266 = vld [vmem:[%s1 + $0x2e8] sm:$0xff]
  %v267 = vld [vmem:[%s1 + $0x2f0] sm:$0xff]
  %v268 = vld [vmem:[%s1 + $0x2f8] sm:$0xff]
  %v269 = vld [vmem:[%s1 + $0x300] sm:$0xff]
  %v270 = vld [vmem:[%s1 + $0x308] sm:$0xff]
  %v271 = vld [vmem:[%s1 + $0x310] sm:$0xff]
  %v272 = vld [vmem:[%s1 + $0x318] sm:$0xff]
  %v273 = vld [vmem:[%s1 + $0x320] sm:$0xff]
  %v274 = vld [vmem:[%s1 + $0x328] sm:$0xff]
  %v275 = vld [vmem:[%s1 + $0x330] sm:$0xff]
  %v276 = vld [vmem:[%s1 + $0x338] sm:$0xff]
  %v277 = vld [vmem:[%s1 + $0x340] sm:$0xff]
  %v278 = vld [vmem:[%s1 + $0x348] sm:$0xff]
  %v279 = vld [vmem:[%s1 + $0x350] sm:$0xff]
  %v280 = vld [vmem:[%s1 + $0x358] sm:$0xff]
  %v281 = vld [vmem:[%s1 + $0x360] sm:$0xff]
  %v282 = vld [vmem:[%s1 + $0x368] sm:$0xff]
  %v283 = vld [vmem:[%s1 + $0x370] sm:$0xff]
  %v284 = vld [vmem:[%s1 + $0x378] sm:$0xff]
  %v285 = vld [vmem:[%s1 + $0x380] sm:$0xff]
  %v286 = vld [vmem:[%s1 + $0x388] sm:$0xff]
  %v287 = vld [vmem:[%s1 + $0x390] sm:$0xff]
  %v288 = vld [vmem:[%s1 + $0x398] sm:$0xff]
  %v289 = vld [vmem:[%s1 + $0x3a0] sm:$0xff]
  %v290 = vld [vmem:[%s1 + $0x3a8] sm:$0xff]
  %v291 = vld [vmem:[%s1 + $0x3b0] sm:$0xff]
  %v292 = vld [vmem:[%s1 + $0x3b8] sm:$0xff]
  %v293 = vld [vmem:[%s1 + $0x3c0] sm:$0xff]
  %v294 = vld [vmem:[%s1 + $0x3c8] sm:$0xff]
  %v295 = vld [vmem:[%s1 + $0x3d0] sm:$0xff]
  %v296 = vld [vmem:[%s1 + $0x3d8] sm:$0xff]
  %v297 = vld [vmem:[%s1 + $0x3e0] sm:$0xff]
  %v298 = vld [vmem:[%s1 + $0x3e8] sm:$0xff]
  %v299 = vld [vmem:[%s1 + $0x3f0] sm:$0xff]
  %v300 = vld [vmem:[%s1 + $0x3f8] sm:$0xff]
  %v301 = vld [vmem:[%s1 + $0x400] sm:$0xff]
  %v302 = vld [vmem:[%s1 + $0x408] sm:$0xff]
  %v303 = vld [vmem:[%s1 + $0x410] sm:$0xff]
  %v304 = vld [vmem:[%s1 + $0x418] sm:$0xff]
  %v305 = vld [vmem:[%s1 + $0x420] sm:$0xff]
  %v306 = vld [vmem:[%s1 + $0x428] sm:$0xff]
  %v307 = vld [vmem:[%s1 + $0x430] sm:$0xff]
  %v308 = vld [vmem:[%s1 + $0x438] sm:$0xff]
  %v309 = vld [vmem:[%s1 + $0x440] sm:$0xff]
  %v310 = vld [vmem:[%s1 + $0x448] sm:$0xff]
  %v311 = vld [vmem:[%s1 + $0x450] sm:$0xff]
  %v312 = vld [vmem:[%s1 + $0x458] sm:$0xff]
  %v313 = vld [vmem:[%s1 + $0x460] sm:$0xff]
  %v314 = vld [vmem:[%s1 + $0x468] sm:$0xff]
  %v315 = vld [vmem:[%s1 + $0x470] sm:$0xff]
  %v316 = vld [vmem:[%s1 + $0x478] sm:$0xff]
  %v317 = vld [vmem:[%s2] sm:$0x1]
  %v319 = vperm.slane %v317, 0
  %321 = vmatpush.msra.mxu0 %v188
  %322 = vmatpush.msra.mxu0 %v187
  %323 = vmatpush.msra.mxu0 %v186
  %324 = vmatpush.msra.mxu0 %v185
  %325 = vmatpush.msra.mxu0 %v184
  %326 = vmatpush.msra.mxu0 %v183
  %327 = vmatpush.msra.mxu0 %v182
  %328 = vmatpush.msra.mxu0 %v181
  %329 = vmatpush.msra.mxu0 %v180
  %330 = vmatpush.msra.mxu0 %v179
  %331 = vmatpush.msra.mxu0 %v178
  %332 = vmatpush.msra.mxu0 %v177
  %333 = vmatpush.msra.mxu0 %v176
  %334 = vmatpush.msra.mxu0 %v175
  %335 = vmatpush.msra.mxu0 %v174
  %336 = vmatpush.msra.mxu0 %v173
  %337 = vmatmul.f32.gmra.mxu0 %v29
  %v338 = vpop.f32.mrf.mxu0
  %v339 = vadd.f32 %v319, %v338
  %340 = vmatmul.f32.gmra.mxu0 %v38
  %v341 = vpop.f32.mrf.mxu0
  %v342 = vadd.f32 %v319, %v341
  %343 = vmatmul.f32.gmra.mxu0 %v47
  %v344 = vpop.f32.mrf.mxu0
  %v345 = vadd.f32 %v319, %v344
  %346 = vmatmul.f32.gmra.mxu0 %v56
  %v347 = vpop.f32.mrf.mxu0
  %v348 = vadd.f32 %v319, %v347
  %349 = vmatmul.f32.gmra.mxu0 %v65
  %v350 = vpop.f32.mrf.mxu0
  %v351 = vadd.f32 %v319, %v350
  %352 = vmatmul.f32.gmra.mxu0 %v74
  %v353 = vpop.f32.mrf.mxu0
  %v354 = vadd.f32 %v319, %v353
  %355 = vmatmul.f32.gmra.mxu0 %v83
  %v356 = vpop.f32.mrf.mxu0
  %v357 = vadd.f32 %v319, %v356
  %358 = vmatmul.f32.gmra.mxu0 %v92
  %v359 = vpop.f32.mrf.mxu0
  %v360 = vadd.f32 %v319, %v359
  %361 = vmatmul.f32.gmra.mxu0 %v101
  %v362 = vpop.f32.mrf.mxu0
  %v363 = vadd.f32 %v319, %v362
  %364 = vmatmul.f32.gmra.mxu0 %v110
  %v365 = vpop.f32.mrf.mxu0
  %v366 = vadd.f32 %v319, %v365
  %367 = vmatmul.f32.gmra.mxu0 %v119
  %v368 = vpop.f32.mrf.mxu0
  %v369 = vadd.f32 %v319, %v368
  %370 = vmatmul.f32.gmra.mxu0 %v128
  %v371 = vpop.f32.mrf.mxu0
  %v372 = vadd.f32 %v319, %v371
  %373 = vmatmul.f32.gmra.mxu0 %v137
  %v374 = vpop.f32.mrf.mxu0
  %v375 = vadd.f32 %v319, %v374
  %376 = vmatmul.f32.gmra.mxu0 %v146
  %v377 = vpop.f32.mrf.mxu0
  %v378 = vadd.f32 %v319, %v377
  %379 = vmatmul.f32.gmra.mxu0 %v155
  %v380 = vpop.f32.mrf.mxu0
  %v381 = vadd.f32 %v319, %v380
  %382 = vmatmul.f32.gmra.mxu0 %v164
  %v383 = vpop.f32.mrf.mxu0
  %v384 = vadd.f32 %v319, %v383
  %385 = vdwg.mxu0
  %386 = vmatpush.msra.mxu0 %v204
  %387 = vmatpush.msra.mxu0 %v203
  %388 = vmatpush.msra.mxu0 %v202
  %389 = vmatpush.msra.mxu0 %v201
  %390 = vmatpush.msra.mxu0 %v200
  %391 = vmatpush.msra.mxu0 %v199
  %392 = vmatpush.msra.mxu0 %v198
  %393 = vmatpush.msra.mxu0 %v197
  %394 = vmatpush.msra.mxu0 %v196
  %395 = vmatpush.msra.mxu0 %v195
  %396 = vmatpush.msra.mxu0 %v194
  %397 = vmatpush.msra.mxu0 %v193
  %398 = vmatpush.msra.mxu0 %v192
  %399 = vmatpush.msra.mxu0 %v191
  %400 = vmatpush.msra.mxu0 %v190
  %401 = vmatpush.msra.mxu0 %v189
  %402 = vmatmul.f32.gmra.mxu0 %v30
  %v403 = vpop.f32.mrf.mxu0
  %v404 = vadd.f32 %v339, %v403
  %405 = vmatmul.f32.gmra.mxu0 %v39
  %v406 = vpop.f32.mrf.mxu0
  %v407 = vadd.f32 %v342, %v406
  %408 = vmatmul.f32.gmra.mxu0 %v48
  %v409 = vpop.f32.mrf.mxu0
  %v410 = vadd.f32 %v345, %v409
  %411 = vmatmul.f32.gmra.mxu0 %v57
  %v412 = vpop.f32.mrf.mxu0
  %v413 = vadd.f32 %v348, %v412
  %414 = vmatmul.f32.gmra.mxu0 %v66
  %v415 = vpop.f32.mrf.mxu0
  %v416 = vadd.f32 %v351, %v415
  %417 = vmatmul.f32.gmra.mxu0 %v75
  %v418 = vpop.f32.mrf.mxu0
  %v419 = vadd.f32 %v354, %v418
  %420 = vmatmul.f32.gmra.mxu0 %v84
  %v421 = vpop.f32.mrf.mxu0
  %v422 = vadd.f32 %v357, %v421
  %423 = vmatmul.f32.gmra.mxu0 %v93
  %v424 = vpop.f32.mrf.mxu0
  %v425 = vadd.f32 %v360, %v424
  %426 = vmatmul.f32.gmra.mxu0 %v102
  %v427 = vpop.f32.mrf.mxu0
  %v428 = vadd.f32 %v363, %v427
  %429 = vmatmul.f32.gmra.mxu0 %v111
  %v430 = vpop.f32.mrf.mxu0
  %v431 = vadd.f32 %v366, %v430
  %432 = vmatmul.f32.gmra.mxu0 %v120
  %v433 = vpop.f32.mrf.mxu0
  %v434 = vadd.f32 %v369, %v433
  %435 = vmatmul.f32.gmra.mxu0 %v129
  %v436 = vpop.f32.mrf.mxu0
  %v437 = vadd.f32 %v372, %v436
  %438 = vmatmul.f32.gmra.mxu0 %v138
  %v439 = vpop.f32.mrf.mxu0
  %v440 = vadd.f32 %v375, %v439
  %441 = vmatmul.f32.gmra.mxu0 %v147
  %v442 = vpop.f32.mrf.mxu0
  %v443 = vadd.f32 %v378, %v442
  %444 = vmatmul.f32.gmra.mxu0 %v156
  %v445 = vpop.f32.mrf.mxu0
  %v446 = vadd.f32 %v381, %v445
  %447 = vmatmul.f32.gmra.mxu0 %v165
  %v448 = vpop.f32.mrf.mxu0
  %v449 = vadd.f32 %v384, %v448
  %450 = vdwg.mxu0
  %451 = vmatpush.msra.mxu0 %v220
  %452 = vmatpush.msra.mxu0 %v219
  %453 = vmatpush.msra.mxu0 %v218
  %454 = vmatpush.msra.mxu0 %v217
  %455 = vmatpush.msra.mxu0 %v216
  %456 = vmatpush.msra.mxu0 %v215
  %457 = vmatpush.msra.mxu0 %v214
  %458 = vmatpush.msra.mxu0 %v213
  %459 = vmatpush.msra.mxu0 %v212
  %460 = vmatpush.msra.mxu0 %v211
  %461 = vmatpush.msra.mxu0 %v210
  %462 = vmatpush.msra.mxu0 %v209
  %463 = vmatpush.msra.mxu0 %v208
  %464 = vmatpush.msra.mxu0 %v207
  %465 = vmatpush.msra.mxu0 %v206
  %466 = vmatpush.msra.mxu0 %v205
  %467 = vmatmul.f32.gmra.mxu0 %v31
  %v468 = vpop.f32.mrf.mxu0
  %v469 = vadd.f32 %v404, %v468
  %470 = vmatmul.f32.gmra.mxu0 %v40
  %v471 = vpop.f32.mrf.mxu0
  %v472 = vadd.f32 %v407, %v471
  %473 = vmatmul.f32.gmra.mxu0 %v49
  %v474 = vpop.f32.mrf.mxu0
  %v475 = vadd.f32 %v410, %v474
  %476 = vmatmul.f32.gmra.mxu0 %v58
  %v477 = vpop.f32.mrf.mxu0
  %v478 = vadd.f32 %v413, %v477
  %479 = vmatmul.f32.gmra.mxu0 %v67
  %v480 = vpop.f32.mrf.mxu0
  %v481 = vadd.f32 %v416, %v480
  %482 = vmatmul.f32.gmra.mxu0 %v76
  %v483 = vpop.f32.mrf.mxu0
  %v484 = vadd.f32 %v419, %v483
  %485 = vmatmul.f32.gmra.mxu0 %v85
  %v486 = vpop.f32.mrf.mxu0
  %v487 = vadd.f32 %v422, %v486
  %488 = vmatmul.f32.gmra.mxu0 %v94
  %v489 = vpop.f32.mrf.mxu0
  %v490 = vadd.f32 %v425, %v489
  %491 = vmatmul.f32.gmra.mxu0 %v103
  %v492 = vpop.f32.mrf.mxu0
  %v493 = vadd.f32 %v428, %v492
  %494 = vmatmul.f32.gmra.mxu0 %v112
  %v495 = vpop.f32.mrf.mxu0
  %v496 = vadd.f32 %v431, %v495
  %497 = vmatmul.f32.gmra.mxu0 %v121
  %v498 = vpop.f32.mrf.mxu0
  %v499 = vadd.f32 %v434, %v498
  %500 = vmatmul.f32.gmra.mxu0 %v130
  %v501 = vpop.f32.mrf.mxu0
  %v502 = vadd.f32 %v437, %v501
  %503 = vmatmul.f32.gmra.mxu0 %v139
  %v504 = vpop.f32.mrf.mxu0
  %v505 = vadd.f32 %v440, %v504
  %506 = vmatmul.f32.gmra.mxu0 %v148
  %v507 = vpop.f32.mrf.mxu0
  %v508 = vadd.f32 %v443, %v507
  %509 = vmatmul.f32.gmra.mxu0 %v157
  %v510 = vpop.f32.mrf.mxu0
  %v511 = vadd.f32 %v446, %v510
  %512 = vmatmul.f32.gmra.mxu0 %v166
  %v513 = vpop.f32.mrf.mxu0
  %v514 = vadd.f32 %v449, %v513
  %515 = vdwg.mxu0
  %516 = vmatpush.msra.mxu0 %v236
  %517 = vmatpush.msra.mxu0 %v235
  %518 = vmatpush.msra.mxu0 %v234
  %519 = vmatpush.msra.mxu0 %v233
  %520 = vmatpush.msra.mxu0 %v232
  %521 = vmatpush.msra.mxu0 %v231
  %522 = vmatpush.msra.mxu0 %v230
  %523 = vmatpush.msra.mxu0 %v229
  %524 = vmatpush.msra.mxu0 %v228
  %525 = vmatpush.msra.mxu0 %v227
  %526 = vmatpush.msra.mxu0 %v226
  %527 = vmatpush.msra.mxu0 %v225
  %528 = vmatpush.msra.mxu0 %v224
  %529 = vmatpush.msra.mxu0 %v223
  %530 = vmatpush.msra.mxu0 %v222
  %531 = vmatpush.msra.mxu0 %v221
  %532 = vmatmul.f32.gmra.mxu0 %v32
  %v533 = vpop.f32.mrf.mxu0
  %v534 = vadd.f32 %v469, %v533
  %535 = vmatmul.f32.gmra.mxu0 %v41
  %v536 = vpop.f32.mrf.mxu0
  %v537 = vadd.f32 %v472, %v536
  %538 = vmatmul.f32.gmra.mxu0 %v50
  %v539 = vpop.f32.mrf.mxu0
  %v540 = vadd.f32 %v475, %v539
  %541 = vmatmul.f32.gmra.mxu0 %v59
  %v542 = vpop.f32.mrf.mxu0
  %v543 = vadd.f32 %v478, %v542
  %544 = vmatmul.f32.gmra.mxu0 %v68
  %v545 = vpop.f32.mrf.mxu0
  %v546 = vadd.f32 %v481, %v545
  %547 = vmatmul.f32.gmra.mxu0 %v77
  %v548 = vpop.f32.mrf.mxu0
  %v549 = vadd.f32 %v484, %v548
  %550 = vmatmul.f32.gmra.mxu0 %v86
  %v551 = vpop.f32.mrf.mxu0
  %v552 = vadd.f32 %v487, %v551
  %553 = vmatmul.f32.gmra.mxu0 %v95
  %v554 = vpop.f32.mrf.mxu0
  %v555 = vadd.f32 %v490, %v554
  %556 = vmatmul.f32.gmra.mxu0 %v104
  %v557 = vpop.f32.mrf.mxu0
  %v558 = vadd.f32 %v493, %v557
  %559 = vmatmul.f32.gmra.mxu0 %v113
  %v560 = vpop.f32.mrf.mxu0
  %v561 = vadd.f32 %v496, %v560
  %562 = vmatmul.f32.gmra.mxu0 %v122
  %v563 = vpop.f32.mrf.mxu0
  %v564 = vadd.f32 %v499, %v563
  %565 = vmatmul.f32.gmra.mxu0 %v131
  %v566 = vpop.f32.mrf.mxu0
  %v567 = vadd.f32 %v502, %v566
  %568 = vmatmul.f32.gmra.mxu0 %v140
  %v569 = vpop.f32.mrf.mxu0
  %v570 = vadd.f32 %v505, %v569
  %571 = vmatmul.f32.gmra.mxu0 %v149
  %v572 = vpop.f32.mrf.mxu0
  %v573 = vadd.f32 %v508, %v572
  %574 = vmatmul.f32.gmra.mxu0 %v158
  %v575 = vpop.f32.mrf.mxu0
  %v576 = vadd.f32 %v511, %v575
  %577 = vmatmul.f32.gmra.mxu0 %v167
  %v578 = vpop.f32.mrf.mxu0
  %v579 = vadd.f32 %v514, %v578
  %580 = vdwg.mxu0
  %581 = vmatpush.msra.mxu0 %v252
  %582 = vmatpush.msra.mxu0 %v251
  %583 = vmatpush.msra.mxu0 %v250
  %584 = vmatpush.msra.mxu0 %v249
  %585 = vmatpush.msra.mxu0 %v248
  %586 = vmatpush.msra.mxu0 %v247
  %587 = vmatpush.msra.mxu0 %v246
  %588 = vmatpush.msra.mxu0 %v245
  %589 = vmatpush.msra.mxu0 %v244
  %590 = vmatpush.msra.mxu0 %v243
  %591 = vmatpush.msra.mxu0 %v242
  %592 = vmatpush.msra.mxu0 %v241
  %593 = vmatpush.msra.mxu0 %v240
  %594 = vmatpush.msra.mxu0 %v239
  %595 = vmatpush.msra.mxu0 %v238
  %596 = vmatpush.msra.mxu0 %v237
  %597 = vmatmul.f32.gmra.mxu0 %v33
  %v598 = vpop.f32.mrf.mxu0
  %v599 = vadd.f32 %v534, %v598
  %600 = vmatmul.f32.gmra.mxu0 %v42
  %v601 = vpop.f32.mrf.mxu0
  %v602 = vadd.f32 %v537, %v601
  %603 = vmatmul.f32.gmra.mxu0 %v51
  %v604 = vpop.f32.mrf.mxu0
  %v605 = vadd.f32 %v540, %v604
  %606 = vmatmul.f32.gmra.mxu0 %v60
  %v607 = vpop.f32.mrf.mxu0
  %v608 = vadd.f32 %v543, %v607
  %609 = vmatmul.f32.gmra.mxu0 %v69
  %v610 = vpop.f32.mrf.mxu0
  %v611 = vadd.f32 %v546, %v610
  %612 = vmatmul.f32.gmra.mxu0 %v78
  %v613 = vpop.f32.mrf.mxu0
  %v614 = vadd.f32 %v549, %v613
  %615 = vmatmul.f32.gmra.mxu0 %v87
  %v616 = vpop.f32.mrf.mxu0
  %v617 = vadd.f32 %v552, %v616
  %618 = vmatmul.f32.gmra.mxu0 %v96
  %v619 = vpop.f32.mrf.mxu0
  %v620 = vadd.f32 %v555, %v619
  %621 = vmatmul.f32.gmra.mxu0 %v105
  %v622 = vpop.f32.mrf.mxu0
  %v623 = vadd.f32 %v558, %v622
  %624 = vmatmul.f32.gmra.mxu0 %v114
  %v625 = vpop.f32.mrf.mxu0
  %v626 = vadd.f32 %v561, %v625
  %627 = vmatmul.f32.gmra.mxu0 %v123
  %v628 = vpop.f32.mrf.mxu0
  %v629 = vadd.f32 %v564, %v628
  %630 = vmatmul.f32.gmra.mxu0 %v132
  %v631 = vpop.f32.mrf.mxu0
  %v632 = vadd.f32 %v567, %v631
  %633 = vmatmul.f32.gmra.mxu0 %v141
  %v634 = vpop.f32.mrf.mxu0
  %v635 = vadd.f32 %v570, %v634
  %636 = vmatmul.f32.gmra.mxu0 %v150
  %v637 = vpop.f32.mrf.mxu0
  %v638 = vadd.f32 %v573, %v637
  %639 = vmatmul.f32.gmra.mxu0 %v159
  %v640 = vpop.f32.mrf.mxu0
  %v641 = vadd.f32 %v576, %v640
  %642 = vmatmul.f32.gmra.mxu0 %v168
  %v643 = vpop.f32.mrf.mxu0
  %v644 = vadd.f32 %v579, %v643
  %645 = vdwg.mxu0
  %646 = vmatpush.msra.mxu0 %v268
  %647 = vmatpush.msra.mxu0 %v267
  %648 = vmatpush.msra.mxu0 %v266
  %649 = vmatpush.msra.mxu0 %v265
  %650 = vmatpush.msra.mxu0 %v264
  %651 = vmatpush.msra.mxu0 %v263
  %652 = vmatpush.msra.mxu0 %v262
  %653 = vmatpush.msra.mxu0 %v261
  %654 = vmatpush.msra.mxu0 %v260
  %655 = vmatpush.msra.mxu0 %v259
  %656 = vmatpush.msra.mxu0 %v258
  %657 = vmatpush.msra.mxu0 %v257
  %658 = vmatpush.msra.mxu0 %v256
  %659 = vmatpush.msra.mxu0 %v255
  %660 = vmatpush.msra.mxu0 %v254
  %661 = vmatpush.msra.mxu0 %v253
  %662 = vmatmul.f32.gmra.mxu0 %v34
  %v663 = vpop.f32.mrf.mxu0
  %v664 = vadd.f32 %v599, %v663
  %665 = vmatmul.f32.gmra.mxu0 %v43
  %v666 = vpop.f32.mrf.mxu0
  %v667 = vadd.f32 %v602, %v666
  %668 = vmatmul.f32.gmra.mxu0 %v52
  %v669 = vpop.f32.mrf.mxu0
  %v670 = vadd.f32 %v605, %v669
  %671 = vmatmul.f32.gmra.mxu0 %v61
  %v672 = vpop.f32.mrf.mxu0
  %v673 = vadd.f32 %v608, %v672
  %674 = vmatmul.f32.gmra.mxu0 %v70
  %v675 = vpop.f32.mrf.mxu0
  %v676 = vadd.f32 %v611, %v675
  %677 = vmatmul.f32.gmra.mxu0 %v79
  %v678 = vpop.f32.mrf.mxu0
  %v679 = vadd.f32 %v614, %v678
  %680 = vmatmul.f32.gmra.mxu0 %v88
  %v681 = vpop.f32.mrf.mxu0
  %v682 = vadd.f32 %v617, %v681
  %683 = vmatmul.f32.gmra.mxu0 %v97
  %v684 = vpop.f32.mrf.mxu0
  %v685 = vadd.f32 %v620, %v684
  %686 = vmatmul.f32.gmra.mxu0 %v106
  %v687 = vpop.f32.mrf.mxu0
  %v688 = vadd.f32 %v623, %v687
  %689 = vmatmul.f32.gmra.mxu0 %v115
  %v690 = vpop.f32.mrf.mxu0
  %v691 = vadd.f32 %v626, %v690
  %692 = vmatmul.f32.gmra.mxu0 %v124
  %v693 = vpop.f32.mrf.mxu0
  %v694 = vadd.f32 %v629, %v693
  %695 = vmatmul.f32.gmra.mxu0 %v133
  %v696 = vpop.f32.mrf.mxu0
  %v697 = vadd.f32 %v632, %v696
  %698 = vmatmul.f32.gmra.mxu0 %v142
  %v699 = vpop.f32.mrf.mxu0
  %v700 = vadd.f32 %v635, %v699
  %701 = vmatmul.f32.gmra.mxu0 %v151
  %v702 = vpop.f32.mrf.mxu0
  %v703 = vadd.f32 %v638, %v702
  %704 = vmatmul.f32.gmra.mxu0 %v160
  %v705 = vpop.f32.mrf.mxu0
  %v706 = vadd.f32 %v641, %v705
  %707 = vmatmul.f32.gmra.mxu0 %v169
  %v708 = vpop.f32.mrf.mxu0
  %v709 = vadd.f32 %v644, %v708
  %710 = vdwg.mxu0
  %711 = vmatpush.msra.mxu0 %v284
  %712 = vmatpush.msra.mxu0 %v283
  %713 = vmatpush.msra.mxu0 %v282
  %714 = vmatpush.msra.mxu0 %v281
  %715 = vmatpush.msra.mxu0 %v280
  %716 = vmatpush.msra.mxu0 %v279
  %717 = vmatpush.msra.mxu0 %v278
  %718 = vmatpush.msra.mxu0 %v277
  %719 = vmatpush.msra.mxu0 %v276
  %720 = vmatpush.msra.mxu0 %v275
  %721 = vmatpush.msra.mxu0 %v274
  %722 = vmatpush.msra.mxu0 %v273
  %723 = vmatpush.msra.mxu0 %v272
  %724 = vmatpush.msra.mxu0 %v271
  %725 = vmatpush.msra.mxu0 %v270
  %726 = vmatpush.msra.mxu0 %v269
  %727 = vmatmul.f32.gmra.mxu0 %v35
  %v728 = vpop.f32.mrf.mxu0
  %v729 = vadd.f32 %v664, %v728
  %730 = vmatmul.f32.gmra.mxu0 %v44
  %v731 = vpop.f32.mrf.mxu0
  %v732 = vadd.f32 %v667, %v731
  %733 = vmatmul.f32.gmra.mxu0 %v53
  %v734 = vpop.f32.mrf.mxu0
  %v735 = vadd.f32 %v670, %v734
  %736 = vmatmul.f32.gmra.mxu0 %v62
  %v737 = vpop.f32.mrf.mxu0
  %v738 = vadd.f32 %v673, %v737
  %739 = vmatmul.f32.gmra.mxu0 %v71
  %v740 = vpop.f32.mrf.mxu0
  %v741 = vadd.f32 %v676, %v740
  %742 = vmatmul.f32.gmra.mxu0 %v80
  %v743 = vpop.f32.mrf.mxu0
  %v744 = vadd.f32 %v679, %v743
  %745 = vmatmul.f32.gmra.mxu0 %v89
  %v746 = vpop.f32.mrf.mxu0
  %v747 = vadd.f32 %v682, %v746
  %748 = vmatmul.f32.gmra.mxu0 %v98
  %v749 = vpop.f32.mrf.mxu0
  %v750 = vadd.f32 %v685, %v749
  %751 = vmatmul.f32.gmra.mxu0 %v107
  %v752 = vpop.f32.mrf.mxu0
  %v753 = vadd.f32 %v688, %v752
  %754 = vmatmul.f32.gmra.mxu0 %v116
  %v755 = vpop.f32.mrf.mxu0
  %v756 = vadd.f32 %v691, %v755
  %757 = vmatmul.f32.gmra.mxu0 %v125
  %v758 = vpop.f32.mrf.mxu0
  %v759 = vadd.f32 %v694, %v758
  %760 = vmatmul.f32.gmra.mxu0 %v134
  %v761 = vpop.f32.mrf.mxu0
  %v762 = vadd.f32 %v697, %v761
  %763 = vmatmul.f32.gmra.mxu0 %v143
  %v764 = vpop.f32.mrf.mxu0
  %v765 = vadd.f32 %v700, %v764
  %766 = vmatmul.f32.gmra.mxu0 %v152
  %v767 = vpop.f32.mrf.mxu0
  %v768 = vadd.f32 %v703, %v767
  %769 = vmatmul.f32.gmra.mxu0 %v161
  %v770 = vpop.f32.mrf.mxu0
  %v771 = vadd.f32 %v706, %v770
  %772 = vmatmul.f32.gmra.mxu0 %v170
  %v773 = vpop.f32.mrf.mxu0
  %v774 = vadd.f32 %v709, %v773
  %775 = vdwg.mxu0
  %776 = vmatpush.msra.mxu0 %v300
  %777 = vmatpush.msra.mxu0 %v299
  %778 = vmatpush.msra.mxu0 %v298
  %779 = vmatpush.msra.mxu0 %v297
  %780 = vmatpush.msra.mxu0 %v296
  %781 = vmatpush.msra.mxu0 %v295
  %782 = vmatpush.msra.mxu0 %v294
  %783 = vmatpush.msra.mxu0 %v293
  %784 = vmatpush.msra.mxu0 %v292
  %785 = vmatpush.msra.mxu0 %v291
  %786 = vmatpush.msra.mxu0 %v290
  %787 = vmatpush.msra.mxu0 %v289
  %788 = vmatpush.msra.mxu0 %v288
  %789 = vmatpush.msra.mxu0 %v287
  %790 = vmatpush.msra.mxu0 %v286
  %791 = vmatpush.msra.mxu0 %v285
  %792 = vmatmul.f32.gmra.mxu0 %v36
  %v793 = vpop.f32.mrf.mxu0
  %v794 = vadd.f32 %v729, %v793
  %795 = vmatmul.f32.gmra.mxu0 %v45
  %v796 = vpop.f32.mrf.mxu0
  %v797 = vadd.f32 %v732, %v796
  %798 = vmatmul.f32.gmra.mxu0 %v54
  %v799 = vpop.f32.mrf.mxu0
  %v800 = vadd.f32 %v735, %v799
  %801 = vmatmul.f32.gmra.mxu0 %v63
  %v802 = vpop.f32.mrf.mxu0
  %v803 = vadd.f32 %v738, %v802
  %804 = vmatmul.f32.gmra.mxu0 %v72
  %v805 = vpop.f32.mrf.mxu0
  %v806 = vadd.f32 %v741, %v805
  %807 = vmatmul.f32.gmra.mxu0 %v81
  %v808 = vpop.f32.mrf.mxu0
  %v809 = vadd.f32 %v744, %v808
  %810 = vmatmul.f32.gmra.mxu0 %v90
  %v811 = vpop.f32.mrf.mxu0
  %v812 = vadd.f32 %v747, %v811
  %813 = vmatmul.f32.gmra.mxu0 %v99
  %v814 = vpop.f32.mrf.mxu0
  %v815 = vadd.f32 %v750, %v814
  %816 = vmatmul.f32.gmra.mxu0 %v108
  %v817 = vpop.f32.mrf.mxu0
  %v818 = vadd.f32 %v753, %v817
  %819 = vmatmul.f32.gmra.mxu0 %v117
  %v820 = vpop.f32.mrf.mxu0
  %v821 = vadd.f32 %v756, %v820
  %822 = vmatmul.f32.gmra.mxu0 %v126
  %v823 = vpop.f32.mrf.mxu0
  %v824 = vadd.f32 %v759, %v823
  %825 = vmatmul.f32.gmra.mxu0 %v135
  %v826 = vpop.f32.mrf.mxu0
  %v827 = vadd.f32 %v762, %v826
  %828 = vmatmul.f32.gmra.mxu0 %v144
  %v829 = vpop.f32.mrf.mxu0
  %v830 = vadd.f32 %v765, %v829
  %831 = vmatmul.f32.gmra.mxu0 %v153
  %v832 = vpop.f32.mrf.mxu0
  %v833 = vadd.f32 %v768, %v832
  %834 = vmatmul.f32.gmra.mxu0 %v162
  %v835 = vpop.f32.mrf.mxu0
  %v836 = vadd.f32 %v771, %v835
  %837 = vmatmul.f32.gmra.mxu0 %v171
  %v838 = vpop.f32.mrf.mxu0
  %v839 = vadd.f32 %v774, %v838
  %840 = vdwg.mxu0
  %841 = vmatpush.msra.mxu0 %v316
  %842 = vmatpush.msra.mxu0 %v315
  %843 = vmatpush.msra.mxu0 %v314
  %844 = vmatpush.msra.mxu0 %v313
  %845 = vmatpush.msra.mxu0 %v312
  %846 = vmatpush.msra.mxu0 %v311
  %847 = vmatpush.msra.mxu0 %v310
  %848 = vmatpush.msra.mxu0 %v309
  %849 = vmatpush.msra.mxu0 %v308
  %850 = vmatpush.msra.mxu0 %v307
  %851 = vmatpush.msra.mxu0 %v306
  %852 = vmatpush.msra.mxu0 %v305
  %853 = vmatpush.msra.mxu0 %v304
  %854 = vmatpush.msra.mxu0 %v303
  %855 = vmatpush.msra.mxu0 %v302
  %856 = vmatpush.msra.mxu0 %v301
  %857 = vmatmul.f32.gmra.mxu0 %v37
  %v858 = vpop.f32.mrf.mxu0
  %v859 = vadd.f32 %v794, %v858
  %860 = vmatmul.f32.gmra.mxu0 %v46
  %v861 = vpop.f32.mrf.mxu0
  %v862 = vadd.f32 %v797, %v861
  %863 = vmatmul.f32.gmra.mxu0 %v55
  %v864 = vpop.f32.mrf.mxu0
  %v865 = vadd.f32 %v800, %v864
  %866 = vmatmul.f32.gmra.mxu0 %v64
  %v867 = vpop.f32.mrf.mxu0
  %v868 = vadd.f32 %v803, %v867
  %869 = vmatmul.f32.gmra.mxu0 %v73
  %v870 = vpop.f32.mrf.mxu0
  %v871 = vadd.f32 %v806, %v870
  %872 = vmatmul.f32.gmra.mxu0 %v82
  %v873 = vpop.f32.mrf.mxu0
  %v874 = vadd.f32 %v809, %v873
  %875 = vmatmul.f32.gmra.mxu0 %v91
  %v876 = vpop.f32.mrf.mxu0
  %v877 = vadd.f32 %v812, %v876
  %878 = vmatmul.f32.gmra.mxu0 %v100
  %v879 = vpop.f32.mrf.mxu0
  %v880 = vadd.f32 %v815, %v879
  %881 = vmatmul.f32.gmra.mxu0 %v109
  %v882 = vpop.f32.mrf.mxu0
  %v883 = vadd.f32 %v818, %v882
  %884 = vmatmul.f32.gmra.mxu0 %v118
  %v885 = vpop.f32.mrf.mxu0
  %v886 = vadd.f32 %v821, %v885
  %887 = vmatmul.f32.gmra.mxu0 %v127
  %v888 = vpop.f32.mrf.mxu0
  %v889 = vadd.f32 %v824, %v888
  %890 = vmatmul.f32.gmra.mxu0 %v136
  %v891 = vpop.f32.mrf.mxu0
  %v892 = vadd.f32 %v827, %v891
  %893 = vmatmul.f32.gmra.mxu0 %v145
  %v894 = vpop.f32.mrf.mxu0
  %v895 = vadd.f32 %v830, %v894
  %896 = vmatmul.f32.gmra.mxu0 %v154
  %v897 = vpop.f32.mrf.mxu0
  %v898 = vadd.f32 %v833, %v897
  %899 = vmatmul.f32.gmra.mxu0 %v163
  %v900 = vpop.f32.mrf.mxu0
  %v901 = vadd.f32 %v836, %v900
  %902 = vmatmul.f32.gmra.mxu0 %v172
  %v903 = vpop.f32.mrf.mxu0
  %v904 = vadd.f32 %v839, %v903
  %905 = vdwg.mxu0
  %v906 = vadd.f32 %v859, %v862
  %v907 = vadd.f32 %v906, %v865
  %v908 = vadd.f32 %v907, %v868
  %v909 = vadd.f32 %v908, %v871
  %v910 = vadd.f32 %v909, %v874
  %v911 = vadd.f32 %v910, %v877
  %v912 = vadd.f32 %v911, %v880
  %v913 = vadd.f32 %v912, %v883
  %v914 = vadd.f32 %v913, %v886
  %v915 = vadd.f32 %v914, %v889
  %v916 = vadd.f32 %v915, %v892
  %v917 = vadd.f32 %v916, %v895
  %v918 = vadd.f32 %v917, %v898
  %v919 = vadd.f32 %v918, %v901
  %v920 = vadd.f32 %v919, %v904
  %v921 = vrot.slane %v920, 4
  %v922 = vadd.f32 %v920, %v921
  %v923 = vrot.slane %v922, 2
  %v924 = vadd.f32 %v922, %v923
  %v925 = vrot.slane %v924, 1
  %v926 = vadd.f32 %v924, %v925
  %v927 = vrcp.pop 128.0
  %v928 = vmul.f32 128.0, %v927
  %v929 = vsub.f32 1.0, %v928
  %v930 = vmul.f32 %v927, %v929
  %v931 = vadd.f32 %v927, %v930
  %vm932 = vweird.f32 %v927
  %v933 = vsel %vm932, %v927, %v931
  %v934 = vmul.f32 %v926, %v933
  %v935 = vsub.f32 %v859, %v934
  %v936 = vsub.f32 %v862, %v934
  %v937 = vsub.f32 %v865, %v934
  %v938 = vsub.f32 %v868, %v934
  %v939 = vsub.f32 %v871, %v934
  %v940 = vsub.f32 %v874, %v934
  %v941 = vsub.f32 %v877, %v934
  %v942 = vsub.f32 %v880, %v934
  %v943 = vsub.f32 %v883, %v934
  %v944 = vsub.f32 %v886, %v934
  %v945 = vsub.f32 %v889, %v934
  %v946 = vsub.f32 %v892, %v934
  %v947 = vsub.f32 %v895, %v934
  %v948 = vsub.f32 %v898, %v934
  %v949 = vsub.f32 %v901, %v934
  %v950 = vsub.f32 %v904, %v934
  %v951 = vmul.f32 %v935, %v935
  %v952 = vmul.f32 %v936, %v936
  %v953 = vmul.f32 %v937, %v937
  %v954 = vmul.f32 %v938, %v938
  %v955 = vmul.f32 %v939, %v939
  %v956 = vmul.f32 %v940, %v940
  %v957 = vmul.f32 %v941, %v941
  %v958 = vmul.f32 %v942, %v942
  %v959 = vmul.f32 %v943, %v943
  %v960 = vmul.f32 %v944, %v944
  %v961 = vmul.f32 %v945, %v945
  %v962 = vmul.f32 %v946, %v946
  %v963 = vmul.f32 %v947, %v947
  %v964 = vmul.f32 %v948, %v948
  %v965 = vmul.f32 %v949, %v949
  %v966 = vmul.f32 %v950, %v950
  %v967 = vadd.f32 %v951, %v952
  %v968 = vadd.f32 %v967, %v953
  %v969 = vadd.f32 %v968, %v954
  %v970 = vadd.f32 %v969, %v955
  %v971 = vadd.f32 %v970, %v956
  %v972 = vadd.f32 %v971, %v957
  %v973 = vadd.f32 %v972, %v958
  %v974 = vadd.f32 %v973, %v959
  %v975 = vadd.f32 %v974, %v960
  %v976 = vadd.f32 %v975, %v961
  %v977 = vadd.f32 %v976, %v962
  %v978 = vadd.f32 %v977, %v963
  %v979 = vadd.f32 %v978, %v964
  %v980 = vadd.f32 %v979, %v965
  %v981 = vadd.f32 %v980, %v966
  %v982 = vrot.slane %v981, 4
  %v983 = vadd.f32 %v981, %v982
  %v984 = vrot.slane %v983, 2
  %v985 = vadd.f32 %v983, %v984
  %v986 = vrot.slane %v985, 1
  %v987 = vadd.f32 %v985, %v986
  %v988 = vmul.f32 %v987, %v933
  %v989 = vadd.f32 %v988, 1e-05
  %v990 = vrsqrt.pop %v989
  %v991 = vmul.f32 %v990, %v989
  %v992 = vmul.f32 %v991, %v990
  %v993 = vmul.f32 0.5, %v992
  %v994 = vsub.f32 1.5, %v993
  %v995 = vmul.f32 %v990, %v994
  %vm996 = vweird.f32 %v989
  %vm997 = vweird.f32 %v990
  %vm998 = vmor %vm996, %vm997
  %v999 = vsel %vm998, %v990, %v995
  %v1000 = vmul.f32 %v935, %v999
  %v1001 = vmul.f32 %v936, %v999
  %v1002 = vmul.f32 %v937, %v999
  %v1003 = vmul.f32 %v938, %v999
  %v1004 = vmul.f32 %v939, %v999
  %v1005 = vmul.f32 %v940, %v999
  %v1006 = vmul.f32 %v941, %v999
  %v1007 = vmul.f32 %v942, %v999
  %v1008 = vmul.f32 %v943, %v999
  %v1009 = vmul.f32 %v944, %v999
  %v1010 = vmul.f32 %v945, %v999
  %v1011 = vmul.f32 %v946, %v999
  %v1012 = vmul.f32 %v947, %v999
  %v1013 = vmul.f32 %v948, %v999
  %v1014 = vmul.f32 %v949, %v999
  %v1015 = vmul.f32 %v950, %v999
  %v1016 = vld [vmem:[%s3] sm:$0x1]
  %v1018 = vperm.slane %v1016, 0
  %v1020 = vmul.f32 %v1000, %v1018
  %v1021 = vmul.f32 %v1001, %v1018
  %v1022 = vmul.f32 %v1002, %v1018
  %v1023 = vmul.f32 %v1003, %v1018
  %v1024 = vmul.f32 %v1004, %v1018
  %v1025 = vmul.f32 %v1005, %v1018
  %v1026 = vmul.f32 %v1006, %v1018
  %v1027 = vmul.f32 %v1007, %v1018
  %v1028 = vmul.f32 %v1008, %v1018
  %v1029 = vmul.f32 %v1009, %v1018
  %v1030 = vmul.f32 %v1010, %v1018
  %v1031 = vmul.f32 %v1011, %v1018
  %v1032 = vmul.f32 %v1012, %v1018
  %v1033 = vmul.f32 %v1013, %v1018
  %v1034 = vmul.f32 %v1014, %v1018
  %v1035 = vmul.f32 %v1015, %v1018
  %v1036 = vld [vmem:[%s4] sm:$0x1]
  %v1038 = vperm.slane %v1036, 0
  %v1040 = vadd.f32 %v1020, %v1038
  %v1041 = vadd.f32 %v1021, %v1038
  %v1042 = vadd.f32 %v1022, %v1038
  %v1043 = vadd.f32 %v1023, %v1038
  %v1044 = vadd.f32 %v1024, %v1038
  %v1045 = vadd.f32 %v1025, %v1038
  %v1046 = vadd.f32 %v1026, %v1038
  %v1047 = vadd.f32 %v1027, %v1038
  %v1048 = vadd.f32 %v1028, %v1038
  %v1049 = vadd.f32 %v1029, %v1038
  %v1050 = vadd.f32 %v1030, %v1038
  %v1051 = vadd.f32 %v1031, %v1038
  %v1052 = vadd.f32 %v1032, %v1038
  %v1053 = vadd.f32 %v1033, %v1038
  %v1054 = vadd.f32 %v1034, %v1038
  %v1055 = vadd.f32 %v1035, %v1038
  %v1056 = vmax.f32 %v1040, 0.0
  %v1057 = vmax.f32 %v1041, 0.0
  %v1058 = vmax.f32 %v1042, 0.0
  %v1059 = vmax.f32 %v1043, 0.0
  %v1060 = vmax.f32 %v1044, 0.0
  %v1061 = vmax.f32 %v1045, 0.0
  %v1062 = vmax.f32 %v1046, 0.0
  %v1063 = vmax.f32 %v1047, 0.0
  %v1064 = vmax.f32 %v1048, 0.0
  %v1065 = vmax.f32 %v1049, 0.0
  %v1066 = vmax.f32 %v1050, 0.0
  %v1067 = vmax.f32 %v1051, 0.0
  %v1068 = vmax.f32 %v1052, 0.0
  %v1069 = vmax.f32 %v1053, 0.0
  %v1070 = vmax.f32 %v1054, 0.0
  %v1071 = vmax.f32 %v1055, 0.0
  %v1072 = vld [vmem:[%s5] sm:$0x3]
  %v1073 = vld [vmem:[%s6] sm:$0xff]
  %v1074 = vld [vmem:[%s6 + $0x8] sm:$0xff]
  %v1075 = vld [vmem:[%s6 + $0x10] sm:$0xff]
  %v1076 = vld [vmem:[%s6 + $0x18] sm:$0xff]
  %v1077 = vld [vmem:[%s7] sm:$0x1]
  %v1079 = vperm.slane %v1077, 0
  %vm1081 = vcmask 261120
  %v1083 = vsel %vm1081, %v1072, 0
  %1085 = vmatpush.msra.mxu0 0.0
  %1086 = vmatpush.msra.mxu0 0.0
  %1087 = vmatpush.msra.mxu0 0.0
  %1088 = vmatpush.msra.mxu0 0.0
  %1089 = vmatpush.msra.mxu0 0.0
  %1090 = vmatpush.msra.mxu0 0.0
  %1091 = vmatpush.msra.mxu0 0.0
  %1092 = vmatpush.msra.mxu0 0.0
  %1093 = vmatpush.msra.mxu0 0.0
  %1094 = vmatpush.msra.mxu0 0.0
  %1095 = vmatpush.msra.mxu0 0.0
  %1096 = vmatpush.msra.mxu0 0.0
  %1097 = vmatpush.msra.mxu0 %v1076
  %1098 = vmatpush.msra.mxu0 %v1075
  %1099 = vmatpush.msra.mxu0 %v1074
  %1100 = vmatpush.msra.mxu0 %v1073
  %1101 = vmatmul.f32.gmra.mxu0 %v1083
  %v1102 = vpop.f32.mrf.mxu0
  %v1103 = vadd.f32 %v1079, %v1102
  %1104 = vdwg.mxu0
  %v1106 = vrot.slane %v1103, 1
  %v1107 = vperm.slane %v1103, 0
  %v1108 = vperm.slane %v1106, 0
  %v1111 = vadd.f32 %v1056, %v1107
  %v1112 = vadd.f32 %v1057, %v1107
  %v1113 = vadd.f32 %v1058, %v1107
  %v1114 = vadd.f32 %v1059, %v1107
  %v1115 = vadd.f32 %v1060, %v1107
  %v1116 = vadd.f32 %v1061, %v1107
  %v1117 = vadd.f32 %v1062, %v1107
  %v1118 = vadd.f32 %v1063, %v1107
  %v1119 = vadd.f32 %v1064, %v1108
  %v1120 = vadd.f32 %v1065, %v1108
  %v1121 = vadd.f32 %v1066, %v1108
  %v1122 = vadd.f32 %v1067, %v1108
  %v1123 = vadd.f32 %v1068, %v1108
  %v1124 = vadd.f32 %v1069, %v1108
  %v1125 = vadd.f32 %v1070, %v1108
  %v1126 = vadd.f32 %v1071, %v1108
  %1127 = vst [vmem:[%s8] sm:$0xff] %v1111
  %1128 = vst [vmem:[%s8 + $0x8] sm:$0xff] %v1112
  %1129 = vst [vmem:[%s8 + $0x10] sm:$0xff] %v1113
  %1130 = vst [vmem:[%s8 + $0x18] sm:$0xff] %v1114
  %1131 = vst [vmem:[%s8 + $0x20] sm:$0xff] %v1115
  %1132 = vst [vmem:[%s8 + $0x28] sm:$0xff] %v1116
  %1133 = vst [vmem:[%s8 + $0x30] sm:$0xff] %v1117
  %1134 = vst [vmem:[%s8 + $0x38] sm:$0xff] %v1118
  %1135 = vst [vmem:[%s8 + $0x40] sm:$0xff] %v1119
  %1136 = vst [vmem:[%s8 + $0x48] sm:$0xff] %v1120
  %1137 = vst [vmem:[%s8 + $0x50] sm:$0xff] %v1121
  %1138 = vst [vmem:[%s8 + $0x58] sm:$0xff] %v1122
  %1139 = vst [vmem:[%s8 + $0x60] sm:$0xff] %v1123
  %1140 = vst [vmem:[%s8 + $0x68] sm:$0xff] %v1124
  %1141 = vst [vmem:[%s8 + $0x70] sm:$0xff] %v1125
  %1142 = vst [vmem:[%s8 + $0x78] sm:$0xff] %v1126
  // Predicated region
  $region34: #{noisy_classifier_forward.5} parent=0 // pred_check
    _
  $region35: #{noisy_classifier_forward.5} parent=0 // pred_check_branch
    %1144 = sbr.rel (0) target = $region37
  $region36: #{noisy_classifier_forward.5} parent=0 // pred_region
    _
  $region37: #{noisy_classifier_forward.5} parent=0 // pred_fallthru
    _
  // Predicated region
  $region38: #{noisy_classifier_forward.5} parent=0 // pred_check
    _
  $region39: #{noisy_classifier_forward.5} parent=0 // pred_check_branch
    %1146 = sbr.rel (0) target = $region41
  $region40: #{noisy_classifier_forward.5} parent=0 // pred_region
    _
  $region41: #{noisy_classifier_forward.5} parent=0 // pred_fallthru
    _

// kernel: noisy_classifier_forward.7
$region0: #{noisy_classifier_forward.7}
  #allocation0 [shape = 'u32[]', space=smem, size = 0x4, offset = 0x4, fixed_abs, tag = 'smem constant byte address 0x4 - core index']
  #allocation1 [shape = 'u32[72,128]{1,0:T(1,128)}', space=vmem, size = 0x9000, scoped, tag = 'internal scratch']
  %s0 = inlined_call_operand.vmem [shape: f32[2,16,128], index: 0, kind: input, shape index: {}]
  %s1 = inlined_call_operand.vmem [shape: f32[128,128], index: 1, kind: input, shape index: {}]
  %s2 = inlined_call_operand.vmem [shape: f32[1,128], index: 2, kind: input, shape index: {}]
  %s3 = inlined_call_operand.hbm [shape: f32[2,128], index: 3, kind: output, shape index: {}]
  %s4 = sld [smem:[#allocation0]]
  $region22: #{noisy_classifier_forward.7} parent=0
    _
  %s6 = ssub.s32 1, %s4
  %s7 = scalar_select 0, %s6, %s4
  $region1: #{noisy_classifier_forward.7} parent=0
    #allocation2 [shape = 'u8[1024]{0}', space=vmem, size = 0x400, scoped, tag = 'output window, operand 0, single buffered']
    #allocation3 [shape = 's32[1]{0}', space=sflag, size = 0x4, scoped, tag = 'scoped memory for noisy_classifier_forward.7']
    %8 = vsyncpa [#allocation3], 0
    // Predicated region
    $region2: #{noisy_classifier_forward.7} parent=1 // pred_check
      _
    $region3: #{noisy_classifier_forward.7} parent=1 // pred_check_branch
      %10 = sbr.rel (0) target = $region5
    $region4: #{noisy_classifier_forward.7} parent=1 // pred_region
      _
    $region5: #{noisy_classifier_forward.7} parent=1 // pred_fallthru
      _
    // Predicated region
    $region6: #{noisy_classifier_forward.7} parent=1 // pred_check
      _
    $region7: #{noisy_classifier_forward.7} parent=1 // pred_check_branch
      %12 = sbr.rel (0) target = $region9
    $region8: #{noisy_classifier_forward.7} parent=1 // pred_region
      _
    $region9: #{noisy_classifier_forward.7} parent=1 // pred_fallthru
      _
    // Predicated region
    $region10: #{noisy_classifier_forward.7} parent=1 // pred_check
      _
    $region11: #{noisy_classifier_forward.7} parent=1 // pred_check_branch
      %14 = sbr.rel (0) target = $region13
    $region12: #{noisy_classifier_forward.7} parent=1 // pred_region
      _
    $region13: #{noisy_classifier_forward.7} parent=1 // pred_fallthru
      _
    %v15 = vld [vmem:[%s0] sm:$0xff]
    %v16 = vld [vmem:[%s0 + $0x8] sm:$0xff]
    %v17 = vld [vmem:[%s0 + $0x10] sm:$0xff]
    %v18 = vld [vmem:[%s0 + $0x18] sm:$0xff]
    %v19 = vadd.f32 %v15, %v16
    %v20 = vrot.slane %v19, 4
    %v21 = vadd.f32 %v19, %v20
    %v22 = vrot.slane %v21, 2
    %v23 = vadd.f32 %v21, %v22
    %v24 = vrot.slane %v23, 1
    %v25 = vadd.f32 %v23, %v24
    %v26 = vadd.f32 %v17, %v18
    %v27 = vrot.slane %v26, 4
    %v28 = vadd.f32 %v26, %v27
    %v29 = vrot.slane %v28, 2
    %v30 = vadd.f32 %v28, %v29
    %v31 = vrot.slane %v30, 1
    %v32 = vadd.f32 %v30, %v31
    %v33 = vrcp.pop 16.0
    %v34 = vmul.f32 16.0, %v33
    %v35 = vsub.f32 1.0, %v34
    %v36 = vmul.f32 %v33, %v35
    %v37 = vadd.f32 %v33, %v36
    %vm38 = vweird.f32 %v33
    %v39 = vsel %vm38, %v33, %v37
    %v40 = vmul.f32 %v25, %v39
    %v41 = vmul.f32 %v32, %v39
    %v42 = vld [vmem:[%s1] sm:$0xff]
    %v43 = vld [vmem:[%s1 + $0x8] sm:$0xff]
    %v44 = vld [vmem:[%s1 + $0x10] sm:$0xff]
    %v45 = vld [vmem:[%s1 + $0x18] sm:$0xff]
    %v46 = vld [vmem:[%s1 + $0x20] sm:$0xff]
    %v47 = vld [vmem:[%s1 + $0x28] sm:$0xff]
    %v48 = vld [vmem:[%s1 + $0x30] sm:$0xff]
    %v49 = vld [vmem:[%s1 + $0x38] sm:$0xff]
    %v50 = vld [vmem:[%s1 + $0x40] sm:$0xff]
    %v51 = vld [vmem:[%s1 + $0x48] sm:$0xff]
    %v52 = vld [vmem:[%s1 + $0x50] sm:$0xff]
    %v53 = vld [vmem:[%s1 + $0x58] sm:$0xff]
    %v54 = vld [vmem:[%s1 + $0x60] sm:$0xff]
    %v55 = vld [vmem:[%s1 + $0x68] sm:$0xff]
    %v56 = vld [vmem:[%s1 + $0x70] sm:$0xff]
    %v57 = vld [vmem:[%s1 + $0x78] sm:$0xff]
    %v58 = vld [vmem:[%s2] sm:$0x1]
    %v60 = vperm.slane %v58, 0
    %vm64 = vcmask 1041409
    %v65 = vsel %vm64, %v41, %v40
    %67 = vmatpush.msra.mxu0 %v57
    %68 = vmatpush.msra.mxu0 %v56
    %69 = vmatpush.msra.mxu0 %v55
    %70 = vmatpush.msra.mxu0 %v54
    %71 = vmatpush.msra.mxu0 %v53
    %72 = vmatpush.msra.mxu0 %v52
    %73 = vmatpush.msra.mxu0 %v51
    %74 = vmatpush.msra.mxu0 %v50
    %75 = vmatpush.msra.mxu0 %v49
    %76 = vmatpush.msra.mxu0 %v48
    %77 = vmatpush.msra.mxu0 %v47
    %78 = vmatpush.msra.mxu0 %v46
    %79 = vmatpush.msra.mxu0 %v45
    %80 = vmatpush.msra.mxu0 %v44
    %81 = vmatpush.msra.mxu0 %v43
    %82 = vmatpush.msra.mxu0 %v42
    %83 = vmatmul.f32.gmra.mxu0 %v65
    %v84 = vpop.f32.mrf.mxu0
    %v85 = vadd.f32 %v60, %v84
    %86 = vdwg.mxu0
    %87 = vst [vmem:[#allocation2] sm:$0x3] %v85
    // Predicated region
    $region14: #{noisy_classifier_forward.7} parent=1 // pred_check
      _
    $region15: #{noisy_classifier_forward.7} parent=1 // pred_check_branch
      %89 = sbr.rel (0) target = $region17
    $region16: #{noisy_classifier_forward.7} parent=1 // pred_region
      %91 = vsyncadd [#allocation3], 0
      %s93 = sshll.u32 [#allocation2], 4
      %s94 = int_to_ptr.vmem [resolvable:$true] %s93
      %s95 = sshll.u32 %s3, 4
      %s96 = int_to_ptr.hbm [resolvable:$true] %s95
      %98 = dma.vmem_to_hbm [thread:$0]  %s94, 32, %s96, [#allocation3]
    $region17: #{noisy_classifier_forward.7} parent=1 // pred_fallthru
      _
    // Predicated region
    $region18: #{noisy_classifier_forward.7} parent=1 // pred_check
      _
    $region19: #{noisy_classifier_forward.7} parent=1 // pred_check_branch
      %100 = sbr.rel (0) target = $region21
    $region20: #{noisy_classifier_forward.7} parent=1 // pred_region
      %102 = dma.done [#allocation3], 32
    $region21: #{noisy_classifier_forward.7} parent=1 // pred_fallthru
      _
    %103 = vsyncpa [#allocation3], 1

// kernel: noisy_classifier_forward.6
$region0: #{noisy_classifier_forward.6}
  #allocation0 [shape = 'u32[]', space=smem, size = 0x4, offset = 0x4, fixed_abs, tag = 'smem constant byte address 0x4 - core index']
  #allocation1 [shape = 'u32[72,128]{1,0:T(1,128)}', space=vmem, size = 0x9000, scoped, tag = 'internal scratch']
  %s0 = inlined_call_operand.vmem [shape: f32[32,1152], index: 0, kind: input, shape index: {}]
  %s1 = inlined_call_operand.vmem [shape: f32[1152,128], index: 1, kind: input, shape index: {}]
  %s2 = inlined_call_operand.vmem [shape: f32[1,128], index: 2, kind: input, shape index: {}]
  %s3 = inlined_call_operand.vmem [shape: f32[1,128], index: 3, kind: input, shape index: {}]
  %s4 = inlined_call_operand.vmem [shape: f32[1,128], index: 4, kind: input, shape index: {}]
  %s5 = inlined_call_operand.vmem [shape: f32[2,32], index: 5, kind: input, shape index: {}]
  %s6 = inlined_call_operand.vmem [shape: f32[32,128], index: 6, kind: input, shape index: {}]
  %s7 = inlined_call_operand.vmem [shape: f32[1,128], index: 7, kind: input, shape index: {}]
  %s8 = inlined_call_operand.vmem [shape: f32[2,16,128], index: 8, kind: output, shape index: {}]
  %s9 = sld [smem:[#allocation0]]
  $region42: #{noisy_classifier_forward.6} parent=0
    _
  %s11 = ssub.s32 1, %s9
  %s12 = scalar_select 0, %s11, %s9
  // Predicated region
  $region2: #{noisy_classifier_forward.6} parent=0 // pred_check
    _
  $region3: #{noisy_classifier_forward.6} parent=0 // pred_check_branch
    %14 = sbr.rel (0) target = $region5
  $region4: #{noisy_classifier_forward.6} parent=0 // pred_region
    _
  $region5: #{noisy_classifier_forward.6} parent=0 // pred_fallthru
    _
  // Predicated region
  $region6: #{noisy_classifier_forward.6} parent=0 // pred_check
    _
  $region7: #{noisy_classifier_forward.6} parent=0 // pred_check_branch
    %16 = sbr.rel (0) target = $region9
  $region8: #{noisy_classifier_forward.6} parent=0 // pred_region
    _
  $region9: #{noisy_classifier_forward.6} parent=0 // pred_fallthru
    _
  // Predicated region
  $region10: #{noisy_classifier_forward.6} parent=0 // pred_check
    _
  $region11: #{noisy_classifier_forward.6} parent=0 // pred_check_branch
    %18 = sbr.rel (0) target = $region13
  $region12: #{noisy_classifier_forward.6} parent=0 // pred_region
    _
  $region13: #{noisy_classifier_forward.6} parent=0 // pred_fallthru
    _
  // Predicated region
  $region14: #{noisy_classifier_forward.6} parent=0 // pred_check
    _
  $region15: #{noisy_classifier_forward.6} parent=0 // pred_check_branch
    %20 = sbr.rel (0) target = $region17
  $region16: #{noisy_classifier_forward.6} parent=0 // pred_region
    _
  $region17: #{noisy_classifier_forward.6} parent=0 // pred_fallthru
    _
  // Predicated region
  $region18: #{noisy_classifier_forward.6} parent=0 // pred_check
    _
  $region19: #{noisy_classifier_forward.6} parent=0 // pred_check_branch
    %22 = sbr.rel (0) target = $region21
  $region20: #{noisy_classifier_forward.6} parent=0 // pred_region
    _
  $region21: #{noisy_classifier_forward.6} parent=0 // pred_fallthru
    _
  // Predicated region
  $region22: #{noisy_classifier_forward.6} parent=0 // pred_check
    _
  $region23: #{noisy_classifier_forward.6} parent=0 // pred_check_branch
    %24 = sbr.rel (0) target = $region25
  $region24: #{noisy_classifier_forward.6} parent=0 // pred_region
    _
  $region25: #{noisy_classifier_forward.6} parent=0 // pred_fallthru
    _
  // Predicated region
  $region26: #{noisy_classifier_forward.6} parent=0 // pred_check
    _
  $region27: #{noisy_classifier_forward.6} parent=0 // pred_check_branch
    %26 = sbr.rel (0) target = $region29
  $region28: #{noisy_classifier_forward.6} parent=0 // pred_region
    _
  $region29: #{noisy_classifier_forward.6} parent=0 // pred_fallthru
    _
  // Predicated region
  $region30: #{noisy_classifier_forward.6} parent=0 // pred_check
    _
  $region31: #{noisy_classifier_forward.6} parent=0 // pred_check_branch
    %28 = sbr.rel (0) target = $region33
  $region32: #{noisy_classifier_forward.6} parent=0 // pred_region
    _
  $region33: #{noisy_classifier_forward.6} parent=0 // pred_fallthru
    _
  %v29 = vld [vmem:[%s0] sm:$0xff]
  %v30 = vld [vmem:[%s0 + $0x8] sm:$0xff]
  %v31 = vld [vmem:[%s0 + $0x10] sm:$0xff]
  %v32 = vld [vmem:[%s0 + $0x18] sm:$0xff]
  %v33 = vld [vmem:[%s0 + $0x20] sm:$0xff]
  %v34 = vld [vmem:[%s0 + $0x28] sm:$0xff]
  %v35 = vld [vmem:[%s0 + $0x30] sm:$0xff]
  %v36 = vld [vmem:[%s0 + $0x38] sm:$0xff]
  %v37 = vld [vmem:[%s0 + $0x40] sm:$0xff]
  %v38 = vld [vmem:[%s0 + $0x48] sm:$0xff]
  %v39 = vld [vmem:[%s0 + $0x50] sm:$0xff]
  %v40 = vld [vmem:[%s0 + $0x58] sm:$0xff]
  %v41 = vld [vmem:[%s0 + $0x60] sm:$0xff]
  %v42 = vld [vmem:[%s0 + $0x68] sm:$0xff]
  %v43 = vld [vmem:[%s0 + $0x70] sm:$0xff]
  %v44 = vld [vmem:[%s0 + $0x78] sm:$0xff]
  %v45 = vld [vmem:[%s0 + $0x80] sm:$0xff]
  %v46 = vld [vmem:[%s0 + $0x88] sm:$0xff]
  %v47 = vld [vmem:[%s0 + $0x90] sm:$0xff]
  %v48 = vld [vmem:[%s0 + $0x98] sm:$0xff]
  %v49 = vld [vmem:[%s0 + $0xa0] sm:$0xff]
  %v50 = vld [vmem:[%s0 + $0xa8] sm:$0xff]
  %v51 = vld [vmem:[%s0 + $0xb0] sm:$0xff]
  %v52 = vld [vmem:[%s0 + $0xb8] sm:$0xff]
  %v53 = vld [vmem:[%s0 + $0xc0] sm:$0xff]
  %v54 = vld [vmem:[%s0 + $0xc8] sm:$0xff]
  %v55 = vld [vmem:[%s0 + $0xd0] sm:$0xff]
  %v56 = vld [vmem:[%s0 + $0xd8] sm:$0xff]
  %v57 = vld [vmem:[%s0 + $0xe0] sm:$0xff]
  %v58 = vld [vmem:[%s0 + $0xe8] sm:$0xff]
  %v59 = vld [vmem:[%s0 + $0xf0] sm:$0xff]
  %v60 = vld [vmem:[%s0 + $0xf8] sm:$0xff]
  %v61 = vld [vmem:[%s0 + $0x100] sm:$0xff]
  %v62 = vld [vmem:[%s0 + $0x108] sm:$0xff]
  %v63 = vld [vmem:[%s0 + $0x110] sm:$0xff]
  %v64 = vld [vmem:[%s0 + $0x118] sm:$0xff]
  %v65 = vld [vmem:[%s1] sm:$0xff]
  %v66 = vld [vmem:[%s1 + $0x8] sm:$0xff]
  %v67 = vld [vmem:[%s1 + $0x10] sm:$0xff]
  %v68 = vld [vmem:[%s1 + $0x18] sm:$0xff]
  %v69 = vld [vmem:[%s1 + $0x20] sm:$0xff]
  %v70 = vld [vmem:[%s1 + $0x28] sm:$0xff]
  %v71 = vld [vmem:[%s1 + $0x30] sm:$0xff]
  %v72 = vld [vmem:[%s1 + $0x38] sm:$0xff]
  %v73 = vld [vmem:[%s1 + $0x40] sm:$0xff]
  %v74 = vld [vmem:[%s1 + $0x48] sm:$0xff]
  %v75 = vld [vmem:[%s1 + $0x50] sm:$0xff]
  %v76 = vld [vmem:[%s1 + $0x58] sm:$0xff]
  %v77 = vld [vmem:[%s1 + $0x60] sm:$0xff]
  %v78 = vld [vmem:[%s1 + $0x68] sm:$0xff]
  %v79 = vld [vmem:[%s1 + $0x70] sm:$0xff]
  %v80 = vld [vmem:[%s1 + $0x78] sm:$0xff]
  %v81 = vld [vmem:[%s1 + $0x80] sm:$0xff]
  %v82 = vld [vmem:[%s1 + $0x88] sm:$0xff]
  %v83 = vld [vmem:[%s1 + $0x90] sm:$0xff]
  %v84 = vld [vmem:[%s1 + $0x98] sm:$0xff]
  %v85 = vld [vmem:[%s1 + $0xa0] sm:$0xff]
  %v86 = vld [vmem:[%s1 + $0xa8] sm:$0xff]
  %v87 = vld [vmem:[%s1 + $0xb0] sm:$0xff]
  %v88 = vld [vmem:[%s1 + $0xb8] sm:$0xff]
  %v89 = vld [vmem:[%s1 + $0xc0] sm:$0xff]
  %v90 = vld [vmem:[%s1 + $0xc8] sm:$0xff]
  %v91 = vld [vmem:[%s1 + $0xd0] sm:$0xff]
  %v92 = vld [vmem:[%s1 + $0xd8] sm:$0xff]
  %v93 = vld [vmem:[%s1 + $0xe0] sm:$0xff]
  %v94 = vld [vmem:[%s1 + $0xe8] sm:$0xff]
  %v95 = vld [vmem:[%s1 + $0xf0] sm:$0xff]
  %v96 = vld [vmem:[%s1 + $0xf8] sm:$0xff]
  %v97 = vld [vmem:[%s1 + $0x100] sm:$0xff]
  %v98 = vld [vmem:[%s1 + $0x108] sm:$0xff]
  %v99 = vld [vmem:[%s1 + $0x110] sm:$0xff]
  %v100 = vld [vmem:[%s1 + $0x118] sm:$0xff]
  %v101 = vld [vmem:[%s1 + $0x120] sm:$0xff]
  %v102 = vld [vmem:[%s1 + $0x128] sm:$0xff]
  %v103 = vld [vmem:[%s1 + $0x130] sm:$0xff]
  %v104 = vld [vmem:[%s1 + $0x138] sm:$0xff]
  %v105 = vld [vmem:[%s1 + $0x140] sm:$0xff]
  %v106 = vld [vmem:[%s1 + $0x148] sm:$0xff]
  %v107 = vld [vmem:[%s1 + $0x150] sm:$0xff]
  %v108 = vld [vmem:[%s1 + $0x158] sm:$0xff]
  %v109 = vld [vmem:[%s1 + $0x160] sm:$0xff]
  %v110 = vld [vmem:[%s1 + $0x168] sm:$0xff]
  %v111 = vld [vmem:[%s1 + $0x170] sm:$0xff]
  %v112 = vld [vmem:[%s1 + $0x178] sm:$0xff]
  %v113 = vld [vmem:[%s1 + $0x180] sm:$0xff]
  %v114 = vld [vmem:[%s1 + $0x188] sm:$0xff]
  %v115 = vld [vmem:[%s1 + $0x190] sm:$0xff]
  %v116 = vld [vmem:[%s1 + $0x198] sm:$0xff]
  %v117 = vld [vmem:[%s1 + $0x1a0] sm:$0xff]
  %v118 = vld [vmem:[%s1 + $0x1a8] sm:$0xff]
  %v119 = vld [vmem:[%s1 + $0x1b0] sm:$0xff]
  %v120 = vld [vmem:[%s1 + $0x1b8] sm:$0xff]
  %v121 = vld [vmem:[%s1 + $0x1c0] sm:$0xff]
  %v122 = vld [vmem:[%s1 + $0x1c8] sm:$0xff]
  %v123 = vld [vmem:[%s1 + $0x1d0] sm:$0xff]
  %v124 = vld [vmem:[%s1 + $0x1d8] sm:$0xff]
  %v125 = vld [vmem:[%s1 + $0x1e0] sm:$0xff]
  %v126 = vld [vmem:[%s1 + $0x1e8] sm:$0xff]
  %v127 = vld [vmem:[%s1 + $0x1f0] sm:$0xff]
  %v128 = vld [vmem:[%s1 + $0x1f8] sm:$0xff]
  %v129 = vld [vmem:[%s1 + $0x200] sm:$0xff]
  %v130 = vld [vmem:[%s1 + $0x208] sm:$0xff]
  %v131 = vld [vmem:[%s1 + $0x210] sm:$0xff]
  %v132 = vld [vmem:[%s1 + $0x218] sm:$0xff]
  %v133 = vld [vmem:[%s1 + $0x220] sm:$0xff]
  %v134 = vld [vmem:[%s1 + $0x228] sm:$0xff]
  %v135 = vld [vmem:[%s1 + $0x230] sm:$0xff]
  %v136 = vld [vmem:[%s1 + $0x238] sm:$0xff]
  %v137 = vld [vmem:[%s1 + $0x240] sm:$0xff]
  %v138 = vld [vmem:[%s1 + $0x248] sm:$0xff]
  %v139 = vld [vmem:[%s1 + $0x250] sm:$0xff]
  %v140 = vld [vmem:[%s1 + $0x258] sm:$0xff]
  %v141 = vld [vmem:[%s1 + $0x260] sm:$0xff]
  %v142 = vld [vmem:[%s1 + $0x268] sm:$0xff]
  %v143 = vld [vmem:[%s1 + $0x270] sm:$0xff]
  %v144 = vld [vmem:[%s1 + $0x278] sm:$0xff]
  %v145 = vld [vmem:[%s1 + $0x280] sm:$0xff]
  %v146 = vld [vmem:[%s1 + $0x288] sm:$0xff]
  %v147 = vld [vmem:[%s1 + $0x290] sm:$0xff]
  %v148 = vld [vmem:[%s1 + $0x298] sm:$0xff]
  %v149 = vld [vmem:[%s1 + $0x2a0] sm:$0xff]
  %v150 = vld [vmem:[%s1 + $0x2a8] sm:$0xff]
  %v151 = vld [vmem:[%s1 + $0x2b0] sm:$0xff]
  %v152 = vld [vmem:[%s1 + $0x2b8] sm:$0xff]
  %v153 = vld [vmem:[%s1 + $0x2c0] sm:$0xff]
  %v154 = vld [vmem:[%s1 + $0x2c8] sm:$0xff]
  %v155 = vld [vmem:[%s1 + $0x2d0] sm:$0xff]
  %v156 = vld [vmem:[%s1 + $0x2d8] sm:$0xff]
  %v157 = vld [vmem:[%s1 + $0x2e0] sm:$0xff]
  %v158 = vld [vmem:[%s1 + $0x2e8] sm:$0xff]
  %v159 = vld [vmem:[%s1 + $0x2f0] sm:$0xff]
  %v160 = vld [vmem:[%s1 + $0x2f8] sm:$0xff]
  %v161 = vld [vmem:[%s1 + $0x300] sm:$0xff]
  %v162 = vld [vmem:[%s1 + $0x308] sm:$0xff]
  %v163 = vld [vmem:[%s1 + $0x310] sm:$0xff]
  %v164 = vld [vmem:[%s1 + $0x318] sm:$0xff]
  %v165 = vld [vmem:[%s1 + $0x320] sm:$0xff]
  %v166 = vld [vmem:[%s1 + $0x328] sm:$0xff]
  %v167 = vld [vmem:[%s1 + $0x330] sm:$0xff]
  %v168 = vld [vmem:[%s1 + $0x338] sm:$0xff]
  %v169 = vld [vmem:[%s1 + $0x340] sm:$0xff]
  %v170 = vld [vmem:[%s1 + $0x348] sm:$0xff]
  %v171 = vld [vmem:[%s1 + $0x350] sm:$0xff]
  %v172 = vld [vmem:[%s1 + $0x358] sm:$0xff]
  %v173 = vld [vmem:[%s1 + $0x360] sm:$0xff]
  %v174 = vld [vmem:[%s1 + $0x368] sm:$0xff]
  %v175 = vld [vmem:[%s1 + $0x370] sm:$0xff]
  %v176 = vld [vmem:[%s1 + $0x378] sm:$0xff]
  %v177 = vld [vmem:[%s1 + $0x380] sm:$0xff]
  %v178 = vld [vmem:[%s1 + $0x388] sm:$0xff]
  %v179 = vld [vmem:[%s1 + $0x390] sm:$0xff]
  %v180 = vld [vmem:[%s1 + $0x398] sm:$0xff]
  %v181 = vld [vmem:[%s1 + $0x3a0] sm:$0xff]
  %v182 = vld [vmem:[%s1 + $0x3a8] sm:$0xff]
  %v183 = vld [vmem:[%s1 + $0x3b0] sm:$0xff]
  %v184 = vld [vmem:[%s1 + $0x3b8] sm:$0xff]
  %v185 = vld [vmem:[%s1 + $0x3c0] sm:$0xff]
  %v186 = vld [vmem:[%s1 + $0x3c8] sm:$0xff]
  %v187 = vld [vmem:[%s1 + $0x3d0] sm:$0xff]
  %v188 = vld [vmem:[%s1 + $0x3d8] sm:$0xff]
  %v189 = vld [vmem:[%s1 + $0x3e0] sm:$0xff]
  %v190 = vld [vmem:[%s1 + $0x3e8] sm:$0xff]
  %v191 = vld [vmem:[%s1 + $0x3f0] sm:$0xff]
  %v192 = vld [vmem:[%s1 + $0x3f8] sm:$0xff]
  %v193 = vld [vmem:[%s1 + $0x400] sm:$0xff]
  %v194 = vld [vmem:[%s1 + $0x408] sm:$0xff]
  %v195 = vld [vmem:[%s1 + $0x410] sm:$0xff]
  %v196 = vld [vmem:[%s1 + $0x418] sm:$0xff]
  %v197 = vld [vmem:[%s1 + $0x420] sm:$0xff]
  %v198 = vld [vmem:[%s1 + $0x428] sm:$0xff]
  %v199 = vld [vmem:[%s1 + $0x430] sm:$0xff]
  %v200 = vld [vmem:[%s1 + $0x438] sm:$0xff]
  %v201 = vld [vmem:[%s1 + $0x440] sm:$0xff]
  %v202 = vld [vmem:[%s1 + $0x448] sm:$0xff]
  %v203 = vld [vmem:[%s1 + $0x450] sm:$0xff]
  %v204 = vld [vmem:[%s1 + $0x458] sm:$0xff]
  %v205 = vld [vmem:[%s1 + $0x460] sm:$0xff]
  %v206 = vld [vmem:[%s1 + $0x468] sm:$0xff]
  %v207 = vld [vmem:[%s1 + $0x470] sm:$0xff]
  %v208 = vld [vmem:[%s1 + $0x478] sm:$0xff]
  %v209 = vld [vmem:[%s2] sm:$0x1]
  %v211 = vperm.slane %v209, 0
  %213 = vmatpush.msra.mxu0 %v80
  %214 = vmatpush.msra.mxu0 %v79
  %215 = vmatpush.msra.mxu0 %v78
  %216 = vmatpush.msra.mxu0 %v77
  %217 = vmatpush.msra.mxu0 %v76
  %218 = vmatpush.msra.mxu0 %v75
  %219 = vmatpush.msra.mxu0 %v74
  %220 = vmatpush.msra.mxu0 %v73
  %221 = vmatpush.msra.mxu0 %v72
  %222 = vmatpush.msra.mxu0 %v71
  %223 = vmatpush.msra.mxu0 %v70
  %224 = vmatpush.msra.mxu0 %v69
  %225 = vmatpush.msra.mxu0 %v68
  %226 = vmatpush.msra.mxu0 %v67
  %227 = vmatpush.msra.mxu0 %v66
  %228 = vmatpush.msra.mxu0 %v65
  %229 = vmatmul.f32.gmra.mxu0 %v29
  %v230 = vpop.f32.mrf.mxu0
  %v231 = vadd.f32 %v211, %v230
  %232 = vmatmul.f32.gmra.mxu0 %v38
  %v233 = vpop.f32.mrf.mxu0
  %v234 = vadd.f32 %v211, %v233
  %235 = vmatmul.f32.gmra.mxu0 %v47
  %v236 = vpop.f32.mrf.mxu0
  %v237 = vadd.f32 %v211, %v236
  %238 = vmatmul.f32.gmra.mxu0 %v56
  %v239 = vpop.f32.mrf.mxu0
  %v240 = vadd.f32 %v211, %v239
  %241 = vdwg.mxu0
  %242 = vmatpush.msra.mxu0 %v96
  %243 = vmatpush.msra.mxu0 %v95
  %244 = vmatpush.msra.mxu0 %v94
  %245 = vmatpush.msra.mxu0 %v93
  %246 = vmatpush.msra.mxu0 %v92
  %247 = vmatpush.msra.mxu0 %v91
  %248 = vmatpush.msra.mxu0 %v90
  %249 = vmatpush.msra.mxu0 %v89
  %250 = vmatpush.msra.mxu0 %v88
  %251 = vmatpush.msra.mxu0 %v87
  %252 = vmatpush.msra.mxu0 %v86
  %253 = vmatpush.msra.mxu0 %v85
  %254 = vmatpush.msra.mxu0 %v84
  %255 = vmatpush.msra.mxu0 %v83
  %256 = vmatpush.msra.mxu0 %v82
  %257 = vmatpush.msra.mxu0 %v81
  %258 = vmatmul.f32.gmra.mxu0 %v30
  %v259 = vpop.f32.mrf.mxu0
  %v260 = vadd.f32 %v231, %v259
  %261 = vmatmul.f32.gmra.mxu0 %v39
  %v262 = vpop.f32.mrf.mxu0
  %v263 = vadd.f32 %v234, %v262
  %264 = vmatmul.f32.gmra.mxu0 %v48
  %v265 = vpop.f32.mrf.mxu0
  %v266 = vadd.f32 %v237, %v265
  %267 = vmatmul.f32.gmra.mxu0 %v57
  %v268 = vpop.f32.mrf.mxu0
  %v269 = vadd.f32 %v240, %v268
  %270 = vdwg.mxu0
  %271 = vmatpush.msra.mxu0 %v112
  %272 = vmatpush.msra.mxu0 %v111
  %273 = vmatpush.msra.mxu0 %v110
  %274 = vmatpush.msra.mxu0 %v109
  %275 = vmatpush.msra.mxu0 %v108
  %276 = vmatpush.msra.mxu0 %v107
  %277 = vmatpush.msra.mxu0 %v106
  %278 = vmatpush.msra.mxu0 %v105
  %279 = vmatpush.msra.mxu0 %v104
  %280 = vmatpush.msra.mxu0 %v103
  %281 = vmatpush.msra.mxu0 %v102
  %282 = vmatpush.msra.mxu0 %v101
  %283 = vmatpush.msra.mxu0 %v100
  %284 = vmatpush.msra.mxu0 %v99
  %285 = vmatpush.msra.mxu0 %v98
  %286 = vmatpush.msra.mxu0 %v97
  %287 = vmatmul.f32.gmra.mxu0 %v31
  %v288 = vpop.f32.mrf.mxu0
  %v289 = vadd.f32 %v260, %v288
  %290 = vmatmul.f32.gmra.mxu0 %v40
  %v291 = vpop.f32.mrf.mxu0
  %v292 = vadd.f32 %v263, %v291
  %293 = vmatmul.f32.gmra.mxu0 %v49
  %v294 = vpop.f32.mrf.mxu0
  %v295 = vadd.f32 %v266, %v294
  %296 = vmatmul.f32.gmra.mxu0 %v58
  %v297 = vpop.f32.mrf.mxu0
  %v298 = vadd.f32 %v269, %v297
  %299 = vdwg.mxu0
  %300 = vmatpush.msra.mxu0 %v128
  %301 = vmatpush.msra.mxu0 %v127
  %302 = vmatpush.msra.mxu0 %v126
  %303 = vmatpush.msra.mxu0 %v125
  %304 = vmatpush.msra.mxu0 %v124
  %305 = vmatpush.msra.mxu0 %v123
  %306 = vmatpush.msra.mxu0 %v122
  %307 = vmatpush.msra.mxu0 %v121
  %308 = vmatpush.msra.mxu0 %v120
  %309 = vmatpush.msra.mxu0 %v119
  %310 = vmatpush.msra.mxu0 %v118
  %311 = vmatpush.msra.mxu0 %v117
  %312 = vmatpush.msra.mxu0 %v116
  %313 = vmatpush.msra.mxu0 %v115
  %314 = vmatpush.msra.mxu0 %v114
  %315 = vmatpush.msra.mxu0 %v113
  %316 = vmatmul.f32.gmra.mxu0 %v32
  %v317 = vpop.f32.mrf.mxu0
  %v318 = vadd.f32 %v289, %v317
  %319 = vmatmul.f32.gmra.mxu0 %v41
  %v320 = vpop.f32.mrf.mxu0
  %v321 = vadd.f32 %v292, %v320
  %322 = vmatmul.f32.gmra.mxu0 %v50
  %v323 = vpop.f32.mrf.mxu0
  %v324 = vadd.f32 %v295, %v323
  %325 = vmatmul.f32.gmra.mxu0 %v59
  %v326 = vpop.f32.mrf.mxu0
  %v327 = vadd.f32 %v298, %v326
  %328 = vdwg.mxu0
  %329 = vmatpush.msra.mxu0 %v144
  %330 = vmatpush.msra.mxu0 %v143
  %331 = vmatpush.msra.mxu0 %v142
  %332 = vmatpush.msra.mxu0 %v141
  %333 = vmatpush.msra.mxu0 %v140
  %334 = vmatpush.msra.mxu0 %v139
  %335 = vmatpush.msra.mxu0 %v138
  %336 = vmatpush.msra.mxu0 %v137
  %337 = vmatpush.msra.mxu0 %v136
  %338 = vmatpush.msra.mxu0 %v135
  %339 = vmatpush.msra.mxu0 %v134
  %340 = vmatpush.msra.mxu0 %v133
  %341 = vmatpush.msra.mxu0 %v132
  %342 = vmatpush.msra.mxu0 %v131
  %343 = vmatpush.msra.mxu0 %v130
  %344 = vmatpush.msra.mxu0 %v129
  %345 = vmatmul.f32.gmra.mxu0 %v33
  %v346 = vpop.f32.mrf.mxu0
  %v347 = vadd.f32 %v318, %v346
  %348 = vmatmul.f32.gmra.mxu0 %v42
  %v349 = vpop.f32.mrf.mxu0
  %v350 = vadd.f32 %v321, %v349
  %351 = vmatmul.f32.gmra.mxu0 %v51
  %v352 = vpop.f32.mrf.mxu0
  %v353 = vadd.f32 %v324, %v352
  %354 = vmatmul.f32.gmra.mxu0 %v60
  %v355 = vpop.f32.mrf.mxu0
  %v356 = vadd.f32 %v327, %v355
  %357 = vdwg.mxu0
  %358 = vmatpush.msra.mxu0 %v160
  %359 = vmatpush.msra.mxu0 %v159
  %360 = vmatpush.msra.mxu0 %v158
  %361 = vmatpush.msra.mxu0 %v157
  %362 = vmatpush.msra.mxu0 %v156
  %363 = vmatpush.msra.mxu0 %v155
  %364 = vmatpush.msra.mxu0 %v154
  %365 = vmatpush.msra.mxu0 %v153
  %366 = vmatpush.msra.mxu0 %v152
  %367 = vmatpush.msra.mxu0 %v151
  %368 = vmatpush.msra.mxu0 %v150
  %369 = vmatpush.msra.mxu0 %v149
  %370 = vmatpush.msra.mxu0 %v148
  %371 = vmatpush.msra.mxu0 %v147
  %372 = vmatpush.msra.mxu0 %v146
  %373 = vmatpush.msra.mxu0 %v145
  %374 = vmatmul.f32.gmra.mxu0 %v34
  %v375 = vpop.f32.mrf.mxu0
  %v376 = vadd.f32 %v347, %v375
  %377 = vmatmul.f32.gmra.mxu0 %v43
  %v378 = vpop.f32.mrf.mxu0
  %v379 = vadd.f32 %v350, %v378
  %380 = vmatmul.f32.gmra.mxu0 %v52
  %v381 = vpop.f32.mrf.mxu0
  %v382 = vadd.f32 %v353, %v381
  %383 = vmatmul.f32.gmra.mxu0 %v61
  %v384 = vpop.f32.mrf.mxu0
  %v385 = vadd.f32 %v356, %v384
  %386 = vdwg.mxu0
  %387 = vmatpush.msra.mxu0 %v176
  %388 = vmatpush.msra.mxu0 %v175
  %389 = vmatpush.msra.mxu0 %v174
  %390 = vmatpush.msra.mxu0 %v173
  %391 = vmatpush.msra.mxu0 %v172
  %392 = vmatpush.msra.mxu0 %v171
  %393 = vmatpush.msra.mxu0 %v170
  %394 = vmatpush.msra.mxu0 %v169
  %395 = vmatpush.msra.mxu0 %v168
  %396 = vmatpush.msra.mxu0 %v167
  %397 = vmatpush.msra.mxu0 %v166
  %398 = vmatpush.msra.mxu0 %v165
  %399 = vmatpush.msra.mxu0 %v164
  %400 = vmatpush.msra.mxu0 %v163
  %401 = vmatpush.msra.mxu0 %v162
  %402 = vmatpush.msra.mxu0 %v161
  %403 = vmatmul.f32.gmra.mxu0 %v35
  %v404 = vpop.f32.mrf.mxu0
  %v405 = vadd.f32 %v376, %v404
  %406 = vmatmul.f32.gmra.mxu0 %v44
  %v407 = vpop.f32.mrf.mxu0
  %v408 = vadd.f32 %v379, %v407
  %409 = vmatmul.f32.gmra.mxu0 %v53
  %v410 = vpop.f32.mrf.mxu0
  %v411 = vadd.f32 %v382, %v410
  %412 = vmatmul.f32.gmra.mxu0 %v62
  %v413 = vpop.f32.mrf.mxu0
  %v414 = vadd.f32 %v385, %v413
  %415 = vdwg.mxu0
  %416 = vmatpush.msra.mxu0 %v192
  %417 = vmatpush.msra.mxu0 %v191
  %418 = vmatpush.msra.mxu0 %v190
  %419 = vmatpush.msra.mxu0 %v189
  %420 = vmatpush.msra.mxu0 %v188
  %421 = vmatpush.msra.mxu0 %v187
  %422 = vmatpush.msra.mxu0 %v186
  %423 = vmatpush.msra.mxu0 %v185
  %424 = vmatpush.msra.mxu0 %v184
  %425 = vmatpush.msra.mxu0 %v183
  %426 = vmatpush.msra.mxu0 %v182
  %427 = vmatpush.msra.mxu0 %v181
  %428 = vmatpush.msra.mxu0 %v180
  %429 = vmatpush.msra.mxu0 %v179
  %430 = vmatpush.msra.mxu0 %v178
  %431 = vmatpush.msra.mxu0 %v177
  %432 = vmatmul.f32.gmra.mxu0 %v36
  %v433 = vpop.f32.mrf.mxu0
  %v434 = vadd.f32 %v405, %v433
  %435 = vmatmul.f32.gmra.mxu0 %v45
  %v436 = vpop.f32.mrf.mxu0
  %v437 = vadd.f32 %v408, %v436
  %438 = vmatmul.f32.gmra.mxu0 %v54
  %v439 = vpop.f32.mrf.mxu0
  %v440 = vadd.f32 %v411, %v439
  %441 = vmatmul.f32.gmra.mxu0 %v63
  %v442 = vpop.f32.mrf.mxu0
  %v443 = vadd.f32 %v414, %v442
  %444 = vdwg.mxu0
  %445 = vmatpush.msra.mxu0 %v208
  %446 = vmatpush.msra.mxu0 %v207
  %447 = vmatpush.msra.mxu0 %v206
  %448 = vmatpush.msra.mxu0 %v205
  %449 = vmatpush.msra.mxu0 %v204
  %450 = vmatpush.msra.mxu0 %v203
  %451 = vmatpush.msra.mxu0 %v202
  %452 = vmatpush.msra.mxu0 %v201
  %453 = vmatpush.msra.mxu0 %v200
  %454 = vmatpush.msra.mxu0 %v199
  %455 = vmatpush.msra.mxu0 %v198
  %456 = vmatpush.msra.mxu0 %v197
  %457 = vmatpush.msra.mxu0 %v196
  %458 = vmatpush.msra.mxu0 %v195
  %459 = vmatpush.msra.mxu0 %v194
  %460 = vmatpush.msra.mxu0 %v193
  %461 = vmatmul.f32.gmra.mxu0 %v37
  %v462 = vpop.f32.mrf.mxu0
  %v463 = vadd.f32 %v434, %v462
  %464 = vmatmul.f32.gmra.mxu0 %v46
  %v465 = vpop.f32.mrf.mxu0
  %v466 = vadd.f32 %v437, %v465
  %467 = vmatmul.f32.gmra.mxu0 %v55
  %v468 = vpop.f32.mrf.mxu0
  %v469 = vadd.f32 %v440, %v468
  %470 = vmatmul.f32.gmra.mxu0 %v64
  %v471 = vpop.f32.mrf.mxu0
  %v472 = vadd.f32 %v443, %v471
  %473 = vdwg.mxu0
  %v474 = vadd.f32 %v463, %v466
  %v475 = vadd.f32 %v474, %v469
  %v476 = vadd.f32 %v475, %v472
  %v477 = vrot.slane %v476, 4
  %v478 = vadd.f32 %v476, %v477
  %v479 = vrot.slane %v478, 2
  %v480 = vadd.f32 %v478, %v479
  %v481 = vrot.slane %v480, 1
  %v482 = vadd.f32 %v480, %v481
  %v483 = vrcp.pop 32.0
  %v484 = vmul.f32 32.0, %v483
  %v485 = vsub.f32 1.0, %v484
  %v486 = vmul.f32 %v483, %v485
  %v487 = vadd.f32 %v483, %v486
  %vm488 = vweird.f32 %v483
  %v489 = vsel %vm488, %v483, %v487
  %v490 = vmul.f32 %v482, %v489
  %v491 = vsub.f32 %v463, %v490
  %v492 = vsub.f32 %v466, %v490
  %v493 = vsub.f32 %v469, %v490
  %v494 = vsub.f32 %v472, %v490
  %v495 = vmul.f32 %v491, %v491
  %v496 = vmul.f32 %v492, %v492
  %v497 = vmul.f32 %v493, %v493
  %v498 = vmul.f32 %v494, %v494
  %v499 = vadd.f32 %v495, %v496
  %v500 = vadd.f32 %v499, %v497
  %v501 = vadd.f32 %v500, %v498
  %v502 = vrot.slane %v501, 4
  %v503 = vadd.f32 %v501, %v502
  %v504 = vrot.slane %v503, 2
  %v505 = vadd.f32 %v503, %v504
  %v506 = vrot.slane %v505, 1
  %v507 = vadd.f32 %v505, %v506
  %v508 = vmul.f32 %v507, %v489
  %v509 = vadd.f32 %v508, 1e-05
  %v510 = vrsqrt.pop %v509
  %v511 = vmul.f32 %v510, %v509
  %v512 = vmul.f32 %v511, %v510
  %v513 = vmul.f32 0.5, %v512
  %v514 = vsub.f32 1.5, %v513
  %v515 = vmul.f32 %v510, %v514
  %vm516 = vweird.f32 %v509
  %vm517 = vweird.f32 %v510
  %vm518 = vmor %vm516, %vm517
  %v519 = vsel %vm518, %v510, %v515
  %v520 = vmul.f32 %v491, %v519
  %v521 = vmul.f32 %v492, %v519
  %v522 = vmul.f32 %v493, %v519
  %v523 = vmul.f32 %v494, %v519
  %v524 = vld [vmem:[%s3] sm:$0x1]
  %v526 = vperm.slane %v524, 0
  %v528 = vmul.f32 %v520, %v526
  %v529 = vmul.f32 %v521, %v526
  %v530 = vmul.f32 %v522, %v526
  %v531 = vmul.f32 %v523, %v526
  %v532 = vld [vmem:[%s4] sm:$0x1]
  %v534 = vperm.slane %v532, 0
  %v536 = vadd.f32 %v528, %v534
  %v537 = vadd.f32 %v529, %v534
  %v538 = vadd.f32 %v530, %v534
  %v539 = vadd.f32 %v531, %v534
  %v540 = vmax.f32 %v536, 0.0
  %v541 = vmax.f32 %v537, 0.0
  %v542 = vmax.f32 %v538, 0.0
  %v543 = vmax.f32 %v539, 0.0
  %v544 = vld [vmem:[%s5] sm:$0x3]
  %v545 = vld [vmem:[%s6] sm:$0xff]
  %v546 = vld [vmem:[%s6 + $0x8] sm:$0xff]
  %v547 = vld [vmem:[%s6 + $0x10] sm:$0xff]
  %v548 = vld [vmem:[%s6 + $0x18] sm:$0xff]
  %v549 = vld [vmem:[%s7] sm:$0x1]
  %v551 = vperm.slane %v549, 0
  %vm553 = vcmask 261120
  %v555 = vsel %vm553, %v544, 0
  %557 = vmatpush.msra.mxu0 0.0
  %558 = vmatpush.msra.mxu0 0.0
  %559 = vmatpush.msra.mxu0 0.0
  %560 = vmatpush.msra.mxu0 0.0
  %561 = vmatpush.msra.mxu0 0.0
  %562 = vmatpush.msra.mxu0 0.0
  %563 = vmatpush.msra.mxu0 0.0
  %564 = vmatpush.msra.mxu0 0.0
  %565 = vmatpush.msra.mxu0 0.0
  %566 = vmatpush.msra.mxu0 0.0
  %567 = vmatpush.msra.mxu0 0.0
  %568 = vmatpush.msra.mxu0 0.0
  %569 = vmatpush.msra.mxu0 %v548
  %570 = vmatpush.msra.mxu0 %v547
  %571 = vmatpush.msra.mxu0 %v546
  %572 = vmatpush.msra.mxu0 %v545
  %573 = vmatmul.f32.gmra.mxu0 %v555
  %v574 = vpop.f32.mrf.mxu0
  %v575 = vadd.f32 %v551, %v574
  %576 = vdwg.mxu0
  %v578 = vrot.slane %v575, 1
  %v579 = vperm.slane %v575, 0
  %v580 = vperm.slane %v578, 0
  %v583 = vadd.f32 %v540, %v579
  %v584 = vadd.f32 %v541, %v579
  %v585 = vadd.f32 %v542, %v580
  %v586 = vadd.f32 %v543, %v580
  %587 = vst [vmem:[%s8] sm:$0xff] %v583
  %588 = vst [vmem:[%s8 + $0x8] sm:$0xff] %v584
  %589 = vst [vmem:[%s8 + $0x10] sm:$0xff] %v585
  %590 = vst [vmem:[%s8 + $0x18] sm:$0xff] %v586
  // Predicated region
  $region34: #{noisy_classifier_forward.6} parent=0 // pred_check
    _
  $region35: #{noisy_classifier_forward.6} parent=0 // pred_check_branch
    %592 = sbr.rel (0) target = $region37
  $region36: #{noisy_classifier_forward.6} parent=0 // pred_region
    _
  $region37: #{noisy_classifier_forward.6} parent=0 // pred_fallthru
    _
  // Predicated region
  $region38: #{noisy_classifier_forward.6} parent=0 // pred_check
    _
  $region39: #{noisy_classifier_forward.6} parent=0 // pred_check_branch
    %594 = sbr.rel (0) target = $region41
  $region40: #{noisy_classifier_forward.6} parent=0 // pred_region
    _
  $region41: #{noisy_classifier_forward.6} parent=0 // pred_fallthru
    _

</llo_original>
